<compile_context>
chip_gen: v6e
topology: v6e:2x2x1
jax: 0.10.0
libtpu: 0.0.40
codegen_flags: <defaults>
</compile_context>

<pallas_src>
import math

import jax
import jax.numpy as jnp
import numpy as np
from jax.experimental import pallas as pl
from jax.experimental.pallas import tpu as pltpu

# ---- problem sizes (CBAM(channel=32, reduction=16, spatial_kernel=7)) ----
N, C, H, W = 2, 32, 16, 16
HW = H * W                    # 256 -> lane-dense
REDUCTION = 16
C_R = C // REDUCTION          # 2
KS = 7                        # spatial kernel
PAD = KS // 2                 # 3
SLAB_ROWS = ((2 * N + 7) // 8) * 8   # pooled-map slab padded to a multiple of 8 sublanes

assert W & (W - 1) == 0, "W must be a power of two for the bitwise column-index trick"


def cbam_kernel(x_ref, w1t_ref, w2_ref, wsm_ref, o_ref):
    """Single grid step; everything lane-dense (last dim = HW = 256).

    x_ref  : VMEM (N, C, HW)    all samples, flattened spatial dim
    w1t_ref: VMEM (C, C_R)      first 1x1 conv weight of the MLP, transposed
    w2_ref : VMEM (C, C_R)      second 1x1 conv weight of the MLP
    wsm_ref: SMEM (2, KS*KS)    7x7 spatial-conv taps; row 0 = max ch, row 1 = mean ch
    o_ref  : VMEM (N, C, HW)
    """
    inv_hw = 1.0 / HW
    inv_c = 1.0 / C

    def mlp_col(v):  # v: (C, 1) -> (C, 1); VPU/XLU only, no MXU, no concats
        h = jnp.maximum(jnp.sum(w1t_ref[...] * v, axis=0, keepdims=True), 0.0)  # (1, C_R)
        return jnp.sum(w2_ref[...] * h, axis=1, keepdims=True)                   # (C, 1)

    # ---------- pass 1: channel attention + channel-pooled spatial maps ----------
    ca_cols, max_rows, mean_rows = [], [], []
    for n in range(N):                                         # static unroll (N = 2)
        x2 = x_ref[n]                                          # (C, HW)
        mx = jnp.max(x2, axis=1, keepdims=True)                # (C, 1)
        av = jnp.sum(x2, axis=1, keepdims=True) * inv_hw       # (C, 1)
        ca = jax.nn.sigmoid(mlp_col(mx) + mlp_col(av))         # (C, 1) channel attention
        ca_cols.append(ca)
        x_ca = ca * x2                                         # (C, HW)
        max_rows.append(jnp.max(x_ca, axis=0, keepdims=True))            # (1, HW)
        mean_rows.append(jnp.sum(x_ca, axis=0, keepdims=True) * inv_c)   # (1, HW)

    # Slab rows: [max_0 .. max_{N-1}, mean_0 .. mean_{N-1}, zero pad to 8 sublanes].
    rows = max_rows + mean_rows
    if SLAB_ROWS > 2 * N:
        rows.append(jnp.zeros((SLAB_ROWS - 2 * N, HW), jnp.float32))
    slab = jnp.concatenate(rows, axis=0)                       # (SLAB_ROWS, HW)

    # ---------- pass 2: 7x7 "same" conv as 49 shifted-accumulate taps ----------
    lane = jax.lax.broadcasted_iota(jnp.int32, (1, HW), 1)     # flattened position p
    pcol = jnp.bitwise_and(lane, W - 1)                        # p % W  (W is a power of 2)
    # row validity: 0 <= p//W + d < H  <=>  -d*W <= p < HW - d*W   (no integer division needed)
    row_mask = [((lane >= -d * W) & (lane < HW - d * W)).astype(jnp.float32)
                for d in range(-PAD, PAD + 1)]                 # (1, HW) each
    col_mask = [((pcol >= -d) & (pcol < W - d)).astype(jnp.float32)
                for d in range(-PAD, PAD + 1)]

    acc = jnp.zeros((N, HW), jnp.float32)
    for kr in range(KS):
        dr = kr - PAD
        for kc in range(KS):
            dc = kc - PAD
            # out[p] += w * in[p + dr*W + dc]  ->  roll lanes by -(dr*W + dc) (mod HW).
            shift = (-(dr * W + dc)) % HW
            rolled = pltpu.roll(slab, shift, axis=1) if shift else slab
            w_max = wsm_ref[0, kr * KS + kc]                   # scalar taps from SMEM
            w_mean = wsm_ref[1, kr * KS + kc]
            contrib = w_max * rolled[0:N] + w_mean * rolled[N:2 * N]     # (N, HW)
            acc = acc + (row_mask[kr] * col_mask[kc]) * contrib

    sa = jax.nn.sigmoid(acc)                                   # (N, HW) spatial attention

    # ---------- pass 3: apply both attentions, lane-dense (C, HW) stores ----------
    for n in range(N):                                         # static unroll
        o_ref[n] = (ca_cols[n] * sa[n:n + 1, :]) * x_ref[n]    # (C, HW)


def cbam_pallas(x, w1, w2, wconv):
    x_flat = x.reshape(N, C, HW).astype(jnp.float32)           # lane-dense presentation
    w1t = jnp.transpose(w1).astype(jnp.float32)                # (C, C_R)
    wsm = wconv.reshape(2, KS * KS).astype(jnp.float32)        # SMEM tap table (tiny)

    out_flat = pl.pallas_call(
        cbam_kernel,
        out_shape=jax.ShapeDtypeStruct((N, C, HW), jnp.float32),
        grid=(1,),                                             # single step: all weights DMA'd once
        in_specs=[
            pl.BlockSpec((N, C, HW), lambda i: (0, 0, 0)),
            pl.BlockSpec((C, C_R), lambda i: (0, 0)),
            pl.BlockSpec((C, C_R), lambda i: (0, 0)),
            pl.BlockSpec(memory_space=pltpu.MemorySpace.SMEM),  # conv taps -> SMEM scalars
        ],
        out_specs=pl.BlockSpec((N, C, HW), lambda i: (0, 0, 0)),
        compiler_params=pltpu.CompilerParams(
            dimension_semantics=("arbitrary",)),
    )(x_flat, w1t, w2.astype(jnp.float32), wsm)
    return out_flat.reshape(N, C, H, W)


def cbam_reference(x, w1, w2, wconv):
    """Pure-JAX reference mirroring the PyTorch forward."""
    mx = jnp.max(x, axis=(2, 3))                               # (N, C)
    av = jnp.mean(x, axis=(2, 3))                              # (N, C)

    def mlp(v):                                                # (N, C)
        h = jnp.maximum(v @ w1.T, 0.0)                         # (N, C_R)
        return h @ w2.T                                        # (N, C)

    ca = jax.nn.sigmoid(mlp(mx) + mlp(av))                     # (N, C)
    x1 = ca[:, :, None, None] * x                              # (N, C, H, W)

    max_c = jnp.max(x1, axis=1, keepdims=True)                 # (N, 1, H, W)
    mean_c = jnp.mean(x1, axis=1, keepdims=True)               # (N, 1, H, W)
    sp_in = jnp.concatenate([max_c, mean_c], axis=1)           # (N, 2, H, W)
    conv = jax.lax.conv_general_dilated(
        sp_in, wconv[None],                                    # (1, 2, KS, KS) OIHW
        window_strides=(1, 1), padding=((PAD, PAD), (PAD, PAD)),
        dimension_numbers=("NCHW", "OIHW", "NCHW"))
    sa = jax.nn.sigmoid(conv)                                  # (N, 1, H, W)
    return sa * x1


if __name__ == "__main__":
    key = jax.random.PRNGKey(0)
    kx, k1, k2, k3 = jax.random.split(key, 4)

    x = jax.random.normal(kx, (N, C, H, W), dtype=jnp.float32)
    w1 = jax.random.normal(k1, (C_R, C), dtype=jnp.float32) * (1.0 / math.sqrt(C))
    w2 = jax.random.normal(k2, (C, C_R), dtype=jnp.float32) * (1.0 / math.sqrt(C_R))
    wconv = jax.random.normal(k3, (2, KS, KS), dtype=jnp.float32) * (1.0 / math.sqrt(2 * KS * KS))

    out = jax.jit(cbam_pallas)(x, w1, w2, wconv)
    out = jax.block_until_ready(out)

    ref = jax.block_until_ready(cbam_reference(x, w1, w2, wconv))
    np.testing.assert_allclose(np.asarray(out), np.asarray(ref), rtol=1e-4, atol=1e-5)

    print("KERNEL_OK")
</pallas_src>

<mosaic_0001>
module attributes {stable_mosaic.version = 11 : i64} {
  func.func @cbam_kernel(%arg0: i32, %arg1: memref<2x32x256xf32, #tpu.memory_space<vmem>>, %arg2: memref<32x2xf32, #tpu.memory_space<vmem>>, %arg3: memref<32x2xf32, #tpu.memory_space<vmem>>, %arg4: memref<2x49xf32, #tpu.memory_space<smem>>, %arg5: memref<2x32x256xf32, #tpu.memory_space<vmem>>) attributes {dimension_semantics = [#tpu.dimension_semantics<arbitrary>], iteration_bounds = array<i64: 1>, scalar_prefetch = 0 : i64, scratch_operands = 0 : i64, tpu.core_type = #tpu.core_type<tc>, window_params = [{pipeline_mode = #tpu.pipeline_mode<synchronous>, transform_indices = @transform_0, window_bounds = array<i64: 2, 32, 256>}, {pipeline_mode = #tpu.pipeline_mode<synchronous>, transform_indices = @transform_1, window_bounds = array<i64: 32, 2>}, {pipeline_mode = #tpu.pipeline_mode<synchronous>, transform_indices = @transform_2, window_bounds = array<i64: 32, 2>}, {transform_indices = @transform_3, window_bounds = array<i64: 2, 49>}, {pipeline_mode = #tpu.pipeline_mode<synchronous>, transform_indices = @transform_4, window_bounds = array<i64: 2, 32, 256>}]} {
    %c0 = arith.constant 0 : index
    %c0_0 = arith.constant 0 : index
    %c0_1 = arith.constant 0 : index
    %0 = vector.load %arg1[%c0, %c0_0, %c0_1] : memref<2x32x256xf32, #tpu.memory_space<vmem>>, vector<1x32x256xf32>
    %1 = vector.shape_cast %0 : vector<1x32x256xf32> to vector<32x256xf32>
    %cst = arith.constant dense<0xFF800000> : vector<32xf32>
    %2 = vector.multi_reduction <maximumf>, %1, %cst [1] : vector<32x256xf32> to vector<32xf32>
    %3 = vector.shape_cast %2 : vector<32xf32> to vector<32x1xf32>
    %cst_2 = arith.constant dense<0.000000e+00> : vector<32xf32>
    %4 = vector.multi_reduction <add>, %1, %cst_2 [1] : vector<32x256xf32> to vector<32xf32>
    %5 = vector.shape_cast %4 : vector<32xf32> to vector<32x1xf32>
    %cst_3 = arith.constant 3.906250e-03 : f32
    %6 = vector.broadcast %cst_3 : f32 to vector<32x1xf32>
    %7 = arith.mulf %5, %6 : vector<32x1xf32>
    %c0_4 = arith.constant 0 : index
    %c0_5 = arith.constant 0 : index
    %8 = vector.load %arg2[%c0_4, %c0_5] : memref<32x2xf32, #tpu.memory_space<vmem>>, vector<32x2xf32>
    %9 = vector.broadcast %3 : vector<32x1xf32> to vector<32x2xf32>
    %10 = arith.mulf %8, %9 : vector<32x2xf32>
    %cst_6 = arith.constant dense<0.000000e+00> : vector<2xf32>
    %11 = vector.multi_reduction <add>, %10, %cst_6 [0] : vector<32x2xf32> to vector<2xf32>
    %12 = vector.shape_cast %11 : vector<2xf32> to vector<1x2xf32>
    %cst_7 = arith.constant 0.000000e+00 : f32
    %13 = vector.broadcast %cst_7 : f32 to vector<1x2xf32>
    %14 = arith.maximumf %12, %13 : vector<1x2xf32>
    %c0_8 = arith.constant 0 : index
    %c0_9 = arith.constant 0 : index
    %15 = vector.load %arg3[%c0_8, %c0_9] : memref<32x2xf32, #tpu.memory_space<vmem>>, vector<32x2xf32>
    %16 = vector.broadcast %14 : vector<1x2xf32> to vector<32x2xf32>
    %17 = arith.mulf %15, %16 : vector<32x2xf32>
    %cst_10 = arith.constant dense<0.000000e+00> : vector<32xf32>
    %18 = vector.multi_reduction <add>, %17, %cst_10 [1] : vector<32x2xf32> to vector<32xf32>
    %19 = vector.shape_cast %18 : vector<32xf32> to vector<32x1xf32>
    %c0_11 = arith.constant 0 : index
    %c0_12 = arith.constant 0 : index
    %20 = vector.load %arg2[%c0_11, %c0_12] : memref<32x2xf32, #tpu.memory_space<vmem>>, vector<32x2xf32>
    %21 = vector.broadcast %7 : vector<32x1xf32> to vector<32x2xf32>
    %22 = arith.mulf %20, %21 : vector<32x2xf32>
    %cst_13 = arith.constant dense<0.000000e+00> : vector<2xf32>
    %23 = vector.multi_reduction <add>, %22, %cst_13 [0] : vector<32x2xf32> to vector<2xf32>
    %24 = vector.shape_cast %23 : vector<2xf32> to vector<1x2xf32>
    %cst_14 = arith.constant 0.000000e+00 : f32
    %25 = vector.broadcast %cst_14 : f32 to vector<1x2xf32>
    %26 = arith.maximumf %24, %25 : vector<1x2xf32>
    %c0_15 = arith.constant 0 : index
    %c0_16 = arith.constant 0 : index
    %27 = vector.load %arg3[%c0_15, %c0_16] : memref<32x2xf32, #tpu.memory_space<vmem>>, vector<32x2xf32>
    %28 = vector.broadcast %26 : vector<1x2xf32> to vector<32x2xf32>
    %29 = arith.mulf %27, %28 : vector<32x2xf32>
    %cst_17 = arith.constant dense<0.000000e+00> : vector<32xf32>
    %30 = vector.multi_reduction <add>, %29, %cst_17 [1] : vector<32x2xf32> to vector<32xf32>
    %31 = vector.shape_cast %30 : vector<32xf32> to vector<32x1xf32>
    %32 = arith.addf %19, %31 : vector<32x1xf32>
    %33 = arith.negf %32 : vector<32x1xf32>
    %34 = math.exp %33 : vector<32x1xf32>
    %cst_18 = arith.constant 1.000000e+00 : f32
    %35 = vector.broadcast %cst_18 : f32 to vector<32x1xf32>
    %36 = arith.addf %35, %34 : vector<32x1xf32>
    %37 = arith.divf %35, %36 : vector<32x1xf32>
    %38 = vector.broadcast %37 : vector<32x1xf32> to vector<32x256xf32>
    %39 = arith.mulf %38, %1 : vector<32x256xf32>
    %cst_19 = arith.constant dense<0xFF800000> : vector<256xf32>
    %40 = vector.multi_reduction <maximumf>, %39, %cst_19 [0] : vector<32x256xf32> to vector<256xf32>
    %41 = vector.shape_cast %40 : vector<256xf32> to vector<1x256xf32>
    %cst_20 = arith.constant dense<0.000000e+00> : vector<256xf32>
    %42 = vector.multi_reduction <add>, %39, %cst_20 [0] : vector<32x256xf32> to vector<256xf32>
    %43 = vector.shape_cast %42 : vector<256xf32> to vector<1x256xf32>
    %cst_21 = arith.constant 3.125000e-02 : f32
    %44 = vector.broadcast %cst_21 : f32 to vector<1x256xf32>
    %45 = arith.mulf %43, %44 : vector<1x256xf32>
    %c1 = arith.constant 1 : index
    %c0_22 = arith.constant 0 : index
    %c0_23 = arith.constant 0 : index
    %46 = vector.load %arg1[%c1, %c0_22, %c0_23] : memref<2x32x256xf32, #tpu.memory_space<vmem>>, vector<1x32x256xf32>
    %47 = vector.shape_cast %46 : vector<1x32x256xf32> to vector<32x256xf32>
    %cst_24 = arith.constant dense<0xFF800000> : vector<32xf32>
    %48 = vector.multi_reduction <maximumf>, %47, %cst_24 [1] : vector<32x256xf32> to vector<32xf32>
    %49 = vector.shape_cast %48 : vector<32xf32> to vector<32x1xf32>
    %cst_25 = arith.constant dense<0.000000e+00> : vector<32xf32>
    %50 = vector.multi_reduction <add>, %47, %cst_25 [1] : vector<32x256xf32> to vector<32xf32>
    %51 = vector.shape_cast %50 : vector<32xf32> to vector<32x1xf32>
    %cst_26 = arith.constant 3.906250e-03 : f32
    %52 = vector.broadcast %cst_26 : f32 to vector<32x1xf32>
    %53 = arith.mulf %51, %52 : vector<32x1xf32>
    %c0_27 = arith.constant 0 : index
    %c0_28 = arith.constant 0 : index
    %54 = vector.load %arg2[%c0_27, %c0_28] : memref<32x2xf32, #tpu.memory_space<vmem>>, vector<32x2xf32>
    %55 = vector.broadcast %49 : vector<32x1xf32> to vector<32x2xf32>
    %56 = arith.mulf %54, %55 : vector<32x2xf32>
    %cst_29 = arith.constant dense<0.000000e+00> : vector<2xf32>
    %57 = vector.multi_reduction <add>, %56, %cst_29 [0] : vector<32x2xf32> to vector<2xf32>
    %58 = vector.shape_cast %57 : vector<2xf32> to vector<1x2xf32>
    %cst_30 = arith.constant 0.000000e+00 : f32
    %59 = vector.broadcast %cst_30 : f32 to vector<1x2xf32>
    %60 = arith.maximumf %58, %59 : vector<1x2xf32>
    %c0_31 = arith.constant 0 : index
    %c0_32 = arith.constant 0 : index
    %61 = vector.load %arg3[%c0_31, %c0_32] : memref<32x2xf32, #tpu.memory_space<vmem>>, vector<32x2xf32>
    %62 = vector.broadcast %60 : vector<1x2xf32> to vector<32x2xf32>
    %63 = arith.mulf %61, %62 : vector<32x2xf32>
    %cst_33 = arith.constant dense<0.000000e+00> : vector<32xf32>
    %64 = vector.multi_reduction <add>, %63, %cst_33 [1] : vector<32x2xf32> to vector<32xf32>
    %65 = vector.shape_cast %64 : vector<32xf32> to vector<32x1xf32>
    %c0_34 = arith.constant 0 : index
    %c0_35 = arith.constant 0 : index
    %66 = vector.load %arg2[%c0_34, %c0_35] : memref<32x2xf32, #tpu.memory_space<vmem>>, vector<32x2xf32>
    %67 = vector.broadcast %53 : vector<32x1xf32> to vector<32x2xf32>
    %68 = arith.mulf %66, %67 : vector<32x2xf32>
    %cst_36 = arith.constant dense<0.000000e+00> : vector<2xf32>
    %69 = vector.multi_reduction <add>, %68, %cst_36 [0] : vector<32x2xf32> to vector<2xf32>
    %70 = vector.shape_cast %69 : vector<2xf32> to vector<1x2xf32>
    %cst_37 = arith.constant 0.000000e+00 : f32
    %71 = vector.broadcast %cst_37 : f32 to vector<1x2xf32>
    %72 = arith.maximumf %70, %71 : vector<1x2xf32>
    %c0_38 = arith.constant 0 : index
    %c0_39 = arith.constant 0 : index
    %73 = vector.load %arg3[%c0_38, %c0_39] : memref<32x2xf32, #tpu.memory_space<vmem>>, vector<32x2xf32>
    %74 = vector.broadcast %72 : vector<1x2xf32> to vector<32x2xf32>
    %75 = arith.mulf %73, %74 : vector<32x2xf32>
    %cst_40 = arith.constant dense<0.000000e+00> : vector<32xf32>
    %76 = vector.multi_reduction <add>, %75, %cst_40 [1] : vector<32x2xf32> to vector<32xf32>
    %77 = vector.shape_cast %76 : vector<32xf32> to vector<32x1xf32>
    %78 = arith.addf %65, %77 : vector<32x1xf32>
    %79 = arith.negf %78 : vector<32x1xf32>
    %80 = math.exp %79 : vector<32x1xf32>
    %cst_41 = arith.constant 1.000000e+00 : f32
    %81 = vector.broadcast %cst_41 : f32 to vector<32x1xf32>
    %82 = arith.addf %81, %80 : vector<32x1xf32>
    %83 = arith.divf %81, %82 : vector<32x1xf32>
    %84 = vector.broadcast %83 : vector<32x1xf32> to vector<32x256xf32>
    %85 = arith.mulf %84, %47 : vector<32x256xf32>
    %cst_42 = arith.constant dense<0xFF800000> : vector<256xf32>
    %86 = vector.multi_reduction <maximumf>, %85, %cst_42 [0] : vector<32x256xf32> to vector<256xf32>
    %87 = vector.shape_cast %86 : vector<256xf32> to vector<1x256xf32>
    %cst_43 = arith.constant dense<0.000000e+00> : vector<256xf32>
    %88 = vector.multi_reduction <add>, %85, %cst_43 [0] : vector<32x256xf32> to vector<256xf32>
    %89 = vector.shape_cast %88 : vector<256xf32> to vector<1x256xf32>
    %cst_44 = arith.constant 3.125000e-02 : f32
    %90 = vector.broadcast %cst_44 : f32 to vector<1x256xf32>
    %91 = arith.mulf %89, %90 : vector<1x256xf32>
    %cst_45 = arith.constant 0.000000e+00 : f32
    %92 = vector.broadcast %cst_45 : f32 to vector<4x256xf32>
    %93 = tpu.concatenate %41, %87, %45, %91, %92 in 0 : vector<1x256xf32>, vector<1x256xf32>, vector<1x256xf32>, vector<1x256xf32>, vector<4x256xf32> -> vector<8x256xf32>
    %94 = tpu.iota {dimensions = array<i32: 1>} : vector<1x256xi32>
    %c15_i32 = arith.constant 15 : i32
    %95 = vector.broadcast %c15_i32 : i32 to vector<1x256xi32>
    %96 = arith.andi %94, %95 : vector<1x256xi32>
    %c48_i32 = arith.constant 48 : i32
    %97 = vector.broadcast %c48_i32 : i32 to vector<1x256xi32>
    %98 = arith.cmpi sge, %94, %97 : vector<1x256xi32>
    %c304_i32 = arith.constant 304 : i32
    %99 = vector.broadcast %c304_i32 : i32 to vector<1x256xi32>
    %100 = arith.cmpi slt, %94, %99 : vector<1x256xi32>
    %101 = arith.andi %98, %100 : vector<1x256xi1>
    %102 = arith.extui %101 : vector<1x256xi1> to vector<1x256xi32>
    %103 = arith.sitofp %102 : vector<1x256xi32> to vector<1x256xf32>
    %c32_i32 = arith.constant 32 : i32
    %104 = vector.broadcast %c32_i32 : i32 to vector<1x256xi32>
    %105 = arith.cmpi sge, %94, %104 : vector<1x256xi32>
    %c288_i32 = arith.constant 288 : i32
    %106 = vector.broadcast %c288_i32 : i32 to vector<1x256xi32>
    %107 = arith.cmpi slt, %94, %106 : vector<1x256xi32>
    %108 = arith.andi %105, %107 : vector<1x256xi1>
    %109 = arith.extui %108 : vector<1x256xi1> to vector<1x256xi32>
    %110 = arith.sitofp %109 : vector<1x256xi32> to vector<1x256xf32>
    %c16_i32 = arith.constant 16 : i32
    %111 = vector.broadcast %c16_i32 : i32 to vector<1x256xi32>
    %112 = arith.cmpi sge, %94, %111 : vector<1x256xi32>
    %c272_i32 = arith.constant 272 : i32
    %113 = vector.broadcast %c272_i32 : i32 to vector<1x256xi32>
    %114 = arith.cmpi slt, %94, %113 : vector<1x256xi32>
    %115 = arith.andi %112, %114 : vector<1x256xi1>
    %116 = arith.extui %115 : vector<1x256xi1> to vector<1x256xi32>
    %117 = arith.sitofp %116 : vector<1x256xi32> to vector<1x256xf32>
    %c0_i32 = arith.constant 0 : i32
    %118 = vector.broadcast %c0_i32 : i32 to vector<1x256xi32>
    %119 = arith.cmpi sge, %94, %118 : vector<1x256xi32>
    %c256_i32 = arith.constant 256 : i32
    %120 = vector.broadcast %c256_i32 : i32 to vector<1x256xi32>
    %121 = arith.cmpi slt, %94, %120 : vector<1x256xi32>
    %122 = arith.andi %119, %121 : vector<1x256xi1>
    %123 = arith.extui %122 : vector<1x256xi1> to vector<1x256xi32>
    %124 = arith.sitofp %123 : vector<1x256xi32> to vector<1x256xf32>
    %c-16_i32 = arith.constant -16 : i32
    %125 = vector.broadcast %c-16_i32 : i32 to vector<1x256xi32>
    %126 = arith.cmpi sge, %94, %125 : vector<1x256xi32>
    %c240_i32 = arith.constant 240 : i32
    %127 = vector.broadcast %c240_i32 : i32 to vector<1x256xi32>
    %128 = arith.cmpi slt, %94, %127 : vector<1x256xi32>
    %129 = arith.andi %126, %128 : vector<1x256xi1>
    %130 = arith.extui %129 : vector<1x256xi1> to vector<1x256xi32>
    %131 = arith.sitofp %130 : vector<1x256xi32> to vector<1x256xf32>
    %c-32_i32 = arith.constant -32 : i32
    %132 = vector.broadcast %c-32_i32 : i32 to vector<1x256xi32>
    %133 = arith.cmpi sge, %94, %132 : vector<1x256xi32>
    %c224_i32 = arith.constant 224 : i32
    %134 = vector.broadcast %c224_i32 : i32 to vector<1x256xi32>
    %135 = arith.cmpi slt, %94, %134 : vector<1x256xi32>
    %136 = arith.andi %133, %135 : vector<1x256xi1>
    %137 = arith.extui %136 : vector<1x256xi1> to vector<1x256xi32>
    %138 = arith.sitofp %137 : vector<1x256xi32> to vector<1x256xf32>
    %c-48_i32 = arith.constant -48 : i32
    %139 = vector.broadcast %c-48_i32 : i32 to vector<1x256xi32>
    %140 = arith.cmpi sge, %94, %139 : vector<1x256xi32>
    %c208_i32 = arith.constant 208 : i32
    %141 = vector.broadcast %c208_i32 : i32 to vector<1x256xi32>
    %142 = arith.cmpi slt, %94, %141 : vector<1x256xi32>
    %143 = arith.andi %140, %142 : vector<1x256xi1>
    %144 = arith.extui %143 : vector<1x256xi1> to vector<1x256xi32>
    %145 = arith.sitofp %144 : vector<1x256xi32> to vector<1x256xf32>
    %c3_i32 = arith.constant 3 : i32
    %146 = vector.broadcast %c3_i32 : i32 to vector<1x256xi32>
    %147 = arith.cmpi sge, %96, %146 : vector<1x256xi32>
    %c19_i32 = arith.constant 19 : i32
    %148 = vector.broadcast %c19_i32 : i32 to vector<1x256xi32>
    %149 = arith.cmpi slt, %96, %148 : vector<1x256xi32>
    %150 = arith.andi %147, %149 : vector<1x256xi1>
    %151 = arith.extui %150 : vector<1x256xi1> to vector<1x256xi32>
    %152 = arith.sitofp %151 : vector<1x256xi32> to vector<1x256xf32>
    %c2_i32 = arith.constant 2 : i32
    %153 = vector.broadcast %c2_i32 : i32 to vector<1x256xi32>
    %154 = arith.cmpi sge, %96, %153 : vector<1x256xi32>
    %c18_i32 = arith.constant 18 : i32
    %155 = vector.broadcast %c18_i32 : i32 to vector<1x256xi32>
    %156 = arith.cmpi slt, %96, %155 : vector<1x256xi32>
    %157 = arith.andi %154, %156 : vector<1x256xi1>
    %158 = arith.extui %157 : vector<1x256xi1> to vector<1x256xi32>
    %159 = arith.sitofp %158 : vector<1x256xi32> to vector<1x256xf32>
    %c1_i32 = arith.constant 1 : i32
    %160 = vector.broadcast %c1_i32 : i32 to vector<1x256xi32>
    %161 = arith.cmpi sge, %96, %160 : vector<1x256xi32>
    %c17_i32 = arith.constant 17 : i32
    %162 = vector.broadcast %c17_i32 : i32 to vector<1x256xi32>
    %163 = arith.cmpi slt, %96, %162 : vector<1x256xi32>
    %164 = arith.andi %161, %163 : vector<1x256xi1>
    %165 = arith.extui %164 : vector<1x256xi1> to vector<1x256xi32>
    %166 = arith.sitofp %165 : vector<1x256xi32> to vector<1x256xf32>
    %c0_i32_46 = arith.constant 0 : i32
    %167 = vector.broadcast %c0_i32_46 : i32 to vector<1x256xi32>
    %168 = arith.cmpi sge, %96, %167 : vector<1x256xi32>
    %c16_i32_47 = arith.constant 16 : i32
    %169 = vector.broadcast %c16_i32_47 : i32 to vector<1x256xi32>
    %170 = arith.cmpi slt, %96, %169 : vector<1x256xi32>
    %171 = arith.andi %168, %170 : vector<1x256xi1>
    %172 = arith.extui %171 : vector<1x256xi1> to vector<1x256xi32>
    %173 = arith.sitofp %172 : vector<1x256xi32> to vector<1x256xf32>
    %c-1_i32 = arith.constant -1 : i32
    %174 = vector.broadcast %c-1_i32 : i32 to vector<1x256xi32>
    %175 = arith.cmpi sge, %96, %174 : vector<1x256xi32>
    %c15_i32_48 = arith.constant 15 : i32
    %176 = vector.broadcast %c15_i32_48 : i32 to vector<1x256xi32>
    %177 = arith.cmpi slt, %96, %176 : vector<1x256xi32>
    %178 = arith.andi %175, %177 : vector<1x256xi1>
    %179 = arith.extui %178 : vector<1x256xi1> to vector<1x256xi32>
    %180 = arith.sitofp %179 : vector<1x256xi32> to vector<1x256xf32>
    %c-2_i32 = arith.constant -2 : i32
    %181 = vector.broadcast %c-2_i32 : i32 to vector<1x256xi32>
    %182 = arith.cmpi sge, %96, %181 : vector<1x256xi32>
    %c14_i32 = arith.constant 14 : i32
    %183 = vector.broadcast %c14_i32 : i32 to vector<1x256xi32>
    %184 = arith.cmpi slt, %96, %183 : vector<1x256xi32>
    %185 = arith.andi %182, %184 : vector<1x256xi1>
    %186 = arith.extui %185 : vector<1x256xi1> to vector<1x256xi32>
    %187 = arith.sitofp %186 : vector<1x256xi32> to vector<1x256xf32>
    %c-3_i32 = arith.constant -3 : i32
    %188 = vector.broadcast %c-3_i32 : i32 to vector<1x256xi32>
    %189 = arith.cmpi sge, %96, %188 : vector<1x256xi32>
    %c13_i32 = arith.constant 13 : i32
    %190 = vector.broadcast %c13_i32 : i32 to vector<1x256xi32>
    %191 = arith.cmpi slt, %96, %190 : vector<1x256xi32>
    %192 = arith.andi %189, %191 : vector<1x256xi1>
    %193 = arith.extui %192 : vector<1x256xi1> to vector<1x256xi32>
    %194 = arith.sitofp %193 : vector<1x256xi32> to vector<1x256xf32>
    %cst_49 = arith.constant 0.000000e+00 : f32
    %195 = vector.broadcast %cst_49 : f32 to vector<2x256xf32>
    %c51_i32 = arith.constant 51 : i32
    %196 = tpu.dynamic_rotate %93 by %c51_i32 dim 1 : vector<8x256xf32>, i32 -> vector<8x256xf32>
    %c0_50 = arith.constant 0 : index
    %c0_51 = arith.constant 0 : index
    %197 = memref.load %arg4[%c0_50, %c0_51] : memref<2x49xf32, #tpu.memory_space<smem>>
    %c1_52 = arith.constant 1 : index
    %c0_53 = arith.constant 0 : index
    %198 = memref.load %arg4[%c1_52, %c0_53] : memref<2x49xf32, #tpu.memory_space<smem>>
    %199 = vector.extract_strided_slice %196 {offsets = [0, 0], sizes = [2, 256], strides = [1, 1]} : vector<8x256xf32> to vector<2x256xf32>
    %200 = vector.broadcast %197 : f32 to vector<2x256xf32>
    %201 = arith.mulf %200, %199 : vector<2x256xf32>
    %202 = vector.extract_strided_slice %196 {offsets = [2, 0], sizes = [2, 256], strides = [1, 1]} : vector<8x256xf32> to vector<2x256xf32>
    %203 = vector.broadcast %198 : f32 to vector<2x256xf32>
    %204 = arith.mulf %203, %202 : vector<2x256xf32>
    %205 = arith.addf %201, %204 : vector<2x256xf32>
    %206 = arith.mulf %103, %152 : vector<1x256xf32>
    %207 = vector.broadcast %206 : vector<1x256xf32> to vector<2x256xf32>
    %208 = arith.mulf %207, %205 : vector<2x256xf32>
    %209 = arith.addf %195, %208 : vector<2x256xf32>
    %c50_i32 = arith.constant 50 : i32
    %210 = tpu.dynamic_rotate %93 by %c50_i32 dim 1 : vector<8x256xf32>, i32 -> vector<8x256xf32>
    %c0_54 = arith.constant 0 : index
    %c1_55 = arith.constant 1 : index
    %211 = memref.load %arg4[%c0_54, %c1_55] : memref<2x49xf32, #tpu.memory_space<smem>>
    %c1_56 = arith.constant 1 : index
    %c1_57 = arith.constant 1 : index
    %212 = memref.load %arg4[%c1_56, %c1_57] : memref<2x49xf32, #tpu.memory_space<smem>>
    %213 = vector.extract_strided_slice %210 {offsets = [0, 0], sizes = [2, 256], strides = [1, 1]} : vector<8x256xf32> to vector<2x256xf32>
    %214 = vector.broadcast %211 : f32 to vector<2x256xf32>
    %215 = arith.mulf %214, %213 : vector<2x256xf32>
    %216 = vector.extract_strided_slice %210 {offsets = [2, 0], sizes = [2, 256], strides = [1, 1]} : vector<8x256xf32> to vector<2x256xf32>
    %217 = vector.broadcast %212 : f32 to vector<2x256xf32>
    %218 = arith.mulf %217, %216 : vector<2x256xf32>
    %219 = arith.addf %215, %218 : vector<2x256xf32>
    %220 = arith.mulf %103, %159 : vector<1x256xf32>
    %221 = vector.broadcast %220 : vector<1x256xf32> to vector<2x256xf32>
    %222 = arith.mulf %221, %219 : vector<2x256xf32>
    %223 = arith.addf %209, %222 : vector<2x256xf32>
    %c49_i32 = arith.constant 49 : i32
    %224 = tpu.dynamic_rotate %93 by %c49_i32 dim 1 : vector<8x256xf32>, i32 -> vector<8x256xf32>
    %c0_58 = arith.constant 0 : index
    %c2 = arith.constant 2 : index
    %225 = memref.load %arg4[%c0_58, %c2] : memref<2x49xf32, #tpu.memory_space<smem>>
    %c1_59 = arith.constant 1 : index
    %c2_60 = arith.constant 2 : index
    %226 = memref.load %arg4[%c1_59, %c2_60] : memref<2x49xf32, #tpu.memory_space<smem>>
    %227 = vector.extract_strided_slice %224 {offsets = [0, 0], sizes = [2, 256], strides = [1, 1]} : vector<8x256xf32> to vector<2x256xf32>
    %228 = vector.broadcast %225 : f32 to vector<2x256xf32>
    %229 = arith.mulf %228, %227 : vector<2x256xf32>
    %230 = vector.extract_strided_slice %224 {offsets = [2, 0], sizes = [2, 256], strides = [1, 1]} : vector<8x256xf32> to vector<2x256xf32>
    %231 = vector.broadcast %226 : f32 to vector<2x256xf32>
    %232 = arith.mulf %231, %230 : vector<2x256xf32>
    %233 = arith.addf %229, %232 : vector<2x256xf32>
    %234 = arith.mulf %103, %166 : vector<1x256xf32>
    %235 = vector.broadcast %234 : vector<1x256xf32> to vector<2x256xf32>
    %236 = arith.mulf %235, %233 : vector<2x256xf32>
    %237 = arith.addf %223, %236 : vector<2x256xf32>
    %c48_i32_61 = arith.constant 48 : i32
    %238 = tpu.dynamic_rotate %93 by %c48_i32_61 dim 1 : vector<8x256xf32>, i32 -> vector<8x256xf32>
    %c0_62 = arith.constant 0 : index
    %c3 = arith.constant 3 : index
    %239 = memref.load %arg4[%c0_62, %c3] : memref<2x49xf32, #tpu.memory_space<smem>>
    %c1_63 = arith.constant 1 : index
    %c3_64 = arith.constant 3 : index
    %240 = memref.load %arg4[%c1_63, %c3_64] : memref<2x49xf32, #tpu.memory_space<smem>>
    %241 = vector.extract_strided_slice %238 {offsets = [0, 0], sizes = [2, 256], strides = [1, 1]} : vector<8x256xf32> to vector<2x256xf32>
    %242 = vector.broadcast %239 : f32 to vector<2x256xf32>
    %243 = arith.mulf %242, %241 : vector<2x256xf32>
    %244 = vector.extract_strided_slice %238 {offsets = [2, 0], sizes = [2, 256], strides = [1, 1]} : vector<8x256xf32> to vector<2x256xf32>
    %245 = vector.broadcast %240 : f32 to vector<2x256xf32>
    %246 = arith.mulf %245, %244 : vector<2x256xf32>
    %247 = arith.addf %243, %246 : vector<2x256xf32>
    %248 = arith.mulf %103, %173 : vector<1x256xf32>
    %249 = vector.broadcast %248 : vector<1x256xf32> to vector<2x256xf32>
    %250 = arith.mulf %249, %247 : vector<2x256xf32>
    %251 = arith.addf %237, %250 : vector<2x256xf32>
    %c47_i32 = arith.constant 47 : i32
    %252 = tpu.dynamic_rotate %93 by %c47_i32 dim 1 : vector<8x256xf32>, i32 -> vector<8x256xf32>
    %c0_65 = arith.constant 0 : index
    %c4 = arith.constant 4 : index
    %253 = memref.load %arg4[%c0_65, %c4] : memref<2x49xf32, #tpu.memory_space<smem>>
    %c1_66 = arith.constant 1 : index
    %c4_67 = arith.constant 4 : index
    %254 = memref.load %arg4[%c1_66, %c4_67] : memref<2x49xf32, #tpu.memory_space<smem>>
    %255 = vector.extract_strided_slice %252 {offsets = [0, 0], sizes = [2, 256], strides = [1, 1]} : vector<8x256xf32> to vector<2x256xf32>
    %256 = vector.broadcast %253 : f32 to vector<2x256xf32>
    %257 = arith.mulf %256, %255 : vector<2x256xf32>
    %258 = vector.extract_strided_slice %252 {offsets = [2, 0], sizes = [2, 256], strides = [1, 1]} : vector<8x256xf32> to vector<2x256xf32>
    %259 = vector.broadcast %254 : f32 to vector<2x256xf32>
    %260 = arith.mulf %259, %258 : vector<2x256xf32>
    %261 = arith.addf %257, %260 : vector<2x256xf32>
    %262 = arith.mulf %103, %180 : vector<1x256xf32>
    %263 = vector.broadcast %262 : vector<1x256xf32> to vector<2x256xf32>
    %264 = arith.mulf %263, %261 : vector<2x256xf32>
    %265 = arith.addf %251, %264 : vector<2x256xf32>
    %c46_i32 = arith.constant 46 : i32
    %266 = tpu.dynamic_rotate %93 by %c46_i32 dim 1 : vector<8x256xf32>, i32 -> vector<8x256xf32>
    %c0_68 = arith.constant 0 : index
    %c5 = arith.constant 5 : index
    %267 = memref.load %arg4[%c0_68, %c5] : memref<2x49xf32, #tpu.memory_space<smem>>
    %c1_69 = arith.constant 1 : index
    %c5_70 = arith.constant 5 : index
    %268 = memref.load %arg4[%c1_69, %c5_70] : memref<2x49xf32, #tpu.memory_space<smem>>
    %269 = vector.extract_strided_slice %266 {offsets = [0, 0], sizes = [2, 256], strides = [1, 1]} : vector<8x256xf32> to vector<2x256xf32>
    %270 = vector.broadcast %267 : f32 to vector<2x256xf32>
    %271 = arith.mulf %270, %269 : vector<2x256xf32>
    %272 = vector.extract_strided_slice %266 {offsets = [2, 0], sizes = [2, 256], strides = [1, 1]} : vector<8x256xf32> to vector<2x256xf32>
    %273 = vector.broadcast %268 : f32 to vector<2x256xf32>
    %274 = arith.mulf %273, %272 : vector<2x256xf32>
    %275 = arith.addf %271, %274 : vector<2x256xf32>
    %276 = arith.mulf %103, %187 : vector<1x256xf32>
    %277 = vector.broadcast %276 : vector<1x256xf32> to vector<2x256xf32>
    %278 = arith.mulf %277, %275 : vector<2x256xf32>
    %279 = arith.addf %265, %278 : vector<2x256xf32>
    %c45_i32 = arith.constant 45 : i32
    %280 = tpu.dynamic_rotate %93 by %c45_i32 dim 1 : vector<8x256xf32>, i32 -> vector<8x256xf32>
    %c0_71 = arith.constant 0 : index
    %c6 = arith.constant 6 : index
    %281 = memref.load %arg4[%c0_71, %c6] : memref<2x49xf32, #tpu.memory_space<smem>>
    %c1_72 = arith.constant 1 : index
    %c6_73 = arith.constant 6 : index
    %282 = memref.load %arg4[%c1_72, %c6_73] : memref<2x49xf32, #tpu.memory_space<smem>>
    %283 = vector.extract_strided_slice %280 {offsets = [0, 0], sizes = [2, 256], strides = [1, 1]} : vector<8x256xf32> to vector<2x256xf32>
    %284 = vector.broadcast %281 : f32 to vector<2x256xf32>
    %285 = arith.mulf %284, %283 : vector<2x256xf32>
    %286 = vector.extract_strided_slice %280 {offsets = [2, 0], sizes = [2, 256], strides = [1, 1]} : vector<8x256xf32> to vector<2x256xf32>
    %287 = vector.broadcast %282 : f32 to vector<2x256xf32>
    %288 = arith.mulf %287, %286 : vector<2x256xf32>
    %289 = arith.addf %285, %288 : vector<2x256xf32>
    %290 = arith.mulf %103, %194 : vector<1x256xf32>
    %291 = vector.broadcast %290 : vector<1x256xf32> to vector<2x256xf32>
    %292 = arith.mulf %291, %289 : vector<2x256xf32>
    %293 = arith.addf %279, %292 : vector<2x256xf32>
    %c35_i32 = arith.constant 35 : i32
    %294 = tpu.dynamic_rotate %93 by %c35_i32 dim 1 : vector<8x256xf32>, i32 -> vector<8x256xf32>
    %c0_74 = arith.constant 0 : index
    %c7 = arith.constant 7 : index
    %295 = memref.load %arg4[%c0_74, %c7] : memref<2x49xf32, #tpu.memory_space<smem>>
    %c1_75 = arith.constant 1 : index
    %c7_76 = arith.constant 7 : index
    %296 = memref.load %arg4[%c1_75, %c7_76] : memref<2x49xf32, #tpu.memory_space<smem>>
    %297 = vector.extract_strided_slice %294 {offsets = [0, 0], sizes = [2, 256], strides = [1, 1]} : vector<8x256xf32> to vector<2x256xf32>
    %298 = vector.broadcast %295 : f32 to vector<2x256xf32>
    %299 = arith.mulf %298, %297 : vector<2x256xf32>
    %300 = vector.extract_strided_slice %294 {offsets = [2, 0], sizes = [2, 256], strides = [1, 1]} : vector<8x256xf32> to vector<2x256xf32>
    %301 = vector.broadcast %296 : f32 to vector<2x256xf32>
    %302 = arith.mulf %301, %300 : vector<2x256xf32>
    %303 = arith.addf %299, %302 : vector<2x256xf32>
    %304 = arith.mulf %110, %152 : vector<1x256xf32>
    %305 = vector.broadcast %304 : vector<1x256xf32> to vector<2x256xf32>
    %306 = arith.mulf %305, %303 : vector<2x256xf32>
    %307 = arith.addf %293, %306 : vector<2x256xf32>
    %c34_i32 = arith.constant 34 : i32
    %308 = tpu.dynamic_rotate %93 by %c34_i32 dim 1 : vector<8x256xf32>, i32 -> vector<8x256xf32>
    %c0_77 = arith.constant 0 : index
    %c8 = arith.constant 8 : index
    %309 = memref.load %arg4[%c0_77, %c8] : memref<2x49xf32, #tpu.memory_space<smem>>
    %c1_78 = arith.constant 1 : index
    %c8_79 = arith.constant 8 : index
    %310 = memref.load %arg4[%c1_78, %c8_79] : memref<2x49xf32, #tpu.memory_space<smem>>
    %311 = vector.extract_strided_slice %308 {offsets = [0, 0], sizes = [2, 256], strides = [1, 1]} : vector<8x256xf32> to vector<2x256xf32>
    %312 = vector.broadcast %309 : f32 to vector<2x256xf32>
    %313 = arith.mulf %312, %311 : vector<2x256xf32>
    %314 = vector.extract_strided_slice %308 {offsets = [2, 0], sizes = [2, 256], strides = [1, 1]} : vector<8x256xf32> to vector<2x256xf32>
    %315 = vector.broadcast %310 : f32 to vector<2x256xf32>
    %316 = arith.mulf %315, %314 : vector<2x256xf32>
    %317 = arith.addf %313, %316 : vector<2x256xf32>
    %318 = arith.mulf %110, %159 : vector<1x256xf32>
    %319 = vector.broadcast %318 : vector<1x256xf32> to vector<2x256xf32>
    %320 = arith.mulf %319, %317 : vector<2x256xf32>
    %321 = arith.addf %307, %320 : vector<2x256xf32>
    %c33_i32 = arith.constant 33 : i32
    %322 = tpu.dynamic_rotate %93 by %c33_i32 dim 1 : vector<8x256xf32>, i32 -> vector<8x256xf32>
    %c0_80 = arith.constant 0 : index
    %c9 = arith.constant 9 : index
    %323 = memref.load %arg4[%c0_80, %c9] : memref<2x49xf32, #tpu.memory_space<smem>>
    %c1_81 = arith.constant 1 : index
    %c9_82 = arith.constant 9 : index
    %324 = memref.load %arg4[%c1_81, %c9_82] : memref<2x49xf32, #tpu.memory_space<smem>>
    %325 = vector.extract_strided_slice %322 {offsets = [0, 0], sizes = [2, 256], strides = [1, 1]} : vector<8x256xf32> to vector<2x256xf32>
    %326 = vector.broadcast %323 : f32 to vector<2x256xf32>
    %327 = arith.mulf %326, %325 : vector<2x256xf32>
    %328 = vector.extract_strided_slice %322 {offsets = [2, 0], sizes = [2, 256], strides = [1, 1]} : vector<8x256xf32> to vector<2x256xf32>
    %329 = vector.broadcast %324 : f32 to vector<2x256xf32>
    %330 = arith.mulf %329, %328 : vector<2x256xf32>
    %331 = arith.addf %327, %330 : vector<2x256xf32>
    %332 = arith.mulf %110, %166 : vector<1x256xf32>
    %333 = vector.broadcast %332 : vector<1x256xf32> to vector<2x256xf32>
    %334 = arith.mulf %333, %331 : vector<2x256xf32>
    %335 = arith.addf %321, %334 : vector<2x256xf32>
    %c32_i32_83 = arith.constant 32 : i32
    %336 = tpu.dynamic_rotate %93 by %c32_i32_83 dim 1 : vector<8x256xf32>, i32 -> vector<8x256xf32>
    %c0_84 = arith.constant 0 : index
    %c10 = arith.constant 10 : index
    %337 = memref.load %arg4[%c0_84, %c10] : memref<2x49xf32, #tpu.memory_space<smem>>
    %c1_85 = arith.constant 1 : index
    %c10_86 = arith.constant 10 : index
    %338 = memref.load %arg4[%c1_85, %c10_86] : memref<2x49xf32, #tpu.memory_space<smem>>
    %339 = vector.extract_strided_slice %336 {offsets = [0, 0], sizes = [2, 256], strides = [1, 1]} : vector<8x256xf32> to vector<2x256xf32>
    %340 = vector.broadcast %337 : f32 to vector<2x256xf32>
    %341 = arith.mulf %340, %339 : vector<2x256xf32>
    %342 = vector.extract_strided_slice %336 {offsets = [2, 0], sizes = [2, 256], strides = [1, 1]} : vector<8x256xf32> to vector<2x256xf32>
    %343 = vector.broadcast %338 : f32 to vector<2x256xf32>
    %344 = arith.mulf %343, %342 : vector<2x256xf32>
    %345 = arith.addf %341, %344 : vector<2x256xf32>
    %346 = arith.mulf %110, %173 : vector<1x256xf32>
    %347 = vector.broadcast %346 : vector<1x256xf32> to vector<2x256xf32>
    %348 = arith.mulf %347, %345 : vector<2x256xf32>
    %349 = arith.addf %335, %348 : vector<2x256xf32>
    %c31_i32 = arith.constant 31 : i32
    %350 = tpu.dynamic_rotate %93 by %c31_i32 dim 1 : vector<8x256xf32>, i32 -> vector<8x256xf32>
    %c0_87 = arith.constant 0 : index
    %c11 = arith.constant 11 : index
    %351 = memref.load %arg4[%c0_87, %c11] : memref<2x49xf32, #tpu.memory_space<smem>>
    %c1_88 = arith.constant 1 : index
    %c11_89 = arith.constant 11 : index
    %352 = memref.load %arg4[%c1_88, %c11_89] : memref<2x49xf32, #tpu.memory_space<smem>>
    %353 = vector.extract_strided_slice %350 {offsets = [0, 0], sizes = [2, 256], strides = [1, 1]} : vector<8x256xf32> to vector<2x256xf32>
    %354 = vector.broadcast %351 : f32 to vector<2x256xf32>
    %355 = arith.mulf %354, %353 : vector<2x256xf32>
    %356 = vector.extract_strided_slice %350 {offsets = [2, 0], sizes = [2, 256], strides = [1, 1]} : vector<8x256xf32> to vector<2x256xf32>
    %357 = vector.broadcast %352 : f32 to vector<2x256xf32>
    %358 = arith.mulf %357, %356 : vector<2x256xf32>
    %359 = arith.addf %355, %358 : vector<2x256xf32>
    %360 = arith.mulf %110, %180 : vector<1x256xf32>
    %361 = vector.broadcast %360 : vector<1x256xf32> to vector<2x256xf32>
    %362 = arith.mulf %361, %359 : vector<2x256xf32>
    %363 = arith.addf %349, %362 : vector<2x256xf32>
    %c30_i32 = arith.constant 30 : i32
    %364 = tpu.dynamic_rotate %93 by %c30_i32 dim 1 : vector<8x256xf32>, i32 -> vector<8x256xf32>
    %c0_90 = arith.constant 0 : index
    %c12 = arith.constant 12 : index
    %365 = memref.load %arg4[%c0_90, %c12] : memref<2x49xf32, #tpu.memory_space<smem>>
    %c1_91 = arith.constant 1 : index
    %c12_92 = arith.constant 12 : index
    %366 = memref.load %arg4[%c1_91, %c12_92] : memref<2x49xf32, #tpu.memory_space<smem>>
    %367 = vector.extract_strided_slice %364 {offsets = [0, 0], sizes = [2, 256], strides = [1, 1]} : vector<8x256xf32> to vector<2x256xf32>
    %368 = vector.broadcast %365 : f32 to vector<2x256xf32>
    %369 = arith.mulf %368, %367 : vector<2x256xf32>
    %370 = vector.extract_strided_slice %364 {offsets = [2, 0], sizes = [2, 256], strides = [1, 1]} : vector<8x256xf32> to vector<2x256xf32>
    %371 = vector.broadcast %366 : f32 to vector<2x256xf32>
    %372 = arith.mulf %371, %370 : vector<2x256xf32>
    %373 = arith.addf %369, %372 : vector<2x256xf32>
    %374 = arith.mulf %110, %187 : vector<1x256xf32>
    %375 = vector.broadcast %374 : vector<1x256xf32> to vector<2x256xf32>
    %376 = arith.mulf %375, %373 : vector<2x256xf32>
    %377 = arith.addf %363, %376 : vector<2x256xf32>
    %c29_i32 = arith.constant 29 : i32
    %378 = tpu.dynamic_rotate %93 by %c29_i32 dim 1 : vector<8x256xf32>, i32 -> vector<8x256xf32>
    %c0_93 = arith.constant 0 : index
    %c13 = arith.constant 13 : index
    %379 = memref.load %arg4[%c0_93, %c13] : memref<2x49xf32, #tpu.memory_space<smem>>
    %c1_94 = arith.constant 1 : index
    %c13_95 = arith.constant 13 : index
    %380 = memref.load %arg4[%c1_94, %c13_95] : memref<2x49xf32, #tpu.memory_space<smem>>
    %381 = vector.extract_strided_slice %378 {offsets = [0, 0], sizes = [2, 256], strides = [1, 1]} : vector<8x256xf32> to vector<2x256xf32>
    %382 = vector.broadcast %379 : f32 to vector<2x256xf32>
    %383 = arith.mulf %382, %381 : vector<2x256xf32>
    %384 = vector.extract_strided_slice %378 {offsets = [2, 0], sizes = [2, 256], strides = [1, 1]} : vector<8x256xf32> to vector<2x256xf32>
    %385 = vector.broadcast %380 : f32 to vector<2x256xf32>
    %386 = arith.mulf %385, %384 : vector<2x256xf32>
    %387 = arith.addf %383, %386 : vector<2x256xf32>
    %388 = arith.mulf %110, %194 : vector<1x256xf32>
    %389 = vector.broadcast %388 : vector<1x256xf32> to vector<2x256xf32>
    %390 = arith.mulf %389, %387 : vector<2x256xf32>
    %391 = arith.addf %377, %390 : vector<2x256xf32>
    %c19_i32_96 = arith.constant 19 : i32
    %392 = tpu.dynamic_rotate %93 by %c19_i32_96 dim 1 : vector<8x256xf32>, i32 -> vector<8x256xf32>
    %c0_97 = arith.constant 0 : index
    %c14 = arith.constant 14 : index
    %393 = memref.load %arg4[%c0_97, %c14] : memref<2x49xf32, #tpu.memory_space<smem>>
    %c1_98 = arith.constant 1 : index
    %c14_99 = arith.constant 14 : index
    %394 = memref.load %arg4[%c1_98, %c14_99] : memref<2x49xf32, #tpu.memory_space<smem>>
    %395 = vector.extract_strided_slice %392 {offsets = [0, 0], sizes = [2, 256], strides = [1, 1]} : vector<8x256xf32> to vector<2x256xf32>
    %396 = vector.broadcast %393 : f32 to vector<2x256xf32>
    %397 = arith.mulf %396, %395 : vector<2x256xf32>
    %398 = vector.extract_strided_slice %392 {offsets = [2, 0], sizes = [2, 256], strides = [1, 1]} : vector<8x256xf32> to vector<2x256xf32>
    %399 = vector.broadcast %394 : f32 to vector<2x256xf32>
    %400 = arith.mulf %399, %398 : vector<2x256xf32>
    %401 = arith.addf %397, %400 : vector<2x256xf32>
    %402 = arith.mulf %117, %152 : vector<1x256xf32>
    %403 = vector.broadcast %402 : vector<1x256xf32> to vector<2x256xf32>
    %404 = arith.mulf %403, %401 : vector<2x256xf32>
    %405 = arith.addf %391, %404 : vector<2x256xf32>
    %c18_i32_100 = arith.constant 18 : i32
    %406 = tpu.dynamic_rotate %93 by %c18_i32_100 dim 1 : vector<8x256xf32>, i32 -> vector<8x256xf32>
    %c0_101 = arith.constant 0 : index
    %c15 = arith.constant 15 : index
    %407 = memref.load %arg4[%c0_101, %c15] : memref<2x49xf32, #tpu.memory_space<smem>>
    %c1_102 = arith.constant 1 : index
    %c15_103 = arith.constant 15 : index
    %408 = memref.load %arg4[%c1_102, %c15_103] : memref<2x49xf32, #tpu.memory_space<smem>>
    %409 = vector.extract_strided_slice %406 {offsets = [0, 0], sizes = [2, 256], strides = [1, 1]} : vector<8x256xf32> to vector<2x256xf32>
    %410 = vector.broadcast %407 : f32 to vector<2x256xf32>
    %411 = arith.mulf %410, %409 : vector<2x256xf32>
    %412 = vector.extract_strided_slice %406 {offsets = [2, 0], sizes = [2, 256], strides = [1, 1]} : vector<8x256xf32> to vector<2x256xf32>
    %413 = vector.broadcast %408 : f32 to vector<2x256xf32>
    %414 = arith.mulf %413, %412 : vector<2x256xf32>
    %415 = arith.addf %411, %414 : vector<2x256xf32>
    %416 = arith.mulf %117, %159 : vector<1x256xf32>
    %417 = vector.broadcast %416 : vector<1x256xf32> to vector<2x256xf32>
    %418 = arith.mulf %417, %415 : vector<2x256xf32>
    %419 = arith.addf %405, %418 : vector<2x256xf32>
    %c17_i32_104 = arith.constant 17 : i32
    %420 = tpu.dynamic_rotate %93 by %c17_i32_104 dim 1 : vector<8x256xf32>, i32 -> vector<8x256xf32>
    %c0_105 = arith.constant 0 : index
    %c16 = arith.constant 16 : index
    %421 = memref.load %arg4[%c0_105, %c16] : memref<2x49xf32, #tpu.memory_space<smem>>
    %c1_106 = arith.constant 1 : index
    %c16_107 = arith.constant 16 : index
    %422 = memref.load %arg4[%c1_106, %c16_107] : memref<2x49xf32, #tpu.memory_space<smem>>
    %423 = vector.extract_strided_slice %420 {offsets = [0, 0], sizes = [2, 256], strides = [1, 1]} : vector<8x256xf32> to vector<2x256xf32>
    %424 = vector.broadcast %421 : f32 to vector<2x256xf32>
    %425 = arith.mulf %424, %423 : vector<2x256xf32>
    %426 = vector.extract_strided_slice %420 {offsets = [2, 0], sizes = [2, 256], strides = [1, 1]} : vector<8x256xf32> to vector<2x256xf32>
    %427 = vector.broadcast %422 : f32 to vector<2x256xf32>
    %428 = arith.mulf %427, %426 : vector<2x256xf32>
    %429 = arith.addf %425, %428 : vector<2x256xf32>
    %430 = arith.mulf %117, %166 : vector<1x256xf32>
    %431 = vector.broadcast %430 : vector<1x256xf32> to vector<2x256xf32>
    %432 = arith.mulf %431, %429 : vector<2x256xf32>
    %433 = arith.addf %419, %432 : vector<2x256xf32>
    %c16_i32_108 = arith.constant 16 : i32
    %434 = tpu.dynamic_rotate %93 by %c16_i32_108 dim 1 : vector<8x256xf32>, i32 -> vector<8x256xf32>
    %c0_109 = arith.constant 0 : index
    %c17 = arith.constant 17 : index
    %435 = memref.load %arg4[%c0_109, %c17] : memref<2x49xf32, #tpu.memory_space<smem>>
    %c1_110 = arith.constant 1 : index
    %c17_111 = arith.constant 17 : index
    %436 = memref.load %arg4[%c1_110, %c17_111] : memref<2x49xf32, #tpu.memory_space<smem>>
    %437 = vector.extract_strided_slice %434 {offsets = [0, 0], sizes = [2, 256], strides = [1, 1]} : vector<8x256xf32> to vector<2x256xf32>
    %438 = vector.broadcast %435 : f32 to vector<2x256xf32>
    %439 = arith.mulf %438, %437 : vector<2x256xf32>
    %440 = vector.extract_strided_slice %434 {offsets = [2, 0], sizes = [2, 256], strides = [1, 1]} : vector<8x256xf32> to vector<2x256xf32>
    %441 = vector.broadcast %436 : f32 to vector<2x256xf32>
    %442 = arith.mulf %441, %440 : vector<2x256xf32>
    %443 = arith.addf %439, %442 : vector<2x256xf32>
    %444 = arith.mulf %117, %173 : vector<1x256xf32>
    %445 = vector.broadcast %444 : vector<1x256xf32> to vector<2x256xf32>
    %446 = arith.mulf %445, %443 : vector<2x256xf32>
    %447 = arith.addf %433, %446 : vector<2x256xf32>
    %c15_i32_112 = arith.constant 15 : i32
    %448 = tpu.dynamic_rotate %93 by %c15_i32_112 dim 1 : vector<8x256xf32>, i32 -> vector<8x256xf32>
    %c0_113 = arith.constant 0 : index
    %c18 = arith.constant 18 : index
    %449 = memref.load %arg4[%c0_113, %c18] : memref<2x49xf32, #tpu.memory_space<smem>>
    %c1_114 = arith.constant 1 : index
    %c18_115 = arith.constant 18 : index
    %450 = memref.load %arg4[%c1_114, %c18_115] : memref<2x49xf32, #tpu.memory_space<smem>>
    %451 = vector.extract_strided_slice %448 {offsets = [0, 0], sizes = [2, 256], strides = [1, 1]} : vector<8x256xf32> to vector<2x256xf32>
    %452 = vector.broadcast %449 : f32 to vector<2x256xf32>
    %453 = arith.mulf %452, %451 : vector<2x256xf32>
    %454 = vector.extract_strided_slice %448 {offsets = [2, 0], sizes = [2, 256], strides = [1, 1]} : vector<8x256xf32> to vector<2x256xf32>
    %455 = vector.broadcast %450 : f32 to vector<2x256xf32>
    %456 = arith.mulf %455, %454 : vector<2x256xf32>
    %457 = arith.addf %453, %456 : vector<2x256xf32>
    %458 = arith.mulf %117, %180 : vector<1x256xf32>
    %459 = vector.broadcast %458 : vector<1x256xf32> to vector<2x256xf32>
    %460 = arith.mulf %459, %457 : vector<2x256xf32>
    %461 = arith.addf %447, %460 : vector<2x256xf32>
    %c14_i32_116 = arith.constant 14 : i32
    %462 = tpu.dynamic_rotate %93 by %c14_i32_116 dim 1 : vector<8x256xf32>, i32 -> vector<8x256xf32>
    %c0_117 = arith.constant 0 : index
    %c19 = arith.constant 19 : index
    %463 = memref.load %arg4[%c0_117, %c19] : memref<2x49xf32, #tpu.memory_space<smem>>
    %c1_118 = arith.constant 1 : index
    %c19_119 = arith.constant 19 : index
    %464 = memref.load %arg4[%c1_118, %c19_119] : memref<2x49xf32, #tpu.memory_space<smem>>
    %465 = vector.extract_strided_slice %462 {offsets = [0, 0], sizes = [2, 256], strides = [1, 1]} : vector<8x256xf32> to vector<2x256xf32>
    %466 = vector.broadcast %463 : f32 to vector<2x256xf32>
    %467 = arith.mulf %466, %465 : vector<2x256xf32>
    %468 = vector.extract_strided_slice %462 {offsets = [2, 0], sizes = [2, 256], strides = [1, 1]} : vector<8x256xf32> to vector<2x256xf32>
    %469 = vector.broadcast %464 : f32 to vector<2x256xf32>
    %470 = arith.mulf %469, %468 : vector<2x256xf32>
    %471 = arith.addf %467, %470 : vector<2x256xf32>
    %472 = arith.mulf %117, %187 : vector<1x256xf32>
    %473 = vector.broadcast %472 : vector<1x256xf32> to vector<2x256xf32>
    %474 = arith.mulf %473, %471 : vector<2x256xf32>
    %475 = arith.addf %461, %474 : vector<2x256xf32>
    %c13_i32_120 = arith.constant 13 : i32
    %476 = tpu.dynamic_rotate %93 by %c13_i32_120 dim 1 : vector<8x256xf32>, i32 -> vector<8x256xf32>
    %c0_121 = arith.constant 0 : index
    %c20 = arith.constant 20 : index
    %477 = memref.load %arg4[%c0_121, %c20] : memref<2x49xf32, #tpu.memory_space<smem>>
    %c1_122 = arith.constant 1 : index
    %c20_123 = arith.constant 20 : index
    %478 = memref.load %arg4[%c1_122, %c20_123] : memref<2x49xf32, #tpu.memory_space<smem>>
    %479 = vector.extract_strided_slice %476 {offsets = [0, 0], sizes = [2, 256], strides = [1, 1]} : vector<8x256xf32> to vector<2x256xf32>
    %480 = vector.broadcast %477 : f32 to vector<2x256xf32>
    %481 = arith.mulf %480, %479 : vector<2x256xf32>
    %482 = vector.extract_strided_slice %476 {offsets = [2, 0], sizes = [2, 256], strides = [1, 1]} : vector<8x256xf32> to vector<2x256xf32>
    %483 = vector.broadcast %478 : f32 to vector<2x256xf32>
    %484 = arith.mulf %483, %482 : vector<2x256xf32>
    %485 = arith.addf %481, %484 : vector<2x256xf32>
    %486 = arith.mulf %117, %194 : vector<1x256xf32>
    %487 = vector.broadcast %486 : vector<1x256xf32> to vector<2x256xf32>
    %488 = arith.mulf %487, %485 : vector<2x256xf32>
    %489 = arith.addf %475, %488 : vector<2x256xf32>
    %c3_i32_124 = arith.constant 3 : i32
    %490 = tpu.dynamic_rotate %93 by %c3_i32_124 dim 1 : vector<8x256xf32>, i32 -> vector<8x256xf32>
    %c0_125 = arith.constant 0 : index
    %c21 = arith.constant 21 : index
    %491 = memref.load %arg4[%c0_125, %c21] : memref<2x49xf32, #tpu.memory_space<smem>>
    %c1_126 = arith.constant 1 : index
    %c21_127 = arith.constant 21 : index
    %492 = memref.load %arg4[%c1_126, %c21_127] : memref<2x49xf32, #tpu.memory_space<smem>>
    %493 = vector.extract_strided_slice %490 {offsets = [0, 0], sizes = [2, 256], strides = [1, 1]} : vector<8x256xf32> to vector<2x256xf32>
    %494 = vector.broadcast %491 : f32 to vector<2x256xf32>
    %495 = arith.mulf %494, %493 : vector<2x256xf32>
    %496 = vector.extract_strided_slice %490 {offsets = [2, 0], sizes = [2, 256], strides = [1, 1]} : vector<8x256xf32> to vector<2x256xf32>
    %497 = vector.broadcast %492 : f32 to vector<2x256xf32>
    %498 = arith.mulf %497, %496 : vector<2x256xf32>
    %499 = arith.addf %495, %498 : vector<2x256xf32>
    %500 = arith.mulf %124, %152 : vector<1x256xf32>
    %501 = vector.broadcast %500 : vector<1x256xf32> to vector<2x256xf32>
    %502 = arith.mulf %501, %499 : vector<2x256xf32>
    %503 = arith.addf %489, %502 : vector<2x256xf32>
    %c2_i32_128 = arith.constant 2 : i32
    %504 = tpu.dynamic_rotate %93 by %c2_i32_128 dim 1 : vector<8x256xf32>, i32 -> vector<8x256xf32>
    %c0_129 = arith.constant 0 : index
    %c22 = arith.constant 22 : index
    %505 = memref.load %arg4[%c0_129, %c22] : memref<2x49xf32, #tpu.memory_space<smem>>
    %c1_130 = arith.constant 1 : index
    %c22_131 = arith.constant 22 : index
    %506 = memref.load %arg4[%c1_130, %c22_131] : memref<2x49xf32, #tpu.memory_space<smem>>
    %507 = vector.extract_strided_slice %504 {offsets = [0, 0], sizes = [2, 256], strides = [1, 1]} : vector<8x256xf32> to vector<2x256xf32>
    %508 = vector.broadcast %505 : f32 to vector<2x256xf32>
    %509 = arith.mulf %508, %507 : vector<2x256xf32>
    %510 = vector.extract_strided_slice %504 {offsets = [2, 0], sizes = [2, 256], strides = [1, 1]} : vector<8x256xf32> to vector<2x256xf32>
    %511 = vector.broadcast %506 : f32 to vector<2x256xf32>
    %512 = arith.mulf %511, %510 : vector<2x256xf32>
    %513 = arith.addf %509, %512 : vector<2x256xf32>
    %514 = arith.mulf %124, %159 : vector<1x256xf32>
    %515 = vector.broadcast %514 : vector<1x256xf32> to vector<2x256xf32>
    %516 = arith.mulf %515, %513 : vector<2x256xf32>
    %517 = arith.addf %503, %516 : vector<2x256xf32>
    %c1_i32_132 = arith.constant 1 : i32
    %518 = tpu.dynamic_rotate %93 by %c1_i32_132 dim 1 : vector<8x256xf32>, i32 -> vector<8x256xf32>
    %c0_133 = arith.constant 0 : index
    %c23 = arith.constant 23 : index
    %519 = memref.load %arg4[%c0_133, %c23] : memref<2x49xf32, #tpu.memory_space<smem>>
    %c1_134 = arith.constant 1 : index
    %c23_135 = arith.constant 23 : index
    %520 = memref.load %arg4[%c1_134, %c23_135] : memref<2x49xf32, #tpu.memory_space<smem>>
    %521 = vector.extract_strided_slice %518 {offsets = [0, 0], sizes = [2, 256], strides = [1, 1]} : vector<8x256xf32> to vector<2x256xf32>
    %522 = vector.broadcast %519 : f32 to vector<2x256xf32>
    %523 = arith.mulf %522, %521 : vector<2x256xf32>
    %524 = vector.extract_strided_slice %518 {offsets = [2, 0], sizes = [2, 256], strides = [1, 1]} : vector<8x256xf32> to vector<2x256xf32>
    %525 = vector.broadcast %520 : f32 to vector<2x256xf32>
    %526 = arith.mulf %525, %524 : vector<2x256xf32>
    %527 = arith.addf %523, %526 : vector<2x256xf32>
    %528 = arith.mulf %124, %166 : vector<1x256xf32>
    %529 = vector.broadcast %528 : vector<1x256xf32> to vector<2x256xf32>
    %530 = arith.mulf %529, %527 : vector<2x256xf32>
    %531 = arith.addf %517, %530 : vector<2x256xf32>
    %c0_136 = arith.constant 0 : index
    %c24 = arith.constant 24 : index
    %532 = memref.load %arg4[%c0_136, %c24] : memref<2x49xf32, #tpu.memory_space<smem>>
    %c1_137 = arith.constant 1 : index
    %c24_138 = arith.constant 24 : index
    %533 = memref.load %arg4[%c1_137, %c24_138] : memref<2x49xf32, #tpu.memory_space<smem>>
    %534 = vector.extract_strided_slice %93 {offsets = [0, 0], sizes = [2, 256], strides = [1, 1]} : vector<8x256xf32> to vector<2x256xf32>
    %535 = vector.broadcast %532 : f32 to vector<2x256xf32>
    %536 = arith.mulf %535, %534 : vector<2x256xf32>
    %537 = vector.extract_strided_slice %93 {offsets = [2, 0], sizes = [2, 256], strides = [1, 1]} : vector<8x256xf32> to vector<2x256xf32>
    %538 = vector.broadcast %533 : f32 to vector<2x256xf32>
    %539 = arith.mulf %538, %537 : vector<2x256xf32>
    %540 = arith.addf %536, %539 : vector<2x256xf32>
    %541 = arith.mulf %124, %173 : vector<1x256xf32>
    %542 = vector.broadcast %541 : vector<1x256xf32> to vector<2x256xf32>
    %543 = arith.mulf %542, %540 : vector<2x256xf32>
    %544 = arith.addf %531, %543 : vector<2x256xf32>
    %c255_i32 = arith.constant 255 : i32
    %545 = tpu.dynamic_rotate %93 by %c255_i32 dim 1 : vector<8x256xf32>, i32 -> vector<8x256xf32>
    %c0_139 = arith.constant 0 : index
    %c25 = arith.constant 25 : index
    %546 = memref.load %arg4[%c0_139, %c25] : memref<2x49xf32, #tpu.memory_space<smem>>
    %c1_140 = arith.constant 1 : index
    %c25_141 = arith.constant 25 : index
    %547 = memref.load %arg4[%c1_140, %c25_141] : memref<2x49xf32, #tpu.memory_space<smem>>
    %548 = vector.extract_strided_slice %545 {offsets = [0, 0], sizes = [2, 256], strides = [1, 1]} : vector<8x256xf32> to vector<2x256xf32>
    %549 = vector.broadcast %546 : f32 to vector<2x256xf32>
    %550 = arith.mulf %549, %548 : vector<2x256xf32>
    %551 = vector.extract_strided_slice %545 {offsets = [2, 0], sizes = [2, 256], strides = [1, 1]} : vector<8x256xf32> to vector<2x256xf32>
    %552 = vector.broadcast %547 : f32 to vector<2x256xf32>
    %553 = arith.mulf %552, %551 : vector<2x256xf32>
    %554 = arith.addf %550, %553 : vector<2x256xf32>
    %555 = arith.mulf %124, %180 : vector<1x256xf32>
    %556 = vector.broadcast %555 : vector<1x256xf32> to vector<2x256xf32>
    %557 = arith.mulf %556, %554 : vector<2x256xf32>
    %558 = arith.addf %544, %557 : vector<2x256xf32>
    %c254_i32 = arith.constant 254 : i32
    %559 = tpu.dynamic_rotate %93 by %c254_i32 dim 1 : vector<8x256xf32>, i32 -> vector<8x256xf32>
    %c0_142 = arith.constant 0 : index
    %c26 = arith.constant 26 : index
    %560 = memref.load %arg4[%c0_142, %c26] : memref<2x49xf32, #tpu.memory_space<smem>>
    %c1_143 = arith.constant 1 : index
    %c26_144 = arith.constant 26 : index
    %561 = memref.load %arg4[%c1_143, %c26_144] : memref<2x49xf32, #tpu.memory_space<smem>>
    %562 = vector.extract_strided_slice %559 {offsets = [0, 0], sizes = [2, 256], strides = [1, 1]} : vector<8x256xf32> to vector<2x256xf32>
    %563 = vector.broadcast %560 : f32 to vector<2x256xf32>
    %564 = arith.mulf %563, %562 : vector<2x256xf32>
    %565 = vector.extract_strided_slice %559 {offsets = [2, 0], sizes = [2, 256], strides = [1, 1]} : vector<8x256xf32> to vector<2x256xf32>
    %566 = vector.broadcast %561 : f32 to vector<2x256xf32>
    %567 = arith.mulf %566, %565 : vector<2x256xf32>
    %568 = arith.addf %564, %567 : vector<2x256xf32>
    %569 = arith.mulf %124, %187 : vector<1x256xf32>
    %570 = vector.broadcast %569 : vector<1x256xf32> to vector<2x256xf32>
    %571 = arith.mulf %570, %568 : vector<2x256xf32>
    %572 = arith.addf %558, %571 : vector<2x256xf32>
    %c253_i32 = arith.constant 253 : i32
    %573 = tpu.dynamic_rotate %93 by %c253_i32 dim 1 : vector<8x256xf32>, i32 -> vector<8x256xf32>
    %c0_145 = arith.constant 0 : index
    %c27 = arith.constant 27 : index
    %574 = memref.load %arg4[%c0_145, %c27] : memref<2x49xf32, #tpu.memory_space<smem>>
    %c1_146 = arith.constant 1 : index
    %c27_147 = arith.constant 27 : index
    %575 = memref.load %arg4[%c1_146, %c27_147] : memref<2x49xf32, #tpu.memory_space<smem>>
    %576 = vector.extract_strided_slice %573 {offsets = [0, 0], sizes = [2, 256], strides = [1, 1]} : vector<8x256xf32> to vector<2x256xf32>
    %577 = vector.broadcast %574 : f32 to vector<2x256xf32>
    %578 = arith.mulf %577, %576 : vector<2x256xf32>
    %579 = vector.extract_strided_slice %573 {offsets = [2, 0], sizes = [2, 256], strides = [1, 1]} : vector<8x256xf32> to vector<2x256xf32>
    %580 = vector.broadcast %575 : f32 to vector<2x256xf32>
    %581 = arith.mulf %580, %579 : vector<2x256xf32>
    %582 = arith.addf %578, %581 : vector<2x256xf32>
    %583 = arith.mulf %124, %194 : vector<1x256xf32>
    %584 = vector.broadcast %583 : vector<1x256xf32> to vector<2x256xf32>
    %585 = arith.mulf %584, %582 : vector<2x256xf32>
    %586 = arith.addf %572, %585 : vector<2x256xf32>
    %c243_i32 = arith.constant 243 : i32
    %587 = tpu.dynamic_rotate %93 by %c243_i32 dim 1 : vector<8x256xf32>, i32 -> vector<8x256xf32>
    %c0_148 = arith.constant 0 : index
    %c28 = arith.constant 28 : index
    %588 = memref.load %arg4[%c0_148, %c28] : memref<2x49xf32, #tpu.memory_space<smem>>
    %c1_149 = arith.constant 1 : index
    %c28_150 = arith.constant 28 : index
    %589 = memref.load %arg4[%c1_149, %c28_150] : memref<2x49xf32, #tpu.memory_space<smem>>
    %590 = vector.extract_strided_slice %587 {offsets = [0, 0], sizes = [2, 256], strides = [1, 1]} : vector<8x256xf32> to vector<2x256xf32>
    %591 = vector.broadcast %588 : f32 to vector<2x256xf32>
    %592 = arith.mulf %591, %590 : vector<2x256xf32>
    %593 = vector.extract_strided_slice %587 {offsets = [2, 0], sizes = [2, 256], strides = [1, 1]} : vector<8x256xf32> to vector<2x256xf32>
    %594 = vector.broadcast %589 : f32 to vector<2x256xf32>
    %595 = arith.mulf %594, %593 : vector<2x256xf32>
    %596 = arith.addf %592, %595 : vector<2x256xf32>
    %597 = arith.mulf %131, %152 : vector<1x256xf32>
    %598 = vector.broadcast %597 : vector<1x256xf32> to vector<2x256xf32>
    %599 = arith.mulf %598, %596 : vector<2x256xf32>
    %600 = arith.addf %586, %599 : vector<2x256xf32>
    %c242_i32 = arith.constant 242 : i32
    %601 = tpu.dynamic_rotate %93 by %c242_i32 dim 1 : vector<8x256xf32>, i32 -> vector<8x256xf32>
    %c0_151 = arith.constant 0 : index
    %c29 = arith.constant 29 : index
    %602 = memref.load %arg4[%c0_151, %c29] : memref<2x49xf32, #tpu.memory_space<smem>>
    %c1_152 = arith.constant 1 : index
    %c29_153 = arith.constant 29 : index
    %603 = memref.load %arg4[%c1_152, %c29_153] : memref<2x49xf32, #tpu.memory_space<smem>>
    %604 = vector.extract_strided_slice %601 {offsets = [0, 0], sizes = [2, 256], strides = [1, 1]} : vector<8x256xf32> to vector<2x256xf32>
    %605 = vector.broadcast %602 : f32 to vector<2x256xf32>
    %606 = arith.mulf %605, %604 : vector<2x256xf32>
    %607 = vector.extract_strided_slice %601 {offsets = [2, 0], sizes = [2, 256], strides = [1, 1]} : vector<8x256xf32> to vector<2x256xf32>
    %608 = vector.broadcast %603 : f32 to vector<2x256xf32>
    %609 = arith.mulf %608, %607 : vector<2x256xf32>
    %610 = arith.addf %606, %609 : vector<2x256xf32>
    %611 = arith.mulf %131, %159 : vector<1x256xf32>
    %612 = vector.broadcast %611 : vector<1x256xf32> to vector<2x256xf32>
    %613 = arith.mulf %612, %610 : vector<2x256xf32>
    %614 = arith.addf %600, %613 : vector<2x256xf32>
    %c241_i32 = arith.constant 241 : i32
    %615 = tpu.dynamic_rotate %93 by %c241_i32 dim 1 : vector<8x256xf32>, i32 -> vector<8x256xf32>
    %c0_154 = arith.constant 0 : index
    %c30 = arith.constant 30 : index
    %616 = memref.load %arg4[%c0_154, %c30] : memref<2x49xf32, #tpu.memory_space<smem>>
    %c1_155 = arith.constant 1 : index
    %c30_156 = arith.constant 30 : index
    %617 = memref.load %arg4[%c1_155, %c30_156] : memref<2x49xf32, #tpu.memory_space<smem>>
    %618 = vector.extract_strided_slice %615 {offsets = [0, 0], sizes = [2, 256], strides = [1, 1]} : vector<8x256xf32> to vector<2x256xf32>
    %619 = vector.broadcast %616 : f32 to vector<2x256xf32>
    %620 = arith.mulf %619, %618 : vector<2x256xf32>
    %621 = vector.extract_strided_slice %615 {offsets = [2, 0], sizes = [2, 256], strides = [1, 1]} : vector<8x256xf32> to vector<2x256xf32>
    %622 = vector.broadcast %617 : f32 to vector<2x256xf32>
    %623 = arith.mulf %622, %621 : vector<2x256xf32>
    %624 = arith.addf %620, %623 : vector<2x256xf32>
    %625 = arith.mulf %131, %166 : vector<1x256xf32>
    %626 = vector.broadcast %625 : vector<1x256xf32> to vector<2x256xf32>
    %627 = arith.mulf %626, %624 : vector<2x256xf32>
    %628 = arith.addf %614, %627 : vector<2x256xf32>
    %c240_i32_157 = arith.constant 240 : i32
    %629 = tpu.dynamic_rotate %93 by %c240_i32_157 dim 1 : vector<8x256xf32>, i32 -> vector<8x256xf32>
    %c0_158 = arith.constant 0 : index
    %c31 = arith.constant 31 : index
    %630 = memref.load %arg4[%c0_158, %c31] : memref<2x49xf32, #tpu.memory_space<smem>>
    %c1_159 = arith.constant 1 : index
    %c31_160 = arith.constant 31 : index
    %631 = memref.load %arg4[%c1_159, %c31_160] : memref<2x49xf32, #tpu.memory_space<smem>>
    %632 = vector.extract_strided_slice %629 {offsets = [0, 0], sizes = [2, 256], strides = [1, 1]} : vector<8x256xf32> to vector<2x256xf32>
    %633 = vector.broadcast %630 : f32 to vector<2x256xf32>
    %634 = arith.mulf %633, %632 : vector<2x256xf32>
    %635 = vector.extract_strided_slice %629 {offsets = [2, 0], sizes = [2, 256], strides = [1, 1]} : vector<8x256xf32> to vector<2x256xf32>
    %636 = vector.broadcast %631 : f32 to vector<2x256xf32>
    %637 = arith.mulf %636, %635 : vector<2x256xf32>
    %638 = arith.addf %634, %637 : vector<2x256xf32>
    %639 = arith.mulf %131, %173 : vector<1x256xf32>
    %640 = vector.broadcast %639 : vector<1x256xf32> to vector<2x256xf32>
    %641 = arith.mulf %640, %638 : vector<2x256xf32>
    %642 = arith.addf %628, %641 : vector<2x256xf32>
    %c239_i32 = arith.constant 239 : i32
    %643 = tpu.dynamic_rotate %93 by %c239_i32 dim 1 : vector<8x256xf32>, i32 -> vector<8x256xf32>
    %c0_161 = arith.constant 0 : index
    %c32 = arith.constant 32 : index
    %644 = memref.load %arg4[%c0_161, %c32] : memref<2x49xf32, #tpu.memory_space<smem>>
    %c1_162 = arith.constant 1 : index
    %c32_163 = arith.constant 32 : index
    %645 = memref.load %arg4[%c1_162, %c32_163] : memref<2x49xf32, #tpu.memory_space<smem>>
    %646 = vector.extract_strided_slice %643 {offsets = [0, 0], sizes = [2, 256], strides = [1, 1]} : vector<8x256xf32> to vector<2x256xf32>
    %647 = vector.broadcast %644 : f32 to vector<2x256xf32>
    %648 = arith.mulf %647, %646 : vector<2x256xf32>
    %649 = vector.extract_strided_slice %643 {offsets = [2, 0], sizes = [2, 256], strides = [1, 1]} : vector<8x256xf32> to vector<2x256xf32>
    %650 = vector.broadcast %645 : f32 to vector<2x256xf32>
    %651 = arith.mulf %650, %649 : vector<2x256xf32>
    %652 = arith.addf %648, %651 : vector<2x256xf32>
    %653 = arith.mulf %131, %180 : vector<1x256xf32>
    %654 = vector.broadcast %653 : vector<1x256xf32> to vector<2x256xf32>
    %655 = arith.mulf %654, %652 : vector<2x256xf32>
    %656 = arith.addf %642, %655 : vector<2x256xf32>
    %c238_i32 = arith.constant 238 : i32
    %657 = tpu.dynamic_rotate %93 by %c238_i32 dim 1 : vector<8x256xf32>, i32 -> vector<8x256xf32>
    %c0_164 = arith.constant 0 : index
    %c33 = arith.constant 33 : index
    %658 = memref.load %arg4[%c0_164, %c33] : memref<2x49xf32, #tpu.memory_space<smem>>
    %c1_165 = arith.constant 1 : index
    %c33_166 = arith.constant 33 : index
    %659 = memref.load %arg4[%c1_165, %c33_166] : memref<2x49xf32, #tpu.memory_space<smem>>
    %660 = vector.extract_strided_slice %657 {offsets = [0, 0], sizes = [2, 256], strides = [1, 1]} : vector<8x256xf32> to vector<2x256xf32>
    %661 = vector.broadcast %658 : f32 to vector<2x256xf32>
    %662 = arith.mulf %661, %660 : vector<2x256xf32>
    %663 = vector.extract_strided_slice %657 {offsets = [2, 0], sizes = [2, 256], strides = [1, 1]} : vector<8x256xf32> to vector<2x256xf32>
    %664 = vector.broadcast %659 : f32 to vector<2x256xf32>
    %665 = arith.mulf %664, %663 : vector<2x256xf32>
    %666 = arith.addf %662, %665 : vector<2x256xf32>
    %667 = arith.mulf %131, %187 : vector<1x256xf32>
    %668 = vector.broadcast %667 : vector<1x256xf32> to vector<2x256xf32>
    %669 = arith.mulf %668, %666 : vector<2x256xf32>
    %670 = arith.addf %656, %669 : vector<2x256xf32>
    %c237_i32 = arith.constant 237 : i32
    %671 = tpu.dynamic_rotate %93 by %c237_i32 dim 1 : vector<8x256xf32>, i32 -> vector<8x256xf32>
    %c0_167 = arith.constant 0 : index
    %c34 = arith.constant 34 : index
    %672 = memref.load %arg4[%c0_167, %c34] : memref<2x49xf32, #tpu.memory_space<smem>>
    %c1_168 = arith.constant 1 : index
    %c34_169 = arith.constant 34 : index
    %673 = memref.load %arg4[%c1_168, %c34_169] : memref<2x49xf32, #tpu.memory_space<smem>>
    %674 = vector.extract_strided_slice %671 {offsets = [0, 0], sizes = [2, 256], strides = [1, 1]} : vector<8x256xf32> to vector<2x256xf32>
    %675 = vector.broadcast %672 : f32 to vector<2x256xf32>
    %676 = arith.mulf %675, %674 : vector<2x256xf32>
    %677 = vector.extract_strided_slice %671 {offsets = [2, 0], sizes = [2, 256], strides = [1, 1]} : vector<8x256xf32> to vector<2x256xf32>
    %678 = vector.broadcast %673 : f32 to vector<2x256xf32>
    %679 = arith.mulf %678, %677 : vector<2x256xf32>
    %680 = arith.addf %676, %679 : vector<2x256xf32>
    %681 = arith.mulf %131, %194 : vector<1x256xf32>
    %682 = vector.broadcast %681 : vector<1x256xf32> to vector<2x256xf32>
    %683 = arith.mulf %682, %680 : vector<2x256xf32>
    %684 = arith.addf %670, %683 : vector<2x256xf32>
    %c227_i32 = arith.constant 227 : i32
    %685 = tpu.dynamic_rotate %93 by %c227_i32 dim 1 : vector<8x256xf32>, i32 -> vector<8x256xf32>
    %c0_170 = arith.constant 0 : index
    %c35 = arith.constant 35 : index
    %686 = memref.load %arg4[%c0_170, %c35] : memref<2x49xf32, #tpu.memory_space<smem>>
    %c1_171 = arith.constant 1 : index
    %c35_172 = arith.constant 35 : index
    %687 = memref.load %arg4[%c1_171, %c35_172] : memref<2x49xf32, #tpu.memory_space<smem>>
    %688 = vector.extract_strided_slice %685 {offsets = [0, 0], sizes = [2, 256], strides = [1, 1]} : vector<8x256xf32> to vector<2x256xf32>
    %689 = vector.broadcast %686 : f32 to vector<2x256xf32>
    %690 = arith.mulf %689, %688 : vector<2x256xf32>
    %691 = vector.extract_strided_slice %685 {offsets = [2, 0], sizes = [2, 256], strides = [1, 1]} : vector<8x256xf32> to vector<2x256xf32>
    %692 = vector.broadcast %687 : f32 to vector<2x256xf32>
    %693 = arith.mulf %692, %691 : vector<2x256xf32>
    %694 = arith.addf %690, %693 : vector<2x256xf32>
    %695 = arith.mulf %138, %152 : vector<1x256xf32>
    %696 = vector.broadcast %695 : vector<1x256xf32> to vector<2x256xf32>
    %697 = arith.mulf %696, %694 : vector<2x256xf32>
    %698 = arith.addf %684, %697 : vector<2x256xf32>
    %c226_i32 = arith.constant 226 : i32
    %699 = tpu.dynamic_rotate %93 by %c226_i32 dim 1 : vector<8x256xf32>, i32 -> vector<8x256xf32>
    %c0_173 = arith.constant 0 : index
    %c36 = arith.constant 36 : index
    %700 = memref.load %arg4[%c0_173, %c36] : memref<2x49xf32, #tpu.memory_space<smem>>
    %c1_174 = arith.constant 1 : index
    %c36_175 = arith.constant 36 : index
    %701 = memref.load %arg4[%c1_174, %c36_175] : memref<2x49xf32, #tpu.memory_space<smem>>
    %702 = vector.extract_strided_slice %699 {offsets = [0, 0], sizes = [2, 256], strides = [1, 1]} : vector<8x256xf32> to vector<2x256xf32>
    %703 = vector.broadcast %700 : f32 to vector<2x256xf32>
    %704 = arith.mulf %703, %702 : vector<2x256xf32>
    %705 = vector.extract_strided_slice %699 {offsets = [2, 0], sizes = [2, 256], strides = [1, 1]} : vector<8x256xf32> to vector<2x256xf32>
    %706 = vector.broadcast %701 : f32 to vector<2x256xf32>
    %707 = arith.mulf %706, %705 : vector<2x256xf32>
    %708 = arith.addf %704, %707 : vector<2x256xf32>
    %709 = arith.mulf %138, %159 : vector<1x256xf32>
    %710 = vector.broadcast %709 : vector<1x256xf32> to vector<2x256xf32>
    %711 = arith.mulf %710, %708 : vector<2x256xf32>
    %712 = arith.addf %698, %711 : vector<2x256xf32>
    %c225_i32 = arith.constant 225 : i32
    %713 = tpu.dynamic_rotate %93 by %c225_i32 dim 1 : vector<8x256xf32>, i32 -> vector<8x256xf32>
    %c0_176 = arith.constant 0 : index
    %c37 = arith.constant 37 : index
    %714 = memref.load %arg4[%c0_176, %c37] : memref<2x49xf32, #tpu.memory_space<smem>>
    %c1_177 = arith.constant 1 : index
    %c37_178 = arith.constant 37 : index
    %715 = memref.load %arg4[%c1_177, %c37_178] : memref<2x49xf32, #tpu.memory_space<smem>>
    %716 = vector.extract_strided_slice %713 {offsets = [0, 0], sizes = [2, 256], strides = [1, 1]} : vector<8x256xf32> to vector<2x256xf32>
    %717 = vector.broadcast %714 : f32 to vector<2x256xf32>
    %718 = arith.mulf %717, %716 : vector<2x256xf32>
    %719 = vector.extract_strided_slice %713 {offsets = [2, 0], sizes = [2, 256], strides = [1, 1]} : vector<8x256xf32> to vector<2x256xf32>
    %720 = vector.broadcast %715 : f32 to vector<2x256xf32>
    %721 = arith.mulf %720, %719 : vector<2x256xf32>
    %722 = arith.addf %718, %721 : vector<2x256xf32>
    %723 = arith.mulf %138, %166 : vector<1x256xf32>
    %724 = vector.broadcast %723 : vector<1x256xf32> to vector<2x256xf32>
    %725 = arith.mulf %724, %722 : vector<2x256xf32>
    %726 = arith.addf %712, %725 : vector<2x256xf32>
    %c224_i32_179 = arith.constant 224 : i32
    %727 = tpu.dynamic_rotate %93 by %c224_i32_179 dim 1 : vector<8x256xf32>, i32 -> vector<8x256xf32>
    %c0_180 = arith.constant 0 : index
    %c38 = arith.constant 38 : index
    %728 = memref.load %arg4[%c0_180, %c38] : memref<2x49xf32, #tpu.memory_space<smem>>
    %c1_181 = arith.constant 1 : index
    %c38_182 = arith.constant 38 : index
    %729 = memref.load %arg4[%c1_181, %c38_182] : memref<2x49xf32, #tpu.memory_space<smem>>
    %730 = vector.extract_strided_slice %727 {offsets = [0, 0], sizes = [2, 256], strides = [1, 1]} : vector<8x256xf32> to vector<2x256xf32>
    %731 = vector.broadcast %728 : f32 to vector<2x256xf32>
    %732 = arith.mulf %731, %730 : vector<2x256xf32>
    %733 = vector.extract_strided_slice %727 {offsets = [2, 0], sizes = [2, 256], strides = [1, 1]} : vector<8x256xf32> to vector<2x256xf32>
    %734 = vector.broadcast %729 : f32 to vector<2x256xf32>
    %735 = arith.mulf %734, %733 : vector<2x256xf32>
    %736 = arith.addf %732, %735 : vector<2x256xf32>
    %737 = arith.mulf %138, %173 : vector<1x256xf32>
    %738 = vector.broadcast %737 : vector<1x256xf32> to vector<2x256xf32>
    %739 = arith.mulf %738, %736 : vector<2x256xf32>
    %740 = arith.addf %726, %739 : vector<2x256xf32>
    %c223_i32 = arith.constant 223 : i32
    %741 = tpu.dynamic_rotate %93 by %c223_i32 dim 1 : vector<8x256xf32>, i32 -> vector<8x256xf32>
    %c0_183 = arith.constant 0 : index
    %c39 = arith.constant 39 : index
    %742 = memref.load %arg4[%c0_183, %c39] : memref<2x49xf32, #tpu.memory_space<smem>>
    %c1_184 = arith.constant 1 : index
    %c39_185 = arith.constant 39 : index
    %743 = memref.load %arg4[%c1_184, %c39_185] : memref<2x49xf32, #tpu.memory_space<smem>>
    %744 = vector.extract_strided_slice %741 {offsets = [0, 0], sizes = [2, 256], strides = [1, 1]} : vector<8x256xf32> to vector<2x256xf32>
    %745 = vector.broadcast %742 : f32 to vector<2x256xf32>
    %746 = arith.mulf %745, %744 : vector<2x256xf32>
    %747 = vector.extract_strided_slice %741 {offsets = [2, 0], sizes = [2, 256], strides = [1, 1]} : vector<8x256xf32> to vector<2x256xf32>
    %748 = vector.broadcast %743 : f32 to vector<2x256xf32>
    %749 = arith.mulf %748, %747 : vector<2x256xf32>
    %750 = arith.addf %746, %749 : vector<2x256xf32>
    %751 = arith.mulf %138, %180 : vector<1x256xf32>
    %752 = vector.broadcast %751 : vector<1x256xf32> to vector<2x256xf32>
    %753 = arith.mulf %752, %750 : vector<2x256xf32>
    %754 = arith.addf %740, %753 : vector<2x256xf32>
    %c222_i32 = arith.constant 222 : i32
    %755 = tpu.dynamic_rotate %93 by %c222_i32 dim 1 : vector<8x256xf32>, i32 -> vector<8x256xf32>
    %c0_186 = arith.constant 0 : index
    %c40 = arith.constant 40 : index
    %756 = memref.load %arg4[%c0_186, %c40] : memref<2x49xf32, #tpu.memory_space<smem>>
    %c1_187 = arith.constant 1 : index
    %c40_188 = arith.constant 40 : index
    %757 = memref.load %arg4[%c1_187, %c40_188] : memref<2x49xf32, #tpu.memory_space<smem>>
    %758 = vector.extract_strided_slice %755 {offsets = [0, 0], sizes = [2, 256], strides = [1, 1]} : vector<8x256xf32> to vector<2x256xf32>
    %759 = vector.broadcast %756 : f32 to vector<2x256xf32>
    %760 = arith.mulf %759, %758 : vector<2x256xf32>
    %761 = vector.extract_strided_slice %755 {offsets = [2, 0], sizes = [2, 256], strides = [1, 1]} : vector<8x256xf32> to vector<2x256xf32>
    %762 = vector.broadcast %757 : f32 to vector<2x256xf32>
    %763 = arith.mulf %762, %761 : vector<2x256xf32>
    %764 = arith.addf %760, %763 : vector<2x256xf32>
    %765 = arith.mulf %138, %187 : vector<1x256xf32>
    %766 = vector.broadcast %765 : vector<1x256xf32> to vector<2x256xf32>
    %767 = arith.mulf %766, %764 : vector<2x256xf32>
    %768 = arith.addf %754, %767 : vector<2x256xf32>
    %c221_i32 = arith.constant 221 : i32
    %769 = tpu.dynamic_rotate %93 by %c221_i32 dim 1 : vector<8x256xf32>, i32 -> vector<8x256xf32>
    %c0_189 = arith.constant 0 : index
    %c41 = arith.constant 41 : index
    %770 = memref.load %arg4[%c0_189, %c41] : memref<2x49xf32, #tpu.memory_space<smem>>
    %c1_190 = arith.constant 1 : index
    %c41_191 = arith.constant 41 : index
    %771 = memref.load %arg4[%c1_190, %c41_191] : memref<2x49xf32, #tpu.memory_space<smem>>
    %772 = vector.extract_strided_slice %769 {offsets = [0, 0], sizes = [2, 256], strides = [1, 1]} : vector<8x256xf32> to vector<2x256xf32>
    %773 = vector.broadcast %770 : f32 to vector<2x256xf32>
    %774 = arith.mulf %773, %772 : vector<2x256xf32>
    %775 = vector.extract_strided_slice %769 {offsets = [2, 0], sizes = [2, 256], strides = [1, 1]} : vector<8x256xf32> to vector<2x256xf32>
    %776 = vector.broadcast %771 : f32 to vector<2x256xf32>
    %777 = arith.mulf %776, %775 : vector<2x256xf32>
    %778 = arith.addf %774, %777 : vector<2x256xf32>
    %779 = arith.mulf %138, %194 : vector<1x256xf32>
    %780 = vector.broadcast %779 : vector<1x256xf32> to vector<2x256xf32>
    %781 = arith.mulf %780, %778 : vector<2x256xf32>
    %782 = arith.addf %768, %781 : vector<2x256xf32>
    %c211_i32 = arith.constant 211 : i32
    %783 = tpu.dynamic_rotate %93 by %c211_i32 dim 1 : vector<8x256xf32>, i32 -> vector<8x256xf32>
    %c0_192 = arith.constant 0 : index
    %c42 = arith.constant 42 : index
    %784 = memref.load %arg4[%c0_192, %c42] : memref<2x49xf32, #tpu.memory_space<smem>>
    %c1_193 = arith.constant 1 : index
    %c42_194 = arith.constant 42 : index
    %785 = memref.load %arg4[%c1_193, %c42_194] : memref<2x49xf32, #tpu.memory_space<smem>>
    %786 = vector.extract_strided_slice %783 {offsets = [0, 0], sizes = [2, 256], strides = [1, 1]} : vector<8x256xf32> to vector<2x256xf32>
    %787 = vector.broadcast %784 : f32 to vector<2x256xf32>
    %788 = arith.mulf %787, %786 : vector<2x256xf32>
    %789 = vector.extract_strided_slice %783 {offsets = [2, 0], sizes = [2, 256], strides = [1, 1]} : vector<8x256xf32> to vector<2x256xf32>
    %790 = vector.broadcast %785 : f32 to vector<2x256xf32>
    %791 = arith.mulf %790, %789 : vector<2x256xf32>
    %792 = arith.addf %788, %791 : vector<2x256xf32>
    %793 = arith.mulf %145, %152 : vector<1x256xf32>
    %794 = vector.broadcast %793 : vector<1x256xf32> to vector<2x256xf32>
    %795 = arith.mulf %794, %792 : vector<2x256xf32>
    %796 = arith.addf %782, %795 : vector<2x256xf32>
    %c210_i32 = arith.constant 210 : i32
    %797 = tpu.dynamic_rotate %93 by %c210_i32 dim 1 : vector<8x256xf32>, i32 -> vector<8x256xf32>
    %c0_195 = arith.constant 0 : index
    %c43 = arith.constant 43 : index
    %798 = memref.load %arg4[%c0_195, %c43] : memref<2x49xf32, #tpu.memory_space<smem>>
    %c1_196 = arith.constant 1 : index
    %c43_197 = arith.constant 43 : index
    %799 = memref.load %arg4[%c1_196, %c43_197] : memref<2x49xf32, #tpu.memory_space<smem>>
    %800 = vector.extract_strided_slice %797 {offsets = [0, 0], sizes = [2, 256], strides = [1, 1]} : vector<8x256xf32> to vector<2x256xf32>
    %801 = vector.broadcast %798 : f32 to vector<2x256xf32>
    %802 = arith.mulf %801, %800 : vector<2x256xf32>
    %803 = vector.extract_strided_slice %797 {offsets = [2, 0], sizes = [2, 256], strides = [1, 1]} : vector<8x256xf32> to vector<2x256xf32>
    %804 = vector.broadcast %799 : f32 to vector<2x256xf32>
    %805 = arith.mulf %804, %803 : vector<2x256xf32>
    %806 = arith.addf %802, %805 : vector<2x256xf32>
    %807 = arith.mulf %145, %159 : vector<1x256xf32>
    %808 = vector.broadcast %807 : vector<1x256xf32> to vector<2x256xf32>
    %809 = arith.mulf %808, %806 : vector<2x256xf32>
    %810 = arith.addf %796, %809 : vector<2x256xf32>
    %c209_i32 = arith.constant 209 : i32
    %811 = tpu.dynamic_rotate %93 by %c209_i32 dim 1 : vector<8x256xf32>, i32 -> vector<8x256xf32>
    %c0_198 = arith.constant 0 : index
    %c44 = arith.constant 44 : index
    %812 = memref.load %arg4[%c0_198, %c44] : memref<2x49xf32, #tpu.memory_space<smem>>
    %c1_199 = arith.constant 1 : index
    %c44_200 = arith.constant 44 : index
    %813 = memref.load %arg4[%c1_199, %c44_200] : memref<2x49xf32, #tpu.memory_space<smem>>
    %814 = vector.extract_strided_slice %811 {offsets = [0, 0], sizes = [2, 256], strides = [1, 1]} : vector<8x256xf32> to vector<2x256xf32>
    %815 = vector.broadcast %812 : f32 to vector<2x256xf32>
    %816 = arith.mulf %815, %814 : vector<2x256xf32>
    %817 = vector.extract_strided_slice %811 {offsets = [2, 0], sizes = [2, 256], strides = [1, 1]} : vector<8x256xf32> to vector<2x256xf32>
    %818 = vector.broadcast %813 : f32 to vector<2x256xf32>
    %819 = arith.mulf %818, %817 : vector<2x256xf32>
    %820 = arith.addf %816, %819 : vector<2x256xf32>
    %821 = arith.mulf %145, %166 : vector<1x256xf32>
    %822 = vector.broadcast %821 : vector<1x256xf32> to vector<2x256xf32>
    %823 = arith.mulf %822, %820 : vector<2x256xf32>
    %824 = arith.addf %810, %823 : vector<2x256xf32>
    %c208_i32_201 = arith.constant 208 : i32
    %825 = tpu.dynamic_rotate %93 by %c208_i32_201 dim 1 : vector<8x256xf32>, i32 -> vector<8x256xf32>
    %c0_202 = arith.constant 0 : index
    %c45 = arith.constant 45 : index
    %826 = memref.load %arg4[%c0_202, %c45] : memref<2x49xf32, #tpu.memory_space<smem>>
    %c1_203 = arith.constant 1 : index
    %c45_204 = arith.constant 45 : index
    %827 = memref.load %arg4[%c1_203, %c45_204] : memref<2x49xf32, #tpu.memory_space<smem>>
    %828 = vector.extract_strided_slice %825 {offsets = [0, 0], sizes = [2, 256], strides = [1, 1]} : vector<8x256xf32> to vector<2x256xf32>
    %829 = vector.broadcast %826 : f32 to vector<2x256xf32>
    %830 = arith.mulf %829, %828 : vector<2x256xf32>
    %831 = vector.extract_strided_slice %825 {offsets = [2, 0], sizes = [2, 256], strides = [1, 1]} : vector<8x256xf32> to vector<2x256xf32>
    %832 = vector.broadcast %827 : f32 to vector<2x256xf32>
    %833 = arith.mulf %832, %831 : vector<2x256xf32>
    %834 = arith.addf %830, %833 : vector<2x256xf32>
    %835 = arith.mulf %145, %173 : vector<1x256xf32>
    %836 = vector.broadcast %835 : vector<1x256xf32> to vector<2x256xf32>
    %837 = arith.mulf %836, %834 : vector<2x256xf32>
    %838 = arith.addf %824, %837 : vector<2x256xf32>
    %c207_i32 = arith.constant 207 : i32
    %839 = tpu.dynamic_rotate %93 by %c207_i32 dim 1 : vector<8x256xf32>, i32 -> vector<8x256xf32>
    %c0_205 = arith.constant 0 : index
    %c46 = arith.constant 46 : index
    %840 = memref.load %arg4[%c0_205, %c46] : memref<2x49xf32, #tpu.memory_space<smem>>
    %c1_206 = arith.constant 1 : index
    %c46_207 = arith.constant 46 : index
    %841 = memref.load %arg4[%c1_206, %c46_207] : memref<2x49xf32, #tpu.memory_space<smem>>
    %842 = vector.extract_strided_slice %839 {offsets = [0, 0], sizes = [2, 256], strides = [1, 1]} : vector<8x256xf32> to vector<2x256xf32>
    %843 = vector.broadcast %840 : f32 to vector<2x256xf32>
    %844 = arith.mulf %843, %842 : vector<2x256xf32>
    %845 = vector.extract_strided_slice %839 {offsets = [2, 0], sizes = [2, 256], strides = [1, 1]} : vector<8x256xf32> to vector<2x256xf32>
    %846 = vector.broadcast %841 : f32 to vector<2x256xf32>
    %847 = arith.mulf %846, %845 : vector<2x256xf32>
    %848 = arith.addf %844, %847 : vector<2x256xf32>
    %849 = arith.mulf %145, %180 : vector<1x256xf32>
    %850 = vector.broadcast %849 : vector<1x256xf32> to vector<2x256xf32>
    %851 = arith.mulf %850, %848 : vector<2x256xf32>
    %852 = arith.addf %838, %851 : vector<2x256xf32>
    %c206_i32 = arith.constant 206 : i32
    %853 = tpu.dynamic_rotate %93 by %c206_i32 dim 1 : vector<8x256xf32>, i32 -> vector<8x256xf32>
    %c0_208 = arith.constant 0 : index
    %c47 = arith.constant 47 : index
    %854 = memref.load %arg4[%c0_208, %c47] : memref<2x49xf32, #tpu.memory_space<smem>>
    %c1_209 = arith.constant 1 : index
    %c47_210 = arith.constant 47 : index
    %855 = memref.load %arg4[%c1_209, %c47_210] : memref<2x49xf32, #tpu.memory_space<smem>>
    %856 = vector.extract_strided_slice %853 {offsets = [0, 0], sizes = [2, 256], strides = [1, 1]} : vector<8x256xf32> to vector<2x256xf32>
    %857 = vector.broadcast %854 : f32 to vector<2x256xf32>
    %858 = arith.mulf %857, %856 : vector<2x256xf32>
    %859 = vector.extract_strided_slice %853 {offsets = [2, 0], sizes = [2, 256], strides = [1, 1]} : vector<8x256xf32> to vector<2x256xf32>
    %860 = vector.broadcast %855 : f32 to vector<2x256xf32>
    %861 = arith.mulf %860, %859 : vector<2x256xf32>
    %862 = arith.addf %858, %861 : vector<2x256xf32>
    %863 = arith.mulf %145, %187 : vector<1x256xf32>
    %864 = vector.broadcast %863 : vector<1x256xf32> to vector<2x256xf32>
    %865 = arith.mulf %864, %862 : vector<2x256xf32>
    %866 = arith.addf %852, %865 : vector<2x256xf32>
    %c205_i32 = arith.constant 205 : i32
    %867 = tpu.dynamic_rotate %93 by %c205_i32 dim 1 : vector<8x256xf32>, i32 -> vector<8x256xf32>
    %c0_211 = arith.constant 0 : index
    %c48 = arith.constant 48 : index
    %868 = memref.load %arg4[%c0_211, %c48] : memref<2x49xf32, #tpu.memory_space<smem>>
    %c1_212 = arith.constant 1 : index
    %c48_213 = arith.constant 48 : index
    %869 = memref.load %arg4[%c1_212, %c48_213] : memref<2x49xf32, #tpu.memory_space<smem>>
    %870 = vector.extract_strided_slice %867 {offsets = [0, 0], sizes = [2, 256], strides = [1, 1]} : vector<8x256xf32> to vector<2x256xf32>
    %871 = vector.broadcast %868 : f32 to vector<2x256xf32>
    %872 = arith.mulf %871, %870 : vector<2x256xf32>
    %873 = vector.extract_strided_slice %867 {offsets = [2, 0], sizes = [2, 256], strides = [1, 1]} : vector<8x256xf32> to vector<2x256xf32>
    %874 = vector.broadcast %869 : f32 to vector<2x256xf32>
    %875 = arith.mulf %874, %873 : vector<2x256xf32>
    %876 = arith.addf %872, %875 : vector<2x256xf32>
    %877 = arith.mulf %145, %194 : vector<1x256xf32>
    %878 = vector.broadcast %877 : vector<1x256xf32> to vector<2x256xf32>
    %879 = arith.mulf %878, %876 : vector<2x256xf32>
    %880 = arith.addf %866, %879 : vector<2x256xf32>
    %881 = arith.negf %880 : vector<2x256xf32>
    %882 = math.exp %881 : vector<2x256xf32>
    %cst_214 = arith.constant 1.000000e+00 : f32
    %883 = vector.broadcast %cst_214 : f32 to vector<2x256xf32>
    %884 = arith.addf %883, %882 : vector<2x256xf32>
    %885 = arith.divf %883, %884 : vector<2x256xf32>
    %886 = vector.extract_strided_slice %885 {offsets = [0, 0], sizes = [1, 256], strides = [1, 1]} : vector<2x256xf32> to vector<1x256xf32>
    %887 = vector.broadcast %37 : vector<32x1xf32> to vector<32x256xf32>
    %888 = vector.broadcast %886 : vector<1x256xf32> to vector<32x256xf32>
    %889 = arith.mulf %887, %888 : vector<32x256xf32>
    %c0_215 = arith.constant 0 : index
    %c0_216 = arith.constant 0 : index
    %c0_217 = arith.constant 0 : index
    %890 = vector.load %arg1[%c0_215, %c0_216, %c0_217] : memref<2x32x256xf32, #tpu.memory_space<vmem>>, vector<1x32x256xf32>
    %891 = vector.shape_cast %890 : vector<1x32x256xf32> to vector<32x256xf32>
    %892 = arith.mulf %889, %891 : vector<32x256xf32>
    %c0_218 = arith.constant 0 : index
    %c0_219 = arith.constant 0 : index
    %c0_220 = arith.constant 0 : index
    %893 = vector.load %arg5[%c0_218, %c0_219, %c0_220] : memref<2x32x256xf32, #tpu.memory_space<vmem>>, vector<1x32x256xf32>
    %894 = vector.shape_cast %893 : vector<1x32x256xf32> to vector<32x256xf32>
    %895 = vector.shape_cast %892 : vector<32x256xf32> to vector<1x32x256xf32>
    tpu.vector_store %arg5[%c0_218, %c0_219, %c0_220], %895 {strides = array<i32>} : memref<2x32x256xf32, #tpu.memory_space<vmem>>, vector<1x32x256xf32>,
    %896 = vector.extract_strided_slice %885 {offsets = [1, 0], sizes = [1, 256], strides = [1, 1]} : vector<2x256xf32> to vector<1x256xf32>
    %897 = vector.broadcast %83 : vector<32x1xf32> to vector<32x256xf32>
    %898 = vector.broadcast %896 : vector<1x256xf32> to vector<32x256xf32>
    %899 = arith.mulf %897, %898 : vector<32x256xf32>
    %c1_221 = arith.constant 1 : index
    %c0_222 = arith.constant 0 : index
    %c0_223 = arith.constant 0 : index
    %900 = vector.load %arg1[%c1_221, %c0_222, %c0_223] : memref<2x32x256xf32, #tpu.memory_space<vmem>>, vector<1x32x256xf32>
    %901 = vector.shape_cast %900 : vector<1x32x256xf32> to vector<32x256xf32>
    %902 = arith.mulf %899, %901 : vector<32x256xf32>
    %c1_224 = arith.constant 1 : index
    %c0_225 = arith.constant 0 : index
    %c0_226 = arith.constant 0 : index
    %903 = vector.load %arg5[%c1_224, %c0_225, %c0_226] : memref<2x32x256xf32, #tpu.memory_space<vmem>>, vector<1x32x256xf32>
    %904 = vector.shape_cast %903 : vector<1x32x256xf32> to vector<32x256xf32>
    %905 = vector.shape_cast %902 : vector<32x256xf32> to vector<1x32x256xf32>
    tpu.vector_store %arg5[%c1_224, %c0_225, %c0_226], %905 {strides = array<i32>} : memref<2x32x256xf32, #tpu.memory_space<vmem>>, vector<1x32x256xf32>,
    return
  }
  func.func @transform_0(%arg0: i32) -> (i32, i32, i32) {
    %c0_i32 = arith.constant 0 : i32
    %c0_i32_0 = arith.constant 0 : i32
    %c0_i32_1 = arith.constant 0 : i32
    %c0_i32_2 = arith.constant 0 : i32
    return %c0_i32, %c0_i32_0, %c0_i32_1 : i32, i32, i32
  }
  func.func @transform_1(%arg0: i32) -> (i32, i32) {
    %c0_i32 = arith.constant 0 : i32
    %c0_i32_0 = arith.constant 0 : i32
    %c0_i32_1 = arith.constant 0 : i32
    return %c0_i32, %c0_i32_0 : i32, i32
  }
  func.func @transform_2(%arg0: i32) -> (i32, i32) {
    %c0_i32 = arith.constant 0 : i32
    %c0_i32_0 = arith.constant 0 : i32
    %c0_i32_1 = arith.constant 0 : i32
    return %c0_i32, %c0_i32_0 : i32, i32
  }
  func.func @transform_3(%arg0: i32) -> (i32, i32) {
    %c0_i32 = arith.constant 0 : i32
    %c0_i32_0 = arith.constant 0 : i32
    %c0_i32_1 = arith.constant 0 : i32
    return %c0_i32, %c0_i32_0 : i32, i32
  }
  func.func @transform_4(%arg0: i32) -> (i32, i32, i32) {
    %c0_i32 = arith.constant 0 : i32
    %c0_i32_0 = arith.constant 0 : i32
    %c0_i32_1 = arith.constant 0 : i32
    %c0_i32_2 = arith.constant 0 : i32
    return %c0_i32, %c0_i32_0, %c0_i32_1 : i32, i32, i32
  }
}

</mosaic_0001>

<llo_original>
// kernel: cbam_pallas.1
$region0: #{cbam_pallas.1}
  #allocation0 [shape = 'u32[]', space=smem, size = 0x4, offset = 0x4, fixed_abs, tag = 'smem constant byte address 0x4 - core index']
  #allocation1 [shape = 'u32[144,128]{1,0:T(1,128)}', space=vmem, size = 0x12000, scoped, tag = 'internal scratch']
  %s0 = inlined_call_operand.vmem [shape: f32[2,32,256], index: 0, kind: input, shape index: {}]
  %s1 = inlined_call_operand.vmem [shape: f32[32,2], index: 1, kind: input, shape index: {}]
  %s2 = inlined_call_operand.vmem [shape: f32[32,2], index: 2, kind: input, shape index: {}]
  %s3 = inlined_call_operand.vmem [shape: f32[2,49], index: 3, kind: input, shape index: {}]
  %s4 = inlined_call_operand.vmem [shape: f32[2,32,256], index: 4, kind: output, shape index: {}]
  %s5 = sld [smem:[#allocation0]]
  $region30: #{cbam_pallas.1} parent=0
    _
  %s7 = ssub.s32 1, %s5
  %s8 = scalar_select 0, %s7, %s5
  $region1: #{cbam_pallas.1} parent=0
    #allocation2 [shape = 'u8[1024]{0}', space=smem, size = 0x400, scoped, tag = 'input window, operand 3, single buffered']
    #allocation3 [shape = 's32[1]{0}', space=sflag, size = 0x4, scoped, tag = 'scoped memory for cbam_pallas.1']
    %9 = vsyncpa [#allocation3], 0
    // Predicated region
    $region2: #{cbam_pallas.1} parent=1 // pred_check
      _
    $region3: #{cbam_pallas.1} parent=1 // pred_check_branch
      %11 = sbr.rel (0) target = $region5
    $region4: #{cbam_pallas.1} parent=1 // pred_region
      _
    $region5: #{cbam_pallas.1} parent=1 // pred_fallthru
      _
    // Predicated region
    $region6: #{cbam_pallas.1} parent=1 // pred_check
      _
    $region7: #{cbam_pallas.1} parent=1 // pred_check_branch
      %13 = sbr.rel (0) target = $region9
    $region8: #{cbam_pallas.1} parent=1 // pred_region
      _
    $region9: #{cbam_pallas.1} parent=1 // pred_fallthru
      _
    // Predicated region
    $region10: #{cbam_pallas.1} parent=1 // pred_check
      _
    $region11: #{cbam_pallas.1} parent=1 // pred_check_branch
      %15 = sbr.rel (0) target = $region13
    $region12: #{cbam_pallas.1} parent=1 // pred_region
      _
    $region13: #{cbam_pallas.1} parent=1 // pred_fallthru
      _
    // Predicated region
    $region14: #{cbam_pallas.1} parent=1 // pred_check
      _
    $region15: #{cbam_pallas.1} parent=1 // pred_check_branch
      %17 = sbr.rel (0) target = $region17
    $region16: #{cbam_pallas.1} parent=1 // pred_region
      %s19 = ssub.s32 32, 32
      %20 = vsyncadd [#allocation3], %s19
      %s22 = sshll.u32 %s3, 4
      %s23 = int_to_ptr.vmem [resolvable:$true] %s22
      %25 = dma.vmem_to_smem %s23, 32, [#allocation2], [#allocation3]
    $region17: #{cbam_pallas.1} parent=1 // pred_fallthru
      _
    // Predicated region
    $region18: #{cbam_pallas.1} parent=1 // pred_check
      _
    $region19: #{cbam_pallas.1} parent=1 // pred_check_branch
      %27 = sbr.rel (0) target = $region21
    $region20: #{cbam_pallas.1} parent=1 // pred_region
      %28 = dma.done [#allocation3], 32
    $region21: #{cbam_pallas.1} parent=1 // pred_fallthru
      _
    %29 = sfence
    %v30 = vld [vmem:[%s0] sm:$0xff]
    %v31 = vld [vmem:[%s0 + $0x8] sm:$0xff]
    %v32 = vld [vmem:[%s0 + $0x10] sm:$0xff]
    %v33 = vld [vmem:[%s0 + $0x18] sm:$0xff]
    %v34 = vld [vmem:[%s0 + $0x20] sm:$0xff]
    %v35 = vld [vmem:[%s0 + $0x28] sm:$0xff]
    %v36 = vld [vmem:[%s0 + $0x30] sm:$0xff]
    %v37 = vld [vmem:[%s0 + $0x38] sm:$0xff]
    %v38 = vmax.f32 %v30, %v31
    %39 = vmax.xlane.f32.xlu0 %v38
    %v40 = vpop.xlane.xlu0 %39
    %v41 = vmax.f32 %v32, %v33
    %42 = vmax.xlane.f32.xlu0 %v41
    %v43 = vpop.xlane.xlu0 %42
    %v44 = vmax.f32 %v34, %v35
    %45 = vmax.xlane.f32.xlu0 %v44
    %v46 = vpop.xlane.xlu0 %45
    %v47 = vmax.f32 %v36, %v37
    %48 = vmax.xlane.f32.xlu0 %v47
    %v49 = vpop.xlane.xlu0 %48
    %v50 = vadd.f32 %v30, %v31
    %51 = vadd.xlane.f32.xlu0 %v50
    %v52 = vpop.xlane.xlu0 %51
    %v53 = vadd.f32 %v32, %v33
    %54 = vadd.xlane.f32.xlu0 %v53
    %v55 = vpop.xlane.xlu0 %54
    %v56 = vadd.f32 %v34, %v35
    %57 = vadd.xlane.f32.xlu0 %v56
    %v58 = vpop.xlane.xlu0 %57
    %v59 = vadd.f32 %v36, %v37
    %60 = vadd.xlane.f32.xlu0 %v59
    %v61 = vpop.xlane.xlu0 %60
    %v62 = vmul.f32 %v52, 0.00390625
    %v63 = vmul.f32 %v55, 0.00390625
    %v64 = vmul.f32 %v58, 0.00390625
    %v65 = vmul.f32 %v61, 0.00390625
    %v66 = vld [vmem:[%s1] sm:$0xff]
    %v67 = vld [vmem:[%s1 + $0x8] sm:$0xff]
    %v68 = vld [vmem:[%s1 + $0x10] sm:$0xff]
    %v69 = vld [vmem:[%s1 + $0x18] sm:$0xff]
    %v70 = vmul.f32 %v66, %v40
    %v71 = vmul.f32 %v67, %v43
    %v72 = vmul.f32 %v68, %v46
    %v73 = vmul.f32 %v69, %v49
    %vm74 = vcmask 15360
    %v75 = vsel %vm74, %v70, 0.0
    %v76 = vsel %vm74, %v71, 0.0
    %v77 = vadd.f32 %v75, %v76
    %v78 = vsel %vm74, %v72, 0.0
    %v79 = vadd.f32 %v77, %v78
    %v80 = vsel %vm74, %v73, 0.0
    %v81 = vadd.f32 %v79, %v80
    %v82 = vrot.slane %v81, 4
    %v83 = vadd.f32 %v81, %v82
    %v84 = vrot.slane %v83, 2
    %v85 = vadd.f32 %v83, %v84
    %v86 = vrot.slane %v85, 1
    %v87 = vadd.f32 %v85, %v86
    %v88 = vmax.f32 %v87, 0.0
    %v89 = vld [vmem:[%s2] sm:$0xff]
    %v90 = vld [vmem:[%s2 + $0x8] sm:$0xff]
    %v91 = vld [vmem:[%s2 + $0x10] sm:$0xff]
    %v92 = vld [vmem:[%s2 + $0x18] sm:$0xff]
    %v93 = vmul.f32 %v89, %v88
    %v94 = vmul.f32 %v90, %v88
    %v95 = vmul.f32 %v91, %v88
    %v96 = vmul.f32 %v92, %v88
    %v97 = vsel %vm74, %v93, 0.0
    %98 = vadd.xlane.f32.xlu0 %v97
    %v99 = vpop.xlane.xlu0 %98
    %v100 = vsel %vm74, %v94, 0.0
    %101 = vadd.xlane.f32.xlu0 %v100
    %v102 = vpop.xlane.xlu0 %101
    %v103 = vsel %vm74, %v95, 0.0
    %104 = vadd.xlane.f32.xlu0 %v103
    %v105 = vpop.xlane.xlu0 %104
    %v106 = vsel %vm74, %v96, 0.0
    %107 = vadd.xlane.f32.xlu0 %v106
    %v108 = vpop.xlane.xlu0 %107
    %v109 = vmul.f32 %v66, %v62
    %v110 = vmul.f32 %v67, %v63
    %v111 = vmul.f32 %v68, %v64
    %v112 = vmul.f32 %v69, %v65
    %v113 = vsel %vm74, %v109, 0.0
    %v114 = vsel %vm74, %v110, 0.0
    %v115 = vadd.f32 %v113, %v114
    %v116 = vsel %vm74, %v111, 0.0
    %v117 = vadd.f32 %v115, %v116
    %v118 = vsel %vm74, %v112, 0.0
    %v119 = vadd.f32 %v117, %v118
    %v120 = vrot.slane %v119, 4
    %v121 = vadd.f32 %v119, %v120
    %v122 = vrot.slane %v121, 2
    %v123 = vadd.f32 %v121, %v122
    %v124 = vrot.slane %v123, 1
    %v125 = vadd.f32 %v123, %v124
    %v126 = vmax.f32 %v125, 0.0
    %v127 = vmul.f32 %v89, %v126
    %v128 = vmul.f32 %v90, %v126
    %v129 = vmul.f32 %v91, %v126
    %v130 = vmul.f32 %v92, %v126
    %v131 = vsel %vm74, %v127, 0.0
    %132 = vadd.xlane.f32.xlu0 %v131
    %v133 = vpop.xlane.xlu0 %132
    %v134 = vsel %vm74, %v128, 0.0
    %135 = vadd.xlane.f32.xlu0 %v134
    %v136 = vpop.xlane.xlu0 %135
    %v137 = vsel %vm74, %v129, 0.0
    %138 = vadd.xlane.f32.xlu0 %v137
    %v139 = vpop.xlane.xlu0 %138
    %v140 = vsel %vm74, %v130, 0.0
    %141 = vadd.xlane.f32.xlu0 %v140
    %v142 = vpop.xlane.xlu0 %141
    %v143 = vadd.f32 %v99, %v133
    %v144 = vadd.f32 %v102, %v136
    %v145 = vadd.f32 %v105, %v139
    %v146 = vadd.f32 %v108, %v142
    %v147 = vxor.u32 %v143, 2147483648
    %v148 = vxor.u32 %v144, 2147483648
    %v149 = vxor.u32 %v145, 2147483648
    %v150 = vxor.u32 %v146, 2147483648
    %v151 = vmul.f32 %v147, 1.442695
    %v152 = vpow.pop %v151
    %v153 = vmul.f32 %v148, 1.442695
    %v154 = vpow.pop %v153
    %v155 = vmul.f32 %v149, 1.442695
    %v156 = vpow.pop %v155
    %v157 = vmul.f32 %v150, 1.442695
    %v158 = vpow.pop %v157
    %v159 = vadd.f32 %v152, 1.0
    %v160 = vadd.f32 %v154, 1.0
    %v161 = vadd.f32 %v156, 1.0
    %v162 = vadd.f32 %v158, 1.0
    %v163 = vrcp.pop %v159
    %v164 = vmul.f32 1.0, %v163
    %v165 = vrcp.pop %v160
    %v166 = vmul.f32 1.0, %v165
    %v167 = vrcp.pop %v161
    %v168 = vmul.f32 1.0, %v167
    %v169 = vrcp.pop %v162
    %v170 = vmul.f32 1.0, %v169
    %v171 = vmul.f32 %v164, %v30
    %v172 = vmul.f32 %v164, %v31
    %v173 = vmul.f32 %v166, %v32
    %v174 = vmul.f32 %v166, %v33
    %v175 = vmul.f32 %v168, %v34
    %v176 = vmul.f32 %v168, %v35
    %v177 = vmul.f32 %v170, %v36
    %v178 = vmul.f32 %v170, %v37
    %v179 = vmax.f32 %v171, %v175
    %v180 = vmax.f32 %v173, %v177
    %v181 = vmax.f32 %v179, %v180
    %v182 = vrot.slane %v181, 4
    %v183 = vmax.f32 %v181, %v182
    %v184 = vrot.slane %v183, 2
    %v185 = vmax.f32 %v183, %v184
    %v186 = vrot.slane %v185, 1
    %v187 = vmax.f32 %v185, %v186
    %v188 = vmax.f32 %v172, %v176
    %v189 = vmax.f32 %v174, %v178
    %v190 = vmax.f32 %v188, %v189
    %v191 = vrot.slane %v190, 4
    %v192 = vmax.f32 %v190, %v191
    %v193 = vrot.slane %v192, 2
    %v194 = vmax.f32 %v192, %v193
    %v195 = vrot.slane %v194, 1
    %v196 = vmax.f32 %v194, %v195
    %v197 = vadd.f32 %v171, %v173
    %v198 = vadd.f32 %v197, %v175
    %v199 = vadd.f32 %v198, %v177
    %v200 = vrot.slane %v199, 4
    %v201 = vadd.f32 %v199, %v200
    %v202 = vrot.slane %v201, 2
    %v203 = vadd.f32 %v201, %v202
    %v204 = vrot.slane %v203, 1
    %v205 = vadd.f32 %v203, %v204
    %v206 = vadd.f32 %v172, %v174
    %v207 = vadd.f32 %v206, %v176
    %v208 = vadd.f32 %v207, %v178
    %v209 = vrot.slane %v208, 4
    %v210 = vadd.f32 %v208, %v209
    %v211 = vrot.slane %v210, 2
    %v212 = vadd.f32 %v210, %v211
    %v213 = vrot.slane %v212, 1
    %v214 = vadd.f32 %v212, %v213
    %v215 = vmul.f32 %v205, 0.03125
    %v216 = vmul.f32 %v214, 0.03125
    %s217 = scalar_lea.vmem %s0, 64
    %v218 = vld [vmem:[%s217] sm:$0xff]
    %v219 = vld [vmem:[%s217 + $0x8] sm:$0xff]
    %v220 = vld [vmem:[%s217 + $0x10] sm:$0xff]
    %v221 = vld [vmem:[%s217 + $0x18] sm:$0xff]
    %v222 = vld [vmem:[%s217 + $0x20] sm:$0xff]
    %v223 = vld [vmem:[%s217 + $0x28] sm:$0xff]
    %v224 = vld [vmem:[%s217 + $0x30] sm:$0xff]
    %v225 = vld [vmem:[%s217 + $0x38] sm:$0xff]
    %v226 = vmax.f32 %v218, %v219
    %227 = vmax.xlane.f32.xlu0 %v226
    %v228 = vpop.xlane.xlu0 %227
    %v229 = vmax.f32 %v220, %v221
    %230 = vmax.xlane.f32.xlu0 %v229
    %v231 = vpop.xlane.xlu0 %230
    %v232 = vmax.f32 %v222, %v223
    %233 = vmax.xlane.f32.xlu0 %v232
    %v234 = vpop.xlane.xlu0 %233
    %v235 = vmax.f32 %v224, %v225
    %236 = vmax.xlane.f32.xlu0 %v235
    %v237 = vpop.xlane.xlu0 %236
    %v238 = vadd.f32 %v218, %v219
    %239 = vadd.xlane.f32.xlu0 %v238
    %v240 = vpop.xlane.xlu0 %239
    %v241 = vadd.f32 %v220, %v221
    %242 = vadd.xlane.f32.xlu0 %v241
    %v243 = vpop.xlane.xlu0 %242
    %v244 = vadd.f32 %v222, %v223
    %245 = vadd.xlane.f32.xlu0 %v244
    %v246 = vpop.xlane.xlu0 %245
    %v247 = vadd.f32 %v224, %v225
    %248 = vadd.xlane.f32.xlu0 %v247
    %v249 = vpop.xlane.xlu0 %248
    %v250 = vmul.f32 %v240, 0.00390625
    %v251 = vmul.f32 %v243, 0.00390625
    %v252 = vmul.f32 %v246, 0.00390625
    %v253 = vmul.f32 %v249, 0.00390625
    %v254 = vmul.f32 %v66, %v228
    %v255 = vmul.f32 %v67, %v231
    %v256 = vmul.f32 %v68, %v234
    %v257 = vmul.f32 %v69, %v237
    %v258 = vsel %vm74, %v254, 0.0
    %v259 = vsel %vm74, %v255, 0.0
    %v260 = vadd.f32 %v258, %v259
    %v261 = vsel %vm74, %v256, 0.0
    %v262 = vadd.f32 %v260, %v261
    %v263 = vsel %vm74, %v257, 0.0
    %v264 = vadd.f32 %v262, %v263
    %v265 = vrot.slane %v264, 4
    %v266 = vadd.f32 %v264, %v265
    %v267 = vrot.slane %v266, 2
    %v268 = vadd.f32 %v266, %v267
    %v269 = vrot.slane %v268, 1
    %v270 = vadd.f32 %v268, %v269
    %v271 = vmax.f32 %v270, 0.0
    %v272 = vmul.f32 %v89, %v271
    %v273 = vmul.f32 %v90, %v271
    %v274 = vmul.f32 %v91, %v271
    %v275 = vmul.f32 %v92, %v271
    %v276 = vsel %vm74, %v272, 0.0
    %277 = vadd.xlane.f32.xlu0 %v276
    %v278 = vpop.xlane.xlu0 %277
    %v279 = vsel %vm74, %v273, 0.0
    %280 = vadd.xlane.f32.xlu0 %v279
    %v281 = vpop.xlane.xlu0 %280
    %v282 = vsel %vm74, %v274, 0.0
    %283 = vadd.xlane.f32.xlu0 %v282
    %v284 = vpop.xlane.xlu0 %283
    %v285 = vsel %vm74, %v275, 0.0
    %286 = vadd.xlane.f32.xlu0 %v285
    %v287 = vpop.xlane.xlu0 %286
    %v288 = vmul.f32 %v66, %v250
    %v289 = vmul.f32 %v67, %v251
    %v290 = vmul.f32 %v68, %v252
    %v291 = vmul.f32 %v69, %v253
    %v292 = vsel %vm74, %v288, 0.0
    %v293 = vsel %vm74, %v289, 0.0
    %v294 = vadd.f32 %v292, %v293
    %v295 = vsel %vm74, %v290, 0.0
    %v296 = vadd.f32 %v294, %v295
    %v297 = vsel %vm74, %v291, 0.0
    %v298 = vadd.f32 %v296, %v297
    %v299 = vrot.slane %v298, 4
    %v300 = vadd.f32 %v298, %v299
    %v301 = vrot.slane %v300, 2
    %v302 = vadd.f32 %v300, %v301
    %v303 = vrot.slane %v302, 1
    %v304 = vadd.f32 %v302, %v303
    %v305 = vmax.f32 %v304, 0.0
    %v306 = vmul.f32 %v89, %v305
    %v307 = vmul.f32 %v90, %v305
    %v308 = vmul.f32 %v91, %v305
    %v309 = vmul.f32 %v92, %v305
    %v310 = vsel %vm74, %v306, 0.0
    %311 = vadd.xlane.f32.xlu0 %v310
    %v312 = vpop.xlane.xlu0 %311
    %v313 = vsel %vm74, %v307, 0.0
    %314 = vadd.xlane.f32.xlu0 %v313
    %v315 = vpop.xlane.xlu0 %314
    %v316 = vsel %vm74, %v308, 0.0
    %317 = vadd.xlane.f32.xlu0 %v316
    %v318 = vpop.xlane.xlu0 %317
    %v319 = vsel %vm74, %v309, 0.0
    %320 = vadd.xlane.f32.xlu0 %v319
    %v321 = vpop.xlane.xlu0 %320
    %v322 = vadd.f32 %v278, %v312
    %v323 = vadd.f32 %v281, %v315
    %v324 = vadd.f32 %v284, %v318
    %v325 = vadd.f32 %v287, %v321
    %v326 = vxor.u32 %v322, 2147483648
    %v327 = vxor.u32 %v323, 2147483648
    %v328 = vxor.u32 %v324, 2147483648
    %v329 = vxor.u32 %v325, 2147483648
    %v330 = vmul.f32 %v326, 1.442695
    %v331 = vpow.pop %v330
    %v332 = vmul.f32 %v327, 1.442695
    %v333 = vpow.pop %v332
    %v334 = vmul.f32 %v328, 1.442695
    %v335 = vpow.pop %v334
    %v336 = vmul.f32 %v329, 1.442695
    %v337 = vpow.pop %v336
    %v338 = vadd.f32 %v331, 1.0
    %v339 = vadd.f32 %v333, 1.0
    %v340 = vadd.f32 %v335, 1.0
    %v341 = vadd.f32 %v337, 1.0
    %v342 = vrcp.pop %v338
    %v343 = vmul.f32 1.0, %v342
    %v344 = vrcp.pop %v339
    %v345 = vmul.f32 1.0, %v344
    %v346 = vrcp.pop %v340
    %v347 = vmul.f32 1.0, %v346
    %v348 = vrcp.pop %v341
    %v349 = vmul.f32 1.0, %v348
    %v350 = vmul.f32 %v343, %v218
    %v351 = vmul.f32 %v343, %v219
    %v352 = vmul.f32 %v345, %v220
    %v353 = vmul.f32 %v345, %v221
    %v354 = vmul.f32 %v347, %v222
    %v355 = vmul.f32 %v347, %v223
    %v356 = vmul.f32 %v349, %v224
    %v357 = vmul.f32 %v349, %v225
    %v358 = vmax.f32 %v350, %v354
    %v359 = vmax.f32 %v352, %v356
    %v360 = vmax.f32 %v358, %v359
    %v361 = vrot.slane %v360, 4
    %v362 = vmax.f32 %v360, %v361
    %v363 = vrot.slane %v362, 2
    %v364 = vmax.f32 %v362, %v363
    %v365 = vrot.slane %v364, 1
    %v366 = vmax.f32 %v364, %v365
    %v367 = vmax.f32 %v351, %v355
    %v368 = vmax.f32 %v353, %v357
    %v369 = vmax.f32 %v367, %v368
    %v370 = vrot.slane %v369, 4
    %v371 = vmax.f32 %v369, %v370
    %v372 = vrot.slane %v371, 2
    %v373 = vmax.f32 %v371, %v372
    %v374 = vrot.slane %v373, 1
    %v375 = vmax.f32 %v373, %v374
    %v376 = vadd.f32 %v350, %v352
    %v377 = vadd.f32 %v376, %v354
    %v378 = vadd.f32 %v377, %v356
    %v379 = vrot.slane %v378, 4
    %v380 = vadd.f32 %v378, %v379
    %v381 = vrot.slane %v380, 2
    %v382 = vadd.f32 %v380, %v381
    %v383 = vrot.slane %v382, 1
    %v384 = vadd.f32 %v382, %v383
    %v385 = vadd.f32 %v351, %v353
    %v386 = vadd.f32 %v385, %v355
    %v387 = vadd.f32 %v386, %v357
    %v388 = vrot.slane %v387, 4
    %v389 = vadd.f32 %v387, %v388
    %v390 = vrot.slane %v389, 2
    %v391 = vadd.f32 %v389, %v390
    %v392 = vrot.slane %v391, 1
    %v393 = vadd.f32 %v391, %v392
    %v394 = vmul.f32 %v384, 0.03125
    %v395 = vmul.f32 %v393, 0.03125
    %vm396 = vcmask 1040384
    %v397 = vsel %vm396, %v187, %v366
    %v398 = vsel %vm396, %v196, %v375
    %vm399 = vcmask 1041408
    %v400 = vsel %vm399, %v397, %v215
    %v401 = vsel %vm399, %v398, %v216
    %vm402 = vcmask 1042432
    %v403 = vsel %vm402, %v400, %v394
    %v404 = vsel %vm402, %v401, %v395
    %vm405 = vcmask 1043456
    %v406 = vsel %vm405, %v403, 0.0
    %v407 = vsel %vm405, %v404, 0.0
    %v408 = vlaneseq
    %v409 = vand.u32 %v408, 127
    %v410 = vadd.s32 %v409, 128
    %v411 = vand.u32 %v409, 15
    %v412 = vand.u32 %v410, 15
    %vm413 = vcmp.ge.s32.totalorder %v409, 48
    %vm414 = vcmp.ge.s32.totalorder %v410, 48
    %vm415 = vcmp.lt.s32.totalorder %v409, 304
    %vm416 = vcmp.lt.s32.totalorder %v410, 304
    %vm417 = vmand %vm413, %vm415
    %vm418 = vmand %vm414, %vm416
    %v419 = vsel %vm417, 1, 0
    %v420 = vsel %vm418, 1, 0
    %v421 = vcvt.s32.f32 %v419
    %v422 = vcvt.s32.f32 %v420
    %vm423 = vcmp.ge.s32.totalorder %v409, 32
    %vm424 = vcmp.ge.s32.totalorder %v410, 32
    %vm425 = vcmp.lt.s32.totalorder %v409, 288
    %vm426 = vcmp.lt.s32.totalorder %v410, 288
    %vm427 = vmand %vm423, %vm425
    %vm428 = vmand %vm424, %vm426
    %v429 = vsel %vm427, 1, 0
    %v430 = vsel %vm428, 1, 0
    %v431 = vcvt.s32.f32 %v429
    %v432 = vcvt.s32.f32 %v430
    %vm433 = vcmp.ge.s32.totalorder %v409, 16
    %vm434 = vcmp.ge.s32.totalorder %v410, 16
    %vm435 = vcmp.lt.s32.totalorder %v409, 272
    %vm436 = vcmp.lt.s32.totalorder %v410, 272
    %vm437 = vmand %vm433, %vm435
    %vm438 = vmand %vm434, %vm436
    %v439 = vsel %vm437, 1, 0
    %v440 = vsel %vm438, 1, 0
    %v441 = vcvt.s32.f32 %v439
    %v442 = vcvt.s32.f32 %v440
    %vm443 = vcmp.ge.s32.totalorder %v409, 0
    %vm444 = vcmp.ge.s32.totalorder %v410, 0
    %vm445 = vcmp.lt.s32.totalorder %v409, 256
    %vm446 = vcmp.lt.s32.totalorder %v410, 256
    %vm447 = vmand %vm443, %vm445
    %vm448 = vmand %vm444, %vm446
    %v449 = vsel %vm447, 1, 0
    %v450 = vsel %vm448, 1, 0
    %v451 = vcvt.s32.f32 %v449
    %v452 = vcvt.s32.f32 %v450
    %vm453 = vcmp.ge.s32.totalorder %v409, 4294967280
    %vm454 = vcmp.ge.s32.totalorder %v410, 4294967280
    %vm455 = vcmp.lt.s32.totalorder %v409, 240
    %vm456 = vcmp.lt.s32.totalorder %v410, 240
    %vm457 = vmand %vm453, %vm455
    %vm458 = vmand %vm454, %vm456
    %v459 = vsel %vm457, 1, 0
    %v460 = vsel %vm458, 1, 0
    %v461 = vcvt.s32.f32 %v459
    %v462 = vcvt.s32.f32 %v460
    %vm463 = vcmp.ge.s32.totalorder %v409, 4294967264
    %vm464 = vcmp.ge.s32.totalorder %v410, 4294967264
    %vm465 = vcmp.lt.s32.totalorder %v409, 224
    %vm466 = vcmp.lt.s32.totalorder %v410, 224
    %vm467 = vmand %vm463, %vm465
    %vm468 = vmand %vm464, %vm466
    %v469 = vsel %vm467, 1, 0
    %v470 = vsel %vm468, 1, 0
    %v471 = vcvt.s32.f32 %v469
    %v472 = vcvt.s32.f32 %v470
    %vm473 = vcmp.ge.s32.totalorder %v409, 4294967248
    %vm474 = vcmp.ge.s32.totalorder %v410, 4294967248
    %vm475 = vcmp.lt.s32.totalorder %v409, 208
    %vm476 = vcmp.lt.s32.totalorder %v410, 208
    %vm477 = vmand %vm473, %vm475
    %vm478 = vmand %vm474, %vm476
    %v479 = vsel %vm477, 1, 0
    %v480 = vsel %vm478, 1, 0
    %v481 = vcvt.s32.f32 %v479
    %v482 = vcvt.s32.f32 %v480
    %vm483 = vcmp.ge.s32.totalorder %v411, 3
    %vm484 = vcmp.ge.s32.totalorder %v412, 3
    %vm485 = vcmp.lt.s32.totalorder %v411, 19
    %vm486 = vcmp.lt.s32.totalorder %v412, 19
    %vm487 = vmand %vm483, %vm485
    %vm488 = vmand %vm484, %vm486
    %v489 = vsel %vm487, 1, 0
    %v490 = vsel %vm488, 1, 0
    %v491 = vcvt.s32.f32 %v489
    %v492 = vcvt.s32.f32 %v490
    %vm493 = vcmp.ge.s32.totalorder %v411, 2
    %vm494 = vcmp.ge.s32.totalorder %v412, 2
    %vm495 = vcmp.lt.s32.totalorder %v411, 18
    %vm496 = vcmp.lt.s32.totalorder %v412, 18
    %vm497 = vmand %vm493, %vm495
    %vm498 = vmand %vm494, %vm496
    %v499 = vsel %vm497, 1, 0
    %v500 = vsel %vm498, 1, 0
    %v501 = vcvt.s32.f32 %v499
    %v502 = vcvt.s32.f32 %v500
    %vm503 = vcmp.ge.s32.totalorder %v411, 1
    %vm504 = vcmp.ge.s32.totalorder %v412, 1
    %vm505 = vcmp.lt.s32.totalorder %v411, 17
    %vm506 = vcmp.lt.s32.totalorder %v412, 17
    %vm507 = vmand %vm503, %vm505
    %vm508 = vmand %vm504, %vm506
    %v509 = vsel %vm507, 1, 0
    %v510 = vsel %vm508, 1, 0
    %v511 = vcvt.s32.f32 %v509
    %v512 = vcvt.s32.f32 %v510
    %vm513 = vcmp.ge.s32.totalorder %v411, 0
    %vm514 = vcmp.ge.s32.totalorder %v412, 0
    %vm515 = vcmp.lt.s32.totalorder %v411, 16
    %vm516 = vcmp.lt.s32.totalorder %v412, 16
    %vm517 = vmand %vm513, %vm515
    %vm518 = vmand %vm514, %vm516
    %v519 = vsel %vm517, 1, 0
    %v520 = vsel %vm518, 1, 0
    %v521 = vcvt.s32.f32 %v519
    %v522 = vcvt.s32.f32 %v520
    %vm523 = vcmp.ge.s32.totalorder %v411, 4294967295
    %vm524 = vcmp.ge.s32.totalorder %v412, 4294967295
    %vm525 = vcmp.lt.s32.totalorder %v411, 15
    %vm526 = vcmp.lt.s32.totalorder %v412, 15
    %vm527 = vmand %vm523, %vm525
    %vm528 = vmand %vm524, %vm526
    %v529 = vsel %vm527, 1, 0
    %v530 = vsel %vm528, 1, 0
    %v531 = vcvt.s32.f32 %v529
    %v532 = vcvt.s32.f32 %v530
    %vm533 = vcmp.ge.s32.totalorder %v411, 4294967294
    %vm534 = vcmp.ge.s32.totalorder %v412, 4294967294
    %vm535 = vcmp.lt.s32.totalorder %v411, 14
    %vm536 = vcmp.lt.s32.totalorder %v412, 14
    %vm537 = vmand %vm533, %vm535
    %vm538 = vmand %vm534, %vm536
    %v539 = vsel %vm537, 1, 0
    %v540 = vsel %vm538, 1, 0
    %v541 = vcvt.s32.f32 %v539
    %v542 = vcvt.s32.f32 %v540
    %vm543 = vcmp.ge.s32.totalorder %v411, 4294967293
    %vm544 = vcmp.ge.s32.totalorder %v412, 4294967293
    %vm545 = vcmp.lt.s32.totalorder %v411, 13
    %vm546 = vcmp.lt.s32.totalorder %v412, 13
    %vm547 = vmand %vm543, %vm545
    %vm548 = vmand %vm544, %vm546
    %v549 = vsel %vm547, 1, 0
    %v550 = vsel %vm548, 1, 0
    %v551 = vcvt.s32.f32 %v549
    %v552 = vcvt.s32.f32 %v550
    %553 = vrot.lane.b32.xlu0 %v406, 51
    %v554 = vpop.permute.xlu0 %553
    %555 = vrot.lane.b32.xlu0 %v407, 51
    %v556 = vpop.permute.xlu0 %555
    %vm557 = vcmp.lt.s32.totalorder %v409, 51
    %v558 = vsel %vm557, %v554, %v556
    %v559 = vsel %vm557, %v556, %v554
    %s560 = sld [smem:[#allocation2]]
    %s561 = sld [smem:[#allocation2 + $0x80]]
    %v562 = vstv %s560
    %v563 = vmul.f32 %v562, %v559
    %v564 = vmul.f32 %v562, %v558
    %v565 = vstv %s561
    %v566 = vmul.f32 %v565, %v559
    %v567 = vmul.f32 %v565, %v558
    %v570 = vrot.slane %v566, 2
    %v571 = vrot.slane %v567, 2
    %v574 = vadd.f32 %v563, %v570
    %v575 = vadd.f32 %v564, %v571
    %v576 = vmul.f32 %v421, %v491
    %v577 = vmul.f32 %v422, %v492
    %v578 = vmul.f32 %v576, %v574
    %v579 = vmul.f32 %v577, %v575
    %v580 = vadd.f32 %v578, 0.0
    %v581 = vadd.f32 %v579, 0.0
    %582 = vrot.lane.b32.xlu0 %v406, 50
    %v583 = vpop.permute.xlu0 %582
    %584 = vrot.lane.b32.xlu0 %v407, 50
    %v585 = vpop.permute.xlu0 %584
    %vm586 = vcmp.lt.s32.totalorder %v409, 50
    %v587 = vsel %vm586, %v583, %v585
    %v588 = vsel %vm586, %v585, %v583
    %s589 = sld [smem:[#allocation2 + $0x1]]
    %s590 = sld [smem:[#allocation2 + $0x81]]
    %v591 = vstv %s589
    %v592 = vmul.f32 %v591, %v588
    %v593 = vmul.f32 %v591, %v587
    %v594 = vstv %s590
    %v595 = vmul.f32 %v594, %v588
    %v596 = vmul.f32 %v594, %v587
    %v599 = vrot.slane %v595, 2
    %v600 = vrot.slane %v596, 2
    %v603 = vadd.f32 %v592, %v599
    %v604 = vadd.f32 %v593, %v600
    %v605 = vmul.f32 %v421, %v501
    %v606 = vmul.f32 %v422, %v502
    %v607 = vmul.f32 %v605, %v603
    %v608 = vmul.f32 %v606, %v604
    %v609 = vadd.f32 %v580, %v607
    %v610 = vadd.f32 %v581, %v608
    %611 = vrot.lane.b32.xlu0 %v406, 49
    %v612 = vpop.permute.xlu0 %611
    %613 = vrot.lane.b32.xlu0 %v407, 49
    %v614 = vpop.permute.xlu0 %613
    %vm615 = vcmp.lt.s32.totalorder %v409, 49
    %v616 = vsel %vm615, %v612, %v614
    %v617 = vsel %vm615, %v614, %v612
    %s618 = sld [smem:[#allocation2 + $0x2]]
    %s619 = sld [smem:[#allocation2 + $0x82]]
    %v620 = vstv %s618
    %v621 = vmul.f32 %v620, %v617
    %v622 = vmul.f32 %v620, %v616
    %v623 = vstv %s619
    %v624 = vmul.f32 %v623, %v617
    %v625 = vmul.f32 %v623, %v616
    %v628 = vrot.slane %v624, 2
    %v629 = vrot.slane %v625, 2
    %v632 = vadd.f32 %v621, %v628
    %v633 = vadd.f32 %v622, %v629
    %v634 = vmul.f32 %v421, %v511
    %v635 = vmul.f32 %v422, %v512
    %v636 = vmul.f32 %v634, %v632
    %v637 = vmul.f32 %v635, %v633
    %v638 = vadd.f32 %v609, %v636
    %v639 = vadd.f32 %v610, %v637
    %640 = vrot.lane.b32.xlu0 %v406, 48
    %v641 = vpop.permute.xlu0 %640
    %642 = vrot.lane.b32.xlu0 %v407, 48
    %v643 = vpop.permute.xlu0 %642
    %vm644 = vcmp.lt.s32.totalorder %v409, 48
    %v645 = vsel %vm644, %v641, %v643
    %v646 = vsel %vm644, %v643, %v641
    %s647 = sld [smem:[#allocation2 + $0x3]]
    %s648 = sld [smem:[#allocation2 + $0x83]]
    %v649 = vstv %s647
    %v650 = vmul.f32 %v649, %v646
    %v651 = vmul.f32 %v649, %v645
    %v652 = vstv %s648
    %v653 = vmul.f32 %v652, %v646
    %v654 = vmul.f32 %v652, %v645
    %v657 = vrot.slane %v653, 2
    %v658 = vrot.slane %v654, 2
    %v661 = vadd.f32 %v650, %v657
    %v662 = vadd.f32 %v651, %v658
    %v663 = vmul.f32 %v421, %v521
    %v664 = vmul.f32 %v422, %v522
    %v665 = vmul.f32 %v663, %v661
    %v666 = vmul.f32 %v664, %v662
    %v667 = vadd.f32 %v638, %v665
    %v668 = vadd.f32 %v639, %v666
    %669 = vrot.lane.b32.xlu0 %v406, 47
    %v670 = vpop.permute.xlu0 %669
    %671 = vrot.lane.b32.xlu0 %v407, 47
    %v672 = vpop.permute.xlu0 %671
    %vm673 = vcmp.lt.s32.totalorder %v409, 47
    %v674 = vsel %vm673, %v670, %v672
    %v675 = vsel %vm673, %v672, %v670
    %s676 = sld [smem:[#allocation2 + $0x4]]
    %s677 = sld [smem:[#allocation2 + $0x84]]
    %v678 = vstv %s676
    %v679 = vmul.f32 %v678, %v675
    %v680 = vmul.f32 %v678, %v674
    %v681 = vstv %s677
    %v682 = vmul.f32 %v681, %v675
    %v683 = vmul.f32 %v681, %v674
    %v686 = vrot.slane %v682, 2
    %v687 = vrot.slane %v683, 2
    %v690 = vadd.f32 %v679, %v686
    %v691 = vadd.f32 %v680, %v687
    %v692 = vmul.f32 %v421, %v531
    %v693 = vmul.f32 %v422, %v532
    %v694 = vmul.f32 %v692, %v690
    %v695 = vmul.f32 %v693, %v691
    %v696 = vadd.f32 %v667, %v694
    %v697 = vadd.f32 %v668, %v695
    %698 = vrot.lane.b32.xlu0 %v406, 46
    %v699 = vpop.permute.xlu0 %698
    %700 = vrot.lane.b32.xlu0 %v407, 46
    %v701 = vpop.permute.xlu0 %700
    %vm702 = vcmp.lt.s32.totalorder %v409, 46
    %v703 = vsel %vm702, %v699, %v701
    %v704 = vsel %vm702, %v701, %v699
    %s705 = sld [smem:[#allocation2 + $0x5]]
    %s706 = sld [smem:[#allocation2 + $0x85]]
    %v707 = vstv %s705
    %v708 = vmul.f32 %v707, %v704
    %v709 = vmul.f32 %v707, %v703
    %v710 = vstv %s706
    %v711 = vmul.f32 %v710, %v704
    %v712 = vmul.f32 %v710, %v703
    %v715 = vrot.slane %v711, 2
    %v716 = vrot.slane %v712, 2
    %v719 = vadd.f32 %v708, %v715
    %v720 = vadd.f32 %v709, %v716
    %v721 = vmul.f32 %v421, %v541
    %v722 = vmul.f32 %v422, %v542
    %v723 = vmul.f32 %v721, %v719
    %v724 = vmul.f32 %v722, %v720
    %v725 = vadd.f32 %v696, %v723
    %v726 = vadd.f32 %v697, %v724
    %727 = vrot.lane.b32.xlu0 %v406, 45
    %v728 = vpop.permute.xlu0 %727
    %729 = vrot.lane.b32.xlu0 %v407, 45
    %v730 = vpop.permute.xlu0 %729
    %vm731 = vcmp.lt.s32.totalorder %v409, 45
    %v732 = vsel %vm731, %v728, %v730
    %v733 = vsel %vm731, %v730, %v728
    %s734 = sld [smem:[#allocation2 + $0x6]]
    %s735 = sld [smem:[#allocation2 + $0x86]]
    %v736 = vstv %s734
    %v737 = vmul.f32 %v736, %v733
    %v738 = vmul.f32 %v736, %v732
    %v739 = vstv %s735
    %v740 = vmul.f32 %v739, %v733
    %v741 = vmul.f32 %v739, %v732
    %v744 = vrot.slane %v740, 2
    %v745 = vrot.slane %v741, 2
    %v748 = vadd.f32 %v737, %v744
    %v749 = vadd.f32 %v738, %v745
    %v750 = vmul.f32 %v421, %v551
    %v751 = vmul.f32 %v422, %v552
    %v752 = vmul.f32 %v750, %v748
    %v753 = vmul.f32 %v751, %v749
    %v754 = vadd.f32 %v725, %v752
    %v755 = vadd.f32 %v726, %v753
    %756 = vrot.lane.b32.xlu0 %v406, 35
    %v757 = vpop.permute.xlu0 %756
    %758 = vrot.lane.b32.xlu0 %v407, 35
    %v759 = vpop.permute.xlu0 %758
    %vm760 = vcmp.lt.s32.totalorder %v409, 35
    %v761 = vsel %vm760, %v757, %v759
    %v762 = vsel %vm760, %v759, %v757
    %s763 = sld [smem:[#allocation2 + $0x7]]
    %s764 = sld [smem:[#allocation2 + $0x87]]
    %v765 = vstv %s763
    %v766 = vmul.f32 %v765, %v762
    %v767 = vmul.f32 %v765, %v761
    %v768 = vstv %s764
    %v769 = vmul.f32 %v768, %v762
    %v770 = vmul.f32 %v768, %v761
    %v773 = vrot.slane %v769, 2
    %v774 = vrot.slane %v770, 2
    %v777 = vadd.f32 %v766, %v773
    %v778 = vadd.f32 %v767, %v774
    %v779 = vmul.f32 %v431, %v491
    %v780 = vmul.f32 %v432, %v492
    %v781 = vmul.f32 %v779, %v777
    %v782 = vmul.f32 %v780, %v778
    %v783 = vadd.f32 %v754, %v781
    %v784 = vadd.f32 %v755, %v782
    %785 = vrot.lane.b32.xlu0 %v406, 34
    %v786 = vpop.permute.xlu0 %785
    %787 = vrot.lane.b32.xlu0 %v407, 34
    %v788 = vpop.permute.xlu0 %787
    %vm789 = vcmp.lt.s32.totalorder %v409, 34
    %v790 = vsel %vm789, %v786, %v788
    %v791 = vsel %vm789, %v788, %v786
    %s792 = sld [smem:[#allocation2 + $0x8]]
    %s793 = sld [smem:[#allocation2 + $0x88]]
    %v794 = vstv %s792
    %v795 = vmul.f32 %v794, %v791
    %v796 = vmul.f32 %v794, %v790
    %v797 = vstv %s793
    %v798 = vmul.f32 %v797, %v791
    %v799 = vmul.f32 %v797, %v790
    %v802 = vrot.slane %v798, 2
    %v803 = vrot.slane %v799, 2
    %v806 = vadd.f32 %v795, %v802
    %v807 = vadd.f32 %v796, %v803
    %v808 = vmul.f32 %v431, %v501
    %v809 = vmul.f32 %v432, %v502
    %v810 = vmul.f32 %v808, %v806
    %v811 = vmul.f32 %v809, %v807
    %v812 = vadd.f32 %v783, %v810
    %v813 = vadd.f32 %v784, %v811
    %814 = vrot.lane.b32.xlu0 %v406, 33
    %v815 = vpop.permute.xlu0 %814
    %816 = vrot.lane.b32.xlu0 %v407, 33
    %v817 = vpop.permute.xlu0 %816
    %vm818 = vcmp.lt.s32.totalorder %v409, 33
    %v819 = vsel %vm818, %v815, %v817
    %v820 = vsel %vm818, %v817, %v815
    %s821 = sld [smem:[#allocation2 + $0x9]]
    %s822 = sld [smem:[#allocation2 + $0x89]]
    %v823 = vstv %s821
    %v824 = vmul.f32 %v823, %v820
    %v825 = vmul.f32 %v823, %v819
    %v826 = vstv %s822
    %v827 = vmul.f32 %v826, %v820
    %v828 = vmul.f32 %v826, %v819
    %v831 = vrot.slane %v827, 2
    %v832 = vrot.slane %v828, 2
    %v835 = vadd.f32 %v824, %v831
    %v836 = vadd.f32 %v825, %v832
    %v837 = vmul.f32 %v431, %v511
    %v838 = vmul.f32 %v432, %v512
    %v839 = vmul.f32 %v837, %v835
    %v840 = vmul.f32 %v838, %v836
    %v841 = vadd.f32 %v812, %v839
    %v842 = vadd.f32 %v813, %v840
    %843 = vrot.lane.b32.xlu0 %v406, 32
    %v844 = vpop.permute.xlu0 %843
    %845 = vrot.lane.b32.xlu0 %v407, 32
    %v846 = vpop.permute.xlu0 %845
    %vm847 = vcmp.lt.s32.totalorder %v409, 32
    %v848 = vsel %vm847, %v844, %v846
    %v849 = vsel %vm847, %v846, %v844
    %s850 = sld [smem:[#allocation2 + $0xa]]
    %s851 = sld [smem:[#allocation2 + $0x8a]]
    %v852 = vstv %s850
    %v853 = vmul.f32 %v852, %v849
    %v854 = vmul.f32 %v852, %v848
    %v855 = vstv %s851
    %v856 = vmul.f32 %v855, %v849
    %v857 = vmul.f32 %v855, %v848
    %v860 = vrot.slane %v856, 2
    %v861 = vrot.slane %v857, 2
    %v864 = vadd.f32 %v853, %v860
    %v865 = vadd.f32 %v854, %v861
    %v866 = vmul.f32 %v431, %v521
    %v867 = vmul.f32 %v432, %v522
    %v868 = vmul.f32 %v866, %v864
    %v869 = vmul.f32 %v867, %v865
    %v870 = vadd.f32 %v841, %v868
    %v871 = vadd.f32 %v842, %v869
    %872 = vrot.lane.b32.xlu0 %v406, 31
    %v873 = vpop.permute.xlu0 %872
    %874 = vrot.lane.b32.xlu0 %v407, 31
    %v875 = vpop.permute.xlu0 %874
    %vm876 = vcmp.lt.s32.totalorder %v409, 31
    %v877 = vsel %vm876, %v873, %v875
    %v878 = vsel %vm876, %v875, %v873
    %s879 = sld [smem:[#allocation2 + $0xb]]
    %s880 = sld [smem:[#allocation2 + $0x8b]]
    %v881 = vstv %s879
    %v882 = vmul.f32 %v881, %v878
    %v883 = vmul.f32 %v881, %v877
    %v884 = vstv %s880
    %v885 = vmul.f32 %v884, %v878
    %v886 = vmul.f32 %v884, %v877
    %v889 = vrot.slane %v885, 2
    %v890 = vrot.slane %v886, 2
    %v893 = vadd.f32 %v882, %v889
    %v894 = vadd.f32 %v883, %v890
    %v895 = vmul.f32 %v431, %v531
    %v896 = vmul.f32 %v432, %v532
    %v897 = vmul.f32 %v895, %v893
    %v898 = vmul.f32 %v896, %v894
    %v899 = vadd.f32 %v870, %v897
    %v900 = vadd.f32 %v871, %v898
    %901 = vrot.lane.b32.xlu0 %v406, 30
    %v902 = vpop.permute.xlu0 %901
    %903 = vrot.lane.b32.xlu0 %v407, 30
    %v904 = vpop.permute.xlu0 %903
    %vm905 = vcmp.lt.s32.totalorder %v409, 30
    %v906 = vsel %vm905, %v902, %v904
    %v907 = vsel %vm905, %v904, %v902
    %s908 = sld [smem:[#allocation2 + $0xc]]
    %s909 = sld [smem:[#allocation2 + $0x8c]]
    %v910 = vstv %s908
    %v911 = vmul.f32 %v910, %v907
    %v912 = vmul.f32 %v910, %v906
    %v913 = vstv %s909
    %v914 = vmul.f32 %v913, %v907
    %v915 = vmul.f32 %v913, %v906
    %v918 = vrot.slane %v914, 2
    %v919 = vrot.slane %v915, 2
    %v922 = vadd.f32 %v911, %v918
    %v923 = vadd.f32 %v912, %v919
    %v924 = vmul.f32 %v431, %v541
    %v925 = vmul.f32 %v432, %v542
    %v926 = vmul.f32 %v924, %v922
    %v927 = vmul.f32 %v925, %v923
    %v928 = vadd.f32 %v899, %v926
    %v929 = vadd.f32 %v900, %v927
    %930 = vrot.lane.b32.xlu0 %v406, 29
    %v931 = vpop.permute.xlu0 %930
    %932 = vrot.lane.b32.xlu0 %v407, 29
    %v933 = vpop.permute.xlu0 %932
    %vm934 = vcmp.lt.s32.totalorder %v409, 29
    %v935 = vsel %vm934, %v931, %v933
    %v936 = vsel %vm934, %v933, %v931
    %s937 = sld [smem:[#allocation2 + $0xd]]
    %s938 = sld [smem:[#allocation2 + $0x8d]]
    %v939 = vstv %s937
    %v940 = vmul.f32 %v939, %v936
    %v941 = vmul.f32 %v939, %v935
    %v942 = vstv %s938
    %v943 = vmul.f32 %v942, %v936
    %v944 = vmul.f32 %v942, %v935
    %v947 = vrot.slane %v943, 2
    %v948 = vrot.slane %v944, 2
    %v951 = vadd.f32 %v940, %v947
    %v952 = vadd.f32 %v941, %v948
    %v953 = vmul.f32 %v431, %v551
    %v954 = vmul.f32 %v432, %v552
    %v955 = vmul.f32 %v953, %v951
    %v956 = vmul.f32 %v954, %v952
    %v957 = vadd.f32 %v928, %v955
    %v958 = vadd.f32 %v929, %v956
    %959 = vrot.lane.b32.xlu0 %v406, 19
    %v960 = vpop.permute.xlu0 %959
    %961 = vrot.lane.b32.xlu0 %v407, 19
    %v962 = vpop.permute.xlu0 %961
    %vm963 = vcmp.lt.s32.totalorder %v409, 19
    %v964 = vsel %vm963, %v960, %v962
    %v965 = vsel %vm963, %v962, %v960
    %s966 = sld [smem:[#allocation2 + $0xe]]
    %s967 = sld [smem:[#allocation2 + $0x8e]]
    %v968 = vstv %s966
    %v969 = vmul.f32 %v968, %v965
    %v970 = vmul.f32 %v968, %v964
    %v971 = vstv %s967
    %v972 = vmul.f32 %v971, %v965
    %v973 = vmul.f32 %v971, %v964
    %v976 = vrot.slane %v972, 2
    %v977 = vrot.slane %v973, 2
    %v980 = vadd.f32 %v969, %v976
    %v981 = vadd.f32 %v970, %v977
    %v982 = vmul.f32 %v441, %v491
    %v983 = vmul.f32 %v442, %v492
    %v984 = vmul.f32 %v982, %v980
    %v985 = vmul.f32 %v983, %v981
    %v986 = vadd.f32 %v957, %v984
    %v987 = vadd.f32 %v958, %v985
    %988 = vrot.lane.b32.xlu0 %v406, 18
    %v989 = vpop.permute.xlu0 %988
    %990 = vrot.lane.b32.xlu0 %v407, 18
    %v991 = vpop.permute.xlu0 %990
    %vm992 = vcmp.lt.s32.totalorder %v409, 18
    %v993 = vsel %vm992, %v989, %v991
    %v994 = vsel %vm992, %v991, %v989
    %s995 = sld [smem:[#allocation2 + $0xf]]
    %s996 = sld [smem:[#allocation2 + $0x8f]]
    %v997 = vstv %s995
    %v998 = vmul.f32 %v997, %v994
    %v999 = vmul.f32 %v997, %v993
    %v1000 = vstv %s996
    %v1001 = vmul.f32 %v1000, %v994
    %v1002 = vmul.f32 %v1000, %v993
    %v1005 = vrot.slane %v1001, 2
    %v1006 = vrot.slane %v1002, 2
    %v1009 = vadd.f32 %v998, %v1005
    %v1010 = vadd.f32 %v999, %v1006
    %v1011 = vmul.f32 %v441, %v501
    %v1012 = vmul.f32 %v442, %v502
    %v1013 = vmul.f32 %v1011, %v1009
    %v1014 = vmul.f32 %v1012, %v1010
    %v1015 = vadd.f32 %v986, %v1013
    %v1016 = vadd.f32 %v987, %v1014
    %1017 = vrot.lane.b32.xlu0 %v406, 17
    %v1018 = vpop.permute.xlu0 %1017
    %1019 = vrot.lane.b32.xlu0 %v407, 17
    %v1020 = vpop.permute.xlu0 %1019
    %vm1021 = vcmp.lt.s32.totalorder %v409, 17
    %v1022 = vsel %vm1021, %v1018, %v1020
    %v1023 = vsel %vm1021, %v1020, %v1018
    %s1024 = sld [smem:[#allocation2 + $0x10]]
    %s1025 = sld [smem:[#allocation2 + $0x90]]
    %v1026 = vstv %s1024
    %v1027 = vmul.f32 %v1026, %v1023
    %v1028 = vmul.f32 %v1026, %v1022
    %v1029 = vstv %s1025
    %v1030 = vmul.f32 %v1029, %v1023
    %v1031 = vmul.f32 %v1029, %v1022
    %v1034 = vrot.slane %v1030, 2
    %v1035 = vrot.slane %v1031, 2
    %v1038 = vadd.f32 %v1027, %v1034
    %v1039 = vadd.f32 %v1028, %v1035
    %v1040 = vmul.f32 %v441, %v511
    %v1041 = vmul.f32 %v442, %v512
    %v1042 = vmul.f32 %v1040, %v1038
    %v1043 = vmul.f32 %v1041, %v1039
    %v1044 = vadd.f32 %v1015, %v1042
    %v1045 = vadd.f32 %v1016, %v1043
    %1046 = vrot.lane.b32.xlu0 %v406, 16
    %v1047 = vpop.permute.xlu0 %1046
    %1048 = vrot.lane.b32.xlu0 %v407, 16
    %v1049 = vpop.permute.xlu0 %1048
    %vm1050 = vcmp.lt.s32.totalorder %v409, 16
    %v1051 = vsel %vm1050, %v1047, %v1049
    %v1052 = vsel %vm1050, %v1049, %v1047
    %s1053 = sld [smem:[#allocation2 + $0x11]]
    %s1054 = sld [smem:[#allocation2 + $0x91]]
    %v1055 = vstv %s1053
    %v1056 = vmul.f32 %v1055, %v1052
    %v1057 = vmul.f32 %v1055, %v1051
    %v1058 = vstv %s1054
    %v1059 = vmul.f32 %v1058, %v1052
    %v1060 = vmul.f32 %v1058, %v1051
    %v1063 = vrot.slane %v1059, 2
    %v1064 = vrot.slane %v1060, 2
    %v1067 = vadd.f32 %v1056, %v1063
    %v1068 = vadd.f32 %v1057, %v1064
    %v1069 = vmul.f32 %v441, %v521
    %v1070 = vmul.f32 %v442, %v522
    %v1071 = vmul.f32 %v1069, %v1067
    %v1072 = vmul.f32 %v1070, %v1068
    %v1073 = vadd.f32 %v1044, %v1071
    %v1074 = vadd.f32 %v1045, %v1072
    %1075 = vrot.lane.b32.xlu0 %v406, 15
    %v1076 = vpop.permute.xlu0 %1075
    %1077 = vrot.lane.b32.xlu0 %v407, 15
    %v1078 = vpop.permute.xlu0 %1077
    %vm1079 = vcmp.lt.s32.totalorder %v409, 15
    %v1080 = vsel %vm1079, %v1076, %v1078
    %v1081 = vsel %vm1079, %v1078, %v1076
    %s1082 = sld [smem:[#allocation2 + $0x12]]
    %s1083 = sld [smem:[#allocation2 + $0x92]]
    %v1084 = vstv %s1082
    %v1085 = vmul.f32 %v1084, %v1081
    %v1086 = vmul.f32 %v1084, %v1080
    %v1087 = vstv %s1083
    %v1088 = vmul.f32 %v1087, %v1081
    %v1089 = vmul.f32 %v1087, %v1080
    %v1092 = vrot.slane %v1088, 2
    %v1093 = vrot.slane %v1089, 2
    %v1096 = vadd.f32 %v1085, %v1092
    %v1097 = vadd.f32 %v1086, %v1093
    %v1098 = vmul.f32 %v441, %v531
    %v1099 = vmul.f32 %v442, %v532
    %v1100 = vmul.f32 %v1098, %v1096
    %v1101 = vmul.f32 %v1099, %v1097
    %v1102 = vadd.f32 %v1073, %v1100
    %v1103 = vadd.f32 %v1074, %v1101
    %1104 = vrot.lane.b32.xlu0 %v406, 14
    %v1105 = vpop.permute.xlu0 %1104
    %1106 = vrot.lane.b32.xlu0 %v407, 14
    %v1107 = vpop.permute.xlu0 %1106
    %vm1108 = vcmp.lt.s32.totalorder %v409, 14
    %v1109 = vsel %vm1108, %v1105, %v1107
    %v1110 = vsel %vm1108, %v1107, %v1105
    %s1111 = sld [smem:[#allocation2 + $0x13]]
    %s1112 = sld [smem:[#allocation2 + $0x93]]
    %v1113 = vstv %s1111
    %v1114 = vmul.f32 %v1113, %v1110
    %v1115 = vmul.f32 %v1113, %v1109
    %v1116 = vstv %s1112
    %v1117 = vmul.f32 %v1116, %v1110
    %v1118 = vmul.f32 %v1116, %v1109
    %v1121 = vrot.slane %v1117, 2
    %v1122 = vrot.slane %v1118, 2
    %v1125 = vadd.f32 %v1114, %v1121
    %v1126 = vadd.f32 %v1115, %v1122
    %v1127 = vmul.f32 %v441, %v541
    %v1128 = vmul.f32 %v442, %v542
    %v1129 = vmul.f32 %v1127, %v1125
    %v1130 = vmul.f32 %v1128, %v1126
    %v1131 = vadd.f32 %v1102, %v1129
    %v1132 = vadd.f32 %v1103, %v1130
    %1133 = vrot.lane.b32.xlu0 %v406, 13
    %v1134 = vpop.permute.xlu0 %1133
    %1135 = vrot.lane.b32.xlu0 %v407, 13
    %v1136 = vpop.permute.xlu0 %1135
    %vm1137 = vcmp.lt.s32.totalorder %v409, 13
    %v1138 = vsel %vm1137, %v1134, %v1136
    %v1139 = vsel %vm1137, %v1136, %v1134
    %s1140 = sld [smem:[#allocation2 + $0x14]]
    %s1141 = sld [smem:[#allocation2 + $0x94]]
    %v1142 = vstv %s1140
    %v1143 = vmul.f32 %v1142, %v1139
    %v1144 = vmul.f32 %v1142, %v1138
    %v1145 = vstv %s1141
    %v1146 = vmul.f32 %v1145, %v1139
    %v1147 = vmul.f32 %v1145, %v1138
    %v1150 = vrot.slane %v1146, 2
    %v1151 = vrot.slane %v1147, 2
    %v1154 = vadd.f32 %v1143, %v1150
    %v1155 = vadd.f32 %v1144, %v1151
    %v1156 = vmul.f32 %v441, %v551
    %v1157 = vmul.f32 %v442, %v552
    %v1158 = vmul.f32 %v1156, %v1154
    %v1159 = vmul.f32 %v1157, %v1155
    %v1160 = vadd.f32 %v1131, %v1158
    %v1161 = vadd.f32 %v1132, %v1159
    %1162 = vrot.lane.b32.xlu0 %v406, 3
    %v1163 = vpop.permute.xlu0 %1162
    %1164 = vrot.lane.b32.xlu0 %v407, 3
    %v1165 = vpop.permute.xlu0 %1164
    %vm1166 = vcmp.lt.s32.totalorder %v409, 3
    %v1167 = vsel %vm1166, %v1163, %v1165
    %v1168 = vsel %vm1166, %v1165, %v1163
    %s1169 = sld [smem:[#allocation2 + $0x15]]
    %s1170 = sld [smem:[#allocation2 + $0x95]]
    %v1171 = vstv %s1169
    %v1172 = vmul.f32 %v1171, %v1168
    %v1173 = vmul.f32 %v1171, %v1167
    %v1174 = vstv %s1170
    %v1175 = vmul.f32 %v1174, %v1168
    %v1176 = vmul.f32 %v1174, %v1167
    %v1179 = vrot.slane %v1175, 2
    %v1180 = vrot.slane %v1176, 2
    %v1183 = vadd.f32 %v1172, %v1179
    %v1184 = vadd.f32 %v1173, %v1180
    %v1185 = vmul.f32 %v451, %v491
    %v1186 = vmul.f32 %v452, %v492
    %v1187 = vmul.f32 %v1185, %v1183
    %v1188 = vmul.f32 %v1186, %v1184
    %v1189 = vadd.f32 %v1160, %v1187
    %v1190 = vadd.f32 %v1161, %v1188
    %1191 = vrot.lane.b32.xlu0 %v406, 2
    %v1192 = vpop.permute.xlu0 %1191
    %1193 = vrot.lane.b32.xlu0 %v407, 2
    %v1194 = vpop.permute.xlu0 %1193
    %vm1195 = vcmp.lt.s32.totalorder %v409, 2
    %v1196 = vsel %vm1195, %v1192, %v1194
    %v1197 = vsel %vm1195, %v1194, %v1192
    %s1198 = sld [smem:[#allocation2 + $0x16]]
    %s1199 = sld [smem:[#allocation2 + $0x96]]
    %v1200 = vstv %s1198
    %v1201 = vmul.f32 %v1200, %v1197
    %v1202 = vmul.f32 %v1200, %v1196
    %v1203 = vstv %s1199
    %v1204 = vmul.f32 %v1203, %v1197
    %v1205 = vmul.f32 %v1203, %v1196
    %v1208 = vrot.slane %v1204, 2
    %v1209 = vrot.slane %v1205, 2
    %v1212 = vadd.f32 %v1201, %v1208
    %v1213 = vadd.f32 %v1202, %v1209
    %v1214 = vmul.f32 %v451, %v501
    %v1215 = vmul.f32 %v452, %v502
    %v1216 = vmul.f32 %v1214, %v1212
    %v1217 = vmul.f32 %v1215, %v1213
    %v1218 = vadd.f32 %v1189, %v1216
    %v1219 = vadd.f32 %v1190, %v1217
    %1220 = vrot.lane.b32.xlu0 %v406, 1
    %v1221 = vpop.permute.xlu0 %1220
    %1222 = vrot.lane.b32.xlu0 %v407, 1
    %v1223 = vpop.permute.xlu0 %1222
    %vm1224 = vcmp.lt.s32.totalorder %v409, 1
    %v1225 = vsel %vm1224, %v1221, %v1223
    %v1226 = vsel %vm1224, %v1223, %v1221
    %s1227 = sld [smem:[#allocation2 + $0x17]]
    %s1228 = sld [smem:[#allocation2 + $0x97]]
    %v1229 = vstv %s1227
    %v1230 = vmul.f32 %v1229, %v1226
    %v1231 = vmul.f32 %v1229, %v1225
    %v1232 = vstv %s1228
    %v1233 = vmul.f32 %v1232, %v1226
    %v1234 = vmul.f32 %v1232, %v1225
    %v1237 = vrot.slane %v1233, 2
    %v1238 = vrot.slane %v1234, 2
    %v1241 = vadd.f32 %v1230, %v1237
    %v1242 = vadd.f32 %v1231, %v1238
    %v1243 = vmul.f32 %v451, %v511
    %v1244 = vmul.f32 %v452, %v512
    %v1245 = vmul.f32 %v1243, %v1241
    %v1246 = vmul.f32 %v1244, %v1242
    %v1247 = vadd.f32 %v1218, %v1245
    %v1248 = vadd.f32 %v1219, %v1246
    %s1249 = sld [smem:[#allocation2 + $0x18]]
    %s1250 = sld [smem:[#allocation2 + $0x98]]
    %v1251 = vstv %s1249
    %v1252 = vmul.f32 %v1251, %v406
    %v1253 = vmul.f32 %v1251, %v407
    %v1254 = vstv %s1250
    %v1255 = vmul.f32 %v1254, %v406
    %v1256 = vmul.f32 %v1254, %v407
    %v1259 = vrot.slane %v1255, 2
    %v1260 = vrot.slane %v1256, 2
    %v1263 = vadd.f32 %v1252, %v1259
    %v1264 = vadd.f32 %v1253, %v1260
    %v1265 = vmul.f32 %v451, %v521
    %v1266 = vmul.f32 %v452, %v522
    %v1267 = vmul.f32 %v1265, %v1263
    %v1268 = vmul.f32 %v1266, %v1264
    %v1269 = vadd.f32 %v1247, %v1267
    %v1270 = vadd.f32 %v1248, %v1268
    %1271 = vrot.lane.b32.xlu0 %v406, 127
    %v1272 = vpop.permute.xlu0 %1271
    %1273 = vrot.lane.b32.xlu0 %v407, 127
    %v1274 = vpop.permute.xlu0 %1273
    %vm1275 = vcmp.lt.s32.totalorder %v409, 127
    %v1276 = vsel %vm1275, %v1272, %v1274
    %v1277 = vsel %vm1275, %v1274, %v1272
    %s1278 = sld [smem:[#allocation2 + $0x19]]
    %s1279 = sld [smem:[#allocation2 + $0x99]]
    %v1280 = vstv %s1278
    %v1281 = vmul.f32 %v1280, %v1276
    %v1282 = vmul.f32 %v1280, %v1277
    %v1283 = vstv %s1279
    %v1284 = vmul.f32 %v1283, %v1276
    %v1285 = vmul.f32 %v1283, %v1277
    %v1288 = vrot.slane %v1284, 2
    %v1289 = vrot.slane %v1285, 2
    %v1292 = vadd.f32 %v1281, %v1288
    %v1293 = vadd.f32 %v1282, %v1289
    %v1294 = vmul.f32 %v451, %v531
    %v1295 = vmul.f32 %v452, %v532
    %v1296 = vmul.f32 %v1294, %v1292
    %v1297 = vmul.f32 %v1295, %v1293
    %v1298 = vadd.f32 %v1269, %v1296
    %v1299 = vadd.f32 %v1270, %v1297
    %1300 = vrot.lane.b32.xlu0 %v406, 126
    %v1301 = vpop.permute.xlu0 %1300
    %1302 = vrot.lane.b32.xlu0 %v407, 126
    %v1303 = vpop.permute.xlu0 %1302
    %vm1304 = vcmp.lt.s32.totalorder %v409, 126
    %v1305 = vsel %vm1304, %v1301, %v1303
    %v1306 = vsel %vm1304, %v1303, %v1301
    %s1307 = sld [smem:[#allocation2 + $0x1a]]
    %s1308 = sld [smem:[#allocation2 + $0x9a]]
    %v1309 = vstv %s1307
    %v1310 = vmul.f32 %v1309, %v1305
    %v1311 = vmul.f32 %v1309, %v1306
    %v1312 = vstv %s1308
    %v1313 = vmul.f32 %v1312, %v1305
    %v1314 = vmul.f32 %v1312, %v1306
    %v1317 = vrot.slane %v1313, 2
    %v1318 = vrot.slane %v1314, 2
    %v1321 = vadd.f32 %v1310, %v1317
    %v1322 = vadd.f32 %v1311, %v1318
    %v1323 = vmul.f32 %v451, %v541
    %v1324 = vmul.f32 %v452, %v542
    %v1325 = vmul.f32 %v1323, %v1321
    %v1326 = vmul.f32 %v1324, %v1322
    %v1327 = vadd.f32 %v1298, %v1325
    %v1328 = vadd.f32 %v1299, %v1326
    %1329 = vrot.lane.b32.xlu0 %v406, 125
    %v1330 = vpop.permute.xlu0 %1329
    %1331 = vrot.lane.b32.xlu0 %v407, 125
    %v1332 = vpop.permute.xlu0 %1331
    %vm1333 = vcmp.lt.s32.totalorder %v409, 125
    %v1334 = vsel %vm1333, %v1330, %v1332
    %v1335 = vsel %vm1333, %v1332, %v1330
    %s1336 = sld [smem:[#allocation2 + $0x1b]]
    %s1337 = sld [smem:[#allocation2 + $0x9b]]
    %v1338 = vstv %s1336
    %v1339 = vmul.f32 %v1338, %v1334
    %v1340 = vmul.f32 %v1338, %v1335
    %v1341 = vstv %s1337
    %v1342 = vmul.f32 %v1341, %v1334
    %v1343 = vmul.f32 %v1341, %v1335
    %v1346 = vrot.slane %v1342, 2
    %v1347 = vrot.slane %v1343, 2
    %v1350 = vadd.f32 %v1339, %v1346
    %v1351 = vadd.f32 %v1340, %v1347
    %v1352 = vmul.f32 %v451, %v551
    %v1353 = vmul.f32 %v452, %v552
    %v1354 = vmul.f32 %v1352, %v1350
    %v1355 = vmul.f32 %v1353, %v1351
    %v1356 = vadd.f32 %v1327, %v1354
    %v1357 = vadd.f32 %v1328, %v1355
    %1358 = vrot.lane.b32.xlu0 %v406, 115
    %v1359 = vpop.permute.xlu0 %1358
    %1360 = vrot.lane.b32.xlu0 %v407, 115
    %v1361 = vpop.permute.xlu0 %1360
    %vm1362 = vcmp.lt.s32.totalorder %v409, 115
    %v1363 = vsel %vm1362, %v1359, %v1361
    %v1364 = vsel %vm1362, %v1361, %v1359
    %s1365 = sld [smem:[#allocation2 + $0x1c]]
    %s1366 = sld [smem:[#allocation2 + $0x9c]]
    %v1367 = vstv %s1365
    %v1368 = vmul.f32 %v1367, %v1363
    %v1369 = vmul.f32 %v1367, %v1364
    %v1370 = vstv %s1366
    %v1371 = vmul.f32 %v1370, %v1363
    %v1372 = vmul.f32 %v1370, %v1364
    %v1375 = vrot.slane %v1371, 2
    %v1376 = vrot.slane %v1372, 2
    %v1379 = vadd.f32 %v1368, %v1375
    %v1380 = vadd.f32 %v1369, %v1376
    %v1381 = vmul.f32 %v461, %v491
    %v1382 = vmul.f32 %v462, %v492
    %v1383 = vmul.f32 %v1381, %v1379
    %v1384 = vmul.f32 %v1382, %v1380
    %v1385 = vadd.f32 %v1356, %v1383
    %v1386 = vadd.f32 %v1357, %v1384
    %1387 = vrot.lane.b32.xlu0 %v406, 114
    %v1388 = vpop.permute.xlu0 %1387
    %1389 = vrot.lane.b32.xlu0 %v407, 114
    %v1390 = vpop.permute.xlu0 %1389
    %vm1391 = vcmp.lt.s32.totalorder %v409, 114
    %v1392 = vsel %vm1391, %v1388, %v1390
    %v1393 = vsel %vm1391, %v1390, %v1388
    %s1394 = sld [smem:[#allocation2 + $0x1d]]
    %s1395 = sld [smem:[#allocation2 + $0x9d]]
    %v1396 = vstv %s1394
    %v1397 = vmul.f32 %v1396, %v1392
    %v1398 = vmul.f32 %v1396, %v1393
    %v1399 = vstv %s1395
    %v1400 = vmul.f32 %v1399, %v1392
    %v1401 = vmul.f32 %v1399, %v1393
    %v1404 = vrot.slane %v1400, 2
    %v1405 = vrot.slane %v1401, 2
    %v1408 = vadd.f32 %v1397, %v1404
    %v1409 = vadd.f32 %v1398, %v1405
    %v1410 = vmul.f32 %v461, %v501
    %v1411 = vmul.f32 %v462, %v502
    %v1412 = vmul.f32 %v1410, %v1408
    %v1413 = vmul.f32 %v1411, %v1409
    %v1414 = vadd.f32 %v1385, %v1412
    %v1415 = vadd.f32 %v1386, %v1413
    %1416 = vrot.lane.b32.xlu0 %v406, 113
    %v1417 = vpop.permute.xlu0 %1416
    %1418 = vrot.lane.b32.xlu0 %v407, 113
    %v1419 = vpop.permute.xlu0 %1418
    %vm1420 = vcmp.lt.s32.totalorder %v409, 113
    %v1421 = vsel %vm1420, %v1417, %v1419
    %v1422 = vsel %vm1420, %v1419, %v1417
    %s1423 = sld [smem:[#allocation2 + $0x1e]]
    %s1424 = sld [smem:[#allocation2 + $0x9e]]
    %v1425 = vstv %s1423
    %v1426 = vmul.f32 %v1425, %v1421
    %v1427 = vmul.f32 %v1425, %v1422
    %v1428 = vstv %s1424
    %v1429 = vmul.f32 %v1428, %v1421
    %v1430 = vmul.f32 %v1428, %v1422
    %v1433 = vrot.slane %v1429, 2
    %v1434 = vrot.slane %v1430, 2
    %v1437 = vadd.f32 %v1426, %v1433
    %v1438 = vadd.f32 %v1427, %v1434
    %v1439 = vmul.f32 %v461, %v511
    %v1440 = vmul.f32 %v462, %v512
    %v1441 = vmul.f32 %v1439, %v1437
    %v1442 = vmul.f32 %v1440, %v1438
    %v1443 = vadd.f32 %v1414, %v1441
    %v1444 = vadd.f32 %v1415, %v1442
    %1445 = vrot.lane.b32.xlu0 %v406, 112
    %v1446 = vpop.permute.xlu0 %1445
    %1447 = vrot.lane.b32.xlu0 %v407, 112
    %v1448 = vpop.permute.xlu0 %1447
    %vm1449 = vcmp.lt.s32.totalorder %v409, 112
    %v1450 = vsel %vm1449, %v1446, %v1448
    %v1451 = vsel %vm1449, %v1448, %v1446
    %s1452 = sld [smem:[#allocation2 + $0x1f]]
    %s1453 = sld [smem:[#allocation2 + $0x9f]]
    %v1454 = vstv %s1452
    %v1455 = vmul.f32 %v1454, %v1450
    %v1456 = vmul.f32 %v1454, %v1451
    %v1457 = vstv %s1453
    %v1458 = vmul.f32 %v1457, %v1450
    %v1459 = vmul.f32 %v1457, %v1451
    %v1462 = vrot.slane %v1458, 2
    %v1463 = vrot.slane %v1459, 2
    %v1466 = vadd.f32 %v1455, %v1462
    %v1467 = vadd.f32 %v1456, %v1463
    %v1468 = vmul.f32 %v461, %v521
    %v1469 = vmul.f32 %v462, %v522
    %v1470 = vmul.f32 %v1468, %v1466
    %v1471 = vmul.f32 %v1469, %v1467
    %v1472 = vadd.f32 %v1443, %v1470
    %v1473 = vadd.f32 %v1444, %v1471
    %1474 = vrot.lane.b32.xlu0 %v406, 111
    %v1475 = vpop.permute.xlu0 %1474
    %1476 = vrot.lane.b32.xlu0 %v407, 111
    %v1477 = vpop.permute.xlu0 %1476
    %vm1478 = vcmp.lt.s32.totalorder %v409, 111
    %v1479 = vsel %vm1478, %v1475, %v1477
    %v1480 = vsel %vm1478, %v1477, %v1475
    %s1481 = sld [smem:[#allocation2 + $0x20]]
    %s1482 = sld [smem:[#allocation2 + $0xa0]]
    %v1483 = vstv %s1481
    %v1484 = vmul.f32 %v1483, %v1479
    %v1485 = vmul.f32 %v1483, %v1480
    %v1486 = vstv %s1482
    %v1487 = vmul.f32 %v1486, %v1479
    %v1488 = vmul.f32 %v1486, %v1480
    %v1491 = vrot.slane %v1487, 2
    %v1492 = vrot.slane %v1488, 2
    %v1495 = vadd.f32 %v1484, %v1491
    %v1496 = vadd.f32 %v1485, %v1492
    %v1497 = vmul.f32 %v461, %v531
    %v1498 = vmul.f32 %v462, %v532
    %v1499 = vmul.f32 %v1497, %v1495
    %v1500 = vmul.f32 %v1498, %v1496
    %v1501 = vadd.f32 %v1472, %v1499
    %v1502 = vadd.f32 %v1473, %v1500
    %1503 = vrot.lane.b32.xlu0 %v406, 110
    %v1504 = vpop.permute.xlu0 %1503
    %1505 = vrot.lane.b32.xlu0 %v407, 110
    %v1506 = vpop.permute.xlu0 %1505
    %vm1507 = vcmp.lt.s32.totalorder %v409, 110
    %v1508 = vsel %vm1507, %v1504, %v1506
    %v1509 = vsel %vm1507, %v1506, %v1504
    %s1510 = sld [smem:[#allocation2 + $0x21]]
    %s1511 = sld [smem:[#allocation2 + $0xa1]]
    %v1512 = vstv %s1510
    %v1513 = vmul.f32 %v1512, %v1508
    %v1514 = vmul.f32 %v1512, %v1509
    %v1515 = vstv %s1511
    %v1516 = vmul.f32 %v1515, %v1508
    %v1517 = vmul.f32 %v1515, %v1509
    %v1520 = vrot.slane %v1516, 2
    %v1521 = vrot.slane %v1517, 2
    %v1524 = vadd.f32 %v1513, %v1520
    %v1525 = vadd.f32 %v1514, %v1521
    %v1526 = vmul.f32 %v461, %v541
    %v1527 = vmul.f32 %v462, %v542
    %v1528 = vmul.f32 %v1526, %v1524
    %v1529 = vmul.f32 %v1527, %v1525
    %v1530 = vadd.f32 %v1501, %v1528
    %v1531 = vadd.f32 %v1502, %v1529
    %1532 = vrot.lane.b32.xlu0 %v406, 109
    %v1533 = vpop.permute.xlu0 %1532
    %1534 = vrot.lane.b32.xlu0 %v407, 109
    %v1535 = vpop.permute.xlu0 %1534
    %vm1536 = vcmp.lt.s32.totalorder %v409, 109
    %v1537 = vsel %vm1536, %v1533, %v1535
    %v1538 = vsel %vm1536, %v1535, %v1533
    %s1539 = sld [smem:[#allocation2 + $0x22]]
    %s1540 = sld [smem:[#allocation2 + $0xa2]]
    %v1541 = vstv %s1539
    %v1542 = vmul.f32 %v1541, %v1537
    %v1543 = vmul.f32 %v1541, %v1538
    %v1544 = vstv %s1540
    %v1545 = vmul.f32 %v1544, %v1537
    %v1546 = vmul.f32 %v1544, %v1538
    %v1549 = vrot.slane %v1545, 2
    %v1550 = vrot.slane %v1546, 2
    %v1553 = vadd.f32 %v1542, %v1549
    %v1554 = vadd.f32 %v1543, %v1550
    %v1555 = vmul.f32 %v461, %v551
    %v1556 = vmul.f32 %v462, %v552
    %v1557 = vmul.f32 %v1555, %v1553
    %v1558 = vmul.f32 %v1556, %v1554
    %v1559 = vadd.f32 %v1530, %v1557
    %v1560 = vadd.f32 %v1531, %v1558
    %1561 = vrot.lane.b32.xlu0 %v406, 99
    %v1562 = vpop.permute.xlu0 %1561
    %1563 = vrot.lane.b32.xlu0 %v407, 99
    %v1564 = vpop.permute.xlu0 %1563
    %vm1565 = vcmp.lt.s32.totalorder %v409, 99
    %v1566 = vsel %vm1565, %v1562, %v1564
    %v1567 = vsel %vm1565, %v1564, %v1562
    %s1568 = sld [smem:[#allocation2 + $0x23]]
    %s1569 = sld [smem:[#allocation2 + $0xa3]]
    %v1570 = vstv %s1568
    %v1571 = vmul.f32 %v1570, %v1566
    %v1572 = vmul.f32 %v1570, %v1567
    %v1573 = vstv %s1569
    %v1574 = vmul.f32 %v1573, %v1566
    %v1575 = vmul.f32 %v1573, %v1567
    %v1578 = vrot.slane %v1574, 2
    %v1579 = vrot.slane %v1575, 2
    %v1582 = vadd.f32 %v1571, %v1578
    %v1583 = vadd.f32 %v1572, %v1579
    %v1584 = vmul.f32 %v471, %v491
    %v1585 = vmul.f32 %v472, %v492
    %v1586 = vmul.f32 %v1584, %v1582
    %v1587 = vmul.f32 %v1585, %v1583
    %v1588 = vadd.f32 %v1559, %v1586
    %v1589 = vadd.f32 %v1560, %v1587
    %1590 = vrot.lane.b32.xlu0 %v406, 98
    %v1591 = vpop.permute.xlu0 %1590
    %1592 = vrot.lane.b32.xlu0 %v407, 98
    %v1593 = vpop.permute.xlu0 %1592
    %vm1594 = vcmp.lt.s32.totalorder %v409, 98
    %v1595 = vsel %vm1594, %v1591, %v1593
    %v1596 = vsel %vm1594, %v1593, %v1591
    %s1597 = sld [smem:[#allocation2 + $0x24]]
    %s1598 = sld [smem:[#allocation2 + $0xa4]]
    %v1599 = vstv %s1597
    %v1600 = vmul.f32 %v1599, %v1595
    %v1601 = vmul.f32 %v1599, %v1596
    %v1602 = vstv %s1598
    %v1603 = vmul.f32 %v1602, %v1595
    %v1604 = vmul.f32 %v1602, %v1596
    %v1607 = vrot.slane %v1603, 2
    %v1608 = vrot.slane %v1604, 2
    %v1611 = vadd.f32 %v1600, %v1607
    %v1612 = vadd.f32 %v1601, %v1608
    %v1613 = vmul.f32 %v471, %v501
    %v1614 = vmul.f32 %v472, %v502
    %v1615 = vmul.f32 %v1613, %v1611
    %v1616 = vmul.f32 %v1614, %v1612
    %v1617 = vadd.f32 %v1588, %v1615
    %v1618 = vadd.f32 %v1589, %v1616
    %1619 = vrot.lane.b32.xlu0 %v406, 97
    %v1620 = vpop.permute.xlu0 %1619
    %1621 = vrot.lane.b32.xlu0 %v407, 97
    %v1622 = vpop.permute.xlu0 %1621
    %vm1623 = vcmp.lt.s32.totalorder %v409, 97
    %v1624 = vsel %vm1623, %v1620, %v1622
    %v1625 = vsel %vm1623, %v1622, %v1620
    %s1626 = sld [smem:[#allocation2 + $0x25]]
    %s1627 = sld [smem:[#allocation2 + $0xa5]]
    %v1628 = vstv %s1626
    %v1629 = vmul.f32 %v1628, %v1624
    %v1630 = vmul.f32 %v1628, %v1625
    %v1631 = vstv %s1627
    %v1632 = vmul.f32 %v1631, %v1624
    %v1633 = vmul.f32 %v1631, %v1625
    %v1636 = vrot.slane %v1632, 2
    %v1637 = vrot.slane %v1633, 2
    %v1640 = vadd.f32 %v1629, %v1636
    %v1641 = vadd.f32 %v1630, %v1637
    %v1642 = vmul.f32 %v471, %v511
    %v1643 = vmul.f32 %v472, %v512
    %v1644 = vmul.f32 %v1642, %v1640
    %v1645 = vmul.f32 %v1643, %v1641
    %v1646 = vadd.f32 %v1617, %v1644
    %v1647 = vadd.f32 %v1618, %v1645
    %1648 = vrot.lane.b32.xlu0 %v406, 96
    %v1649 = vpop.permute.xlu0 %1648
    %1650 = vrot.lane.b32.xlu0 %v407, 96
    %v1651 = vpop.permute.xlu0 %1650
    %vm1652 = vcmp.lt.s32.totalorder %v409, 96
    %v1653 = vsel %vm1652, %v1649, %v1651
    %v1654 = vsel %vm1652, %v1651, %v1649
    %s1655 = sld [smem:[#allocation2 + $0x26]]
    %s1656 = sld [smem:[#allocation2 + $0xa6]]
    %v1657 = vstv %s1655
    %v1658 = vmul.f32 %v1657, %v1653
    %v1659 = vmul.f32 %v1657, %v1654
    %v1660 = vstv %s1656
    %v1661 = vmul.f32 %v1660, %v1653
    %v1662 = vmul.f32 %v1660, %v1654
    %v1665 = vrot.slane %v1661, 2
    %v1666 = vrot.slane %v1662, 2
    %v1669 = vadd.f32 %v1658, %v1665
    %v1670 = vadd.f32 %v1659, %v1666
    %v1671 = vmul.f32 %v471, %v521
    %v1672 = vmul.f32 %v472, %v522
    %v1673 = vmul.f32 %v1671, %v1669
    %v1674 = vmul.f32 %v1672, %v1670
    %v1675 = vadd.f32 %v1646, %v1673
    %v1676 = vadd.f32 %v1647, %v1674
    %1677 = vrot.lane.b32.xlu0 %v406, 95
    %v1678 = vpop.permute.xlu0 %1677
    %1679 = vrot.lane.b32.xlu0 %v407, 95
    %v1680 = vpop.permute.xlu0 %1679
    %vm1681 = vcmp.lt.s32.totalorder %v409, 95
    %v1682 = vsel %vm1681, %v1678, %v1680
    %v1683 = vsel %vm1681, %v1680, %v1678
    %s1684 = sld [smem:[#allocation2 + $0x27]]
    %s1685 = sld [smem:[#allocation2 + $0xa7]]
    %v1686 = vstv %s1684
    %v1687 = vmul.f32 %v1686, %v1682
    %v1688 = vmul.f32 %v1686, %v1683
    %v1689 = vstv %s1685
    %v1690 = vmul.f32 %v1689, %v1682
    %v1691 = vmul.f32 %v1689, %v1683
    %v1694 = vrot.slane %v1690, 2
    %v1695 = vrot.slane %v1691, 2
    %v1698 = vadd.f32 %v1687, %v1694
    %v1699 = vadd.f32 %v1688, %v1695
    %v1700 = vmul.f32 %v471, %v531
    %v1701 = vmul.f32 %v472, %v532
    %v1702 = vmul.f32 %v1700, %v1698
    %v1703 = vmul.f32 %v1701, %v1699
    %v1704 = vadd.f32 %v1675, %v1702
    %v1705 = vadd.f32 %v1676, %v1703
    %1706 = vrot.lane.b32.xlu0 %v406, 94
    %v1707 = vpop.permute.xlu0 %1706
    %1708 = vrot.lane.b32.xlu0 %v407, 94
    %v1709 = vpop.permute.xlu0 %1708
    %vm1710 = vcmp.lt.s32.totalorder %v409, 94
    %v1711 = vsel %vm1710, %v1707, %v1709
    %v1712 = vsel %vm1710, %v1709, %v1707
    %s1713 = sld [smem:[#allocation2 + $0x28]]
    %s1714 = sld [smem:[#allocation2 + $0xa8]]
    %v1715 = vstv %s1713
    %v1716 = vmul.f32 %v1715, %v1711
    %v1717 = vmul.f32 %v1715, %v1712
    %v1718 = vstv %s1714
    %v1719 = vmul.f32 %v1718, %v1711
    %v1720 = vmul.f32 %v1718, %v1712
    %v1723 = vrot.slane %v1719, 2
    %v1724 = vrot.slane %v1720, 2
    %v1727 = vadd.f32 %v1716, %v1723
    %v1728 = vadd.f32 %v1717, %v1724
    %v1729 = vmul.f32 %v471, %v541
    %v1730 = vmul.f32 %v472, %v542
    %v1731 = vmul.f32 %v1729, %v1727
    %v1732 = vmul.f32 %v1730, %v1728
    %v1733 = vadd.f32 %v1704, %v1731
    %v1734 = vadd.f32 %v1705, %v1732
    %1735 = vrot.lane.b32.xlu0 %v406, 93
    %v1736 = vpop.permute.xlu0 %1735
    %1737 = vrot.lane.b32.xlu0 %v407, 93
    %v1738 = vpop.permute.xlu0 %1737
    %vm1739 = vcmp.lt.s32.totalorder %v409, 93
    %v1740 = vsel %vm1739, %v1736, %v1738
    %v1741 = vsel %vm1739, %v1738, %v1736
    %s1742 = sld [smem:[#allocation2 + $0x29]]
    %s1743 = sld [smem:[#allocation2 + $0xa9]]
    %v1744 = vstv %s1742
    %v1745 = vmul.f32 %v1744, %v1740
    %v1746 = vmul.f32 %v1744, %v1741
    %v1747 = vstv %s1743
    %v1748 = vmul.f32 %v1747, %v1740
    %v1749 = vmul.f32 %v1747, %v1741
    %v1752 = vrot.slane %v1748, 2
    %v1753 = vrot.slane %v1749, 2
    %v1756 = vadd.f32 %v1745, %v1752
    %v1757 = vadd.f32 %v1746, %v1753
    %v1758 = vmul.f32 %v471, %v551
    %v1759 = vmul.f32 %v472, %v552
    %v1760 = vmul.f32 %v1758, %v1756
    %v1761 = vmul.f32 %v1759, %v1757
    %v1762 = vadd.f32 %v1733, %v1760
    %v1763 = vadd.f32 %v1734, %v1761
    %1764 = vrot.lane.b32.xlu0 %v406, 83
    %v1765 = vpop.permute.xlu0 %1764
    %1766 = vrot.lane.b32.xlu0 %v407, 83
    %v1767 = vpop.permute.xlu0 %1766
    %vm1768 = vcmp.lt.s32.totalorder %v409, 83
    %v1769 = vsel %vm1768, %v1765, %v1767
    %v1770 = vsel %vm1768, %v1767, %v1765
    %s1771 = sld [smem:[#allocation2 + $0x2a]]
    %s1772 = sld [smem:[#allocation2 + $0xaa]]
    %v1773 = vstv %s1771
    %v1774 = vmul.f32 %v1773, %v1769
    %v1775 = vmul.f32 %v1773, %v1770
    %v1776 = vstv %s1772
    %v1777 = vmul.f32 %v1776, %v1769
    %v1778 = vmul.f32 %v1776, %v1770
    %v1781 = vrot.slane %v1777, 2
    %v1782 = vrot.slane %v1778, 2
    %v1785 = vadd.f32 %v1774, %v1781
    %v1786 = vadd.f32 %v1775, %v1782
    %v1787 = vmul.f32 %v481, %v491
    %v1788 = vmul.f32 %v482, %v492
    %v1789 = vmul.f32 %v1787, %v1785
    %v1790 = vmul.f32 %v1788, %v1786
    %v1791 = vadd.f32 %v1762, %v1789
    %v1792 = vadd.f32 %v1763, %v1790
    %1793 = vrot.lane.b32.xlu0 %v406, 82
    %v1794 = vpop.permute.xlu0 %1793
    %1795 = vrot.lane.b32.xlu0 %v407, 82
    %v1796 = vpop.permute.xlu0 %1795
    %vm1797 = vcmp.lt.s32.totalorder %v409, 82
    %v1798 = vsel %vm1797, %v1794, %v1796
    %v1799 = vsel %vm1797, %v1796, %v1794
    %s1800 = sld [smem:[#allocation2 + $0x2b]]
    %s1801 = sld [smem:[#allocation2 + $0xab]]
    %v1802 = vstv %s1800
    %v1803 = vmul.f32 %v1802, %v1798
    %v1804 = vmul.f32 %v1802, %v1799
    %v1805 = vstv %s1801
    %v1806 = vmul.f32 %v1805, %v1798
    %v1807 = vmul.f32 %v1805, %v1799
    %v1810 = vrot.slane %v1806, 2
    %v1811 = vrot.slane %v1807, 2
    %v1814 = vadd.f32 %v1803, %v1810
    %v1815 = vadd.f32 %v1804, %v1811
    %v1816 = vmul.f32 %v481, %v501
    %v1817 = vmul.f32 %v482, %v502
    %v1818 = vmul.f32 %v1816, %v1814
    %v1819 = vmul.f32 %v1817, %v1815
    %v1820 = vadd.f32 %v1791, %v1818
    %v1821 = vadd.f32 %v1792, %v1819
    %1822 = vrot.lane.b32.xlu0 %v406, 81
    %v1823 = vpop.permute.xlu0 %1822
    %1824 = vrot.lane.b32.xlu0 %v407, 81
    %v1825 = vpop.permute.xlu0 %1824
    %vm1826 = vcmp.lt.s32.totalorder %v409, 81
    %v1827 = vsel %vm1826, %v1823, %v1825
    %v1828 = vsel %vm1826, %v1825, %v1823
    %s1829 = sld [smem:[#allocation2 + $0x2c]]
    %s1830 = sld [smem:[#allocation2 + $0xac]]
    %v1831 = vstv %s1829
    %v1832 = vmul.f32 %v1831, %v1827
    %v1833 = vmul.f32 %v1831, %v1828
    %v1834 = vstv %s1830
    %v1835 = vmul.f32 %v1834, %v1827
    %v1836 = vmul.f32 %v1834, %v1828
    %v1839 = vrot.slane %v1835, 2
    %v1840 = vrot.slane %v1836, 2
    %v1843 = vadd.f32 %v1832, %v1839
    %v1844 = vadd.f32 %v1833, %v1840
    %v1845 = vmul.f32 %v481, %v511
    %v1846 = vmul.f32 %v482, %v512
    %v1847 = vmul.f32 %v1845, %v1843
    %v1848 = vmul.f32 %v1846, %v1844
    %v1849 = vadd.f32 %v1820, %v1847
    %v1850 = vadd.f32 %v1821, %v1848
    %1851 = vrot.lane.b32.xlu0 %v406, 80
    %v1852 = vpop.permute.xlu0 %1851
    %1853 = vrot.lane.b32.xlu0 %v407, 80
    %v1854 = vpop.permute.xlu0 %1853
    %vm1855 = vcmp.lt.s32.totalorder %v409, 80
    %v1856 = vsel %vm1855, %v1852, %v1854
    %v1857 = vsel %vm1855, %v1854, %v1852
    %s1858 = sld [smem:[#allocation2 + $0x2d]]
    %s1859 = sld [smem:[#allocation2 + $0xad]]
    %v1860 = vstv %s1858
    %v1861 = vmul.f32 %v1860, %v1856
    %v1862 = vmul.f32 %v1860, %v1857
    %v1863 = vstv %s1859
    %v1864 = vmul.f32 %v1863, %v1856
    %v1865 = vmul.f32 %v1863, %v1857
    %v1868 = vrot.slane %v1864, 2
    %v1869 = vrot.slane %v1865, 2
    %v1872 = vadd.f32 %v1861, %v1868
    %v1873 = vadd.f32 %v1862, %v1869
    %v1874 = vmul.f32 %v481, %v521
    %v1875 = vmul.f32 %v482, %v522
    %v1876 = vmul.f32 %v1874, %v1872
    %v1877 = vmul.f32 %v1875, %v1873
    %v1878 = vadd.f32 %v1849, %v1876
    %v1879 = vadd.f32 %v1850, %v1877
    %1880 = vrot.lane.b32.xlu0 %v406, 79
    %v1881 = vpop.permute.xlu0 %1880
    %1882 = vrot.lane.b32.xlu0 %v407, 79
    %v1883 = vpop.permute.xlu0 %1882
    %vm1884 = vcmp.lt.s32.totalorder %v409, 79
    %v1885 = vsel %vm1884, %v1881, %v1883
    %v1886 = vsel %vm1884, %v1883, %v1881
    %s1887 = sld [smem:[#allocation2 + $0x2e]]
    %s1888 = sld [smem:[#allocation2 + $0xae]]
    %v1889 = vstv %s1887
    %v1890 = vmul.f32 %v1889, %v1885
    %v1891 = vmul.f32 %v1889, %v1886
    %v1892 = vstv %s1888
    %v1893 = vmul.f32 %v1892, %v1885
    %v1894 = vmul.f32 %v1892, %v1886
    %v1897 = vrot.slane %v1893, 2
    %v1898 = vrot.slane %v1894, 2
    %v1901 = vadd.f32 %v1890, %v1897
    %v1902 = vadd.f32 %v1891, %v1898
    %v1903 = vmul.f32 %v481, %v531
    %v1904 = vmul.f32 %v482, %v532
    %v1905 = vmul.f32 %v1903, %v1901
    %v1906 = vmul.f32 %v1904, %v1902
    %v1907 = vadd.f32 %v1878, %v1905
    %v1908 = vadd.f32 %v1879, %v1906
    %1909 = vrot.lane.b32.xlu0 %v406, 78
    %v1910 = vpop.permute.xlu0 %1909
    %1911 = vrot.lane.b32.xlu0 %v407, 78
    %v1912 = vpop.permute.xlu0 %1911
    %vm1913 = vcmp.lt.s32.totalorder %v409, 78
    %v1914 = vsel %vm1913, %v1910, %v1912
    %v1915 = vsel %vm1913, %v1912, %v1910
    %s1916 = sld [smem:[#allocation2 + $0x2f]]
    %s1917 = sld [smem:[#allocation2 + $0xaf]]
    %v1918 = vstv %s1916
    %v1919 = vmul.f32 %v1918, %v1914
    %v1920 = vmul.f32 %v1918, %v1915
    %v1921 = vstv %s1917
    %v1922 = vmul.f32 %v1921, %v1914
    %v1923 = vmul.f32 %v1921, %v1915
    %v1926 = vrot.slane %v1922, 2
    %v1927 = vrot.slane %v1923, 2
    %v1930 = vadd.f32 %v1919, %v1926
    %v1931 = vadd.f32 %v1920, %v1927
    %v1932 = vmul.f32 %v481, %v541
    %v1933 = vmul.f32 %v482, %v542
    %v1934 = vmul.f32 %v1932, %v1930
    %v1935 = vmul.f32 %v1933, %v1931
    %v1936 = vadd.f32 %v1907, %v1934
    %v1937 = vadd.f32 %v1908, %v1935
    %1938 = vrot.lane.b32.xlu0 %v406, 77
    %v1939 = vpop.permute.xlu0 %1938
    %1940 = vrot.lane.b32.xlu0 %v407, 77
    %v1941 = vpop.permute.xlu0 %1940
    %vm1942 = vcmp.lt.s32.totalorder %v409, 77
    %v1943 = vsel %vm1942, %v1939, %v1941
    %v1944 = vsel %vm1942, %v1941, %v1939
    %s1945 = sld [smem:[#allocation2 + $0x30]]
    %s1946 = sld [smem:[#allocation2 + $0xb0]]
    %v1947 = vstv %s1945
    %v1948 = vmul.f32 %v1947, %v1943
    %v1949 = vmul.f32 %v1947, %v1944
    %v1950 = vstv %s1946
    %v1951 = vmul.f32 %v1950, %v1943
    %v1952 = vmul.f32 %v1950, %v1944
    %v1955 = vrot.slane %v1951, 2
    %v1956 = vrot.slane %v1952, 2
    %v1959 = vadd.f32 %v1948, %v1955
    %v1960 = vadd.f32 %v1949, %v1956
    %v1961 = vmul.f32 %v481, %v551
    %v1962 = vmul.f32 %v482, %v552
    %v1963 = vmul.f32 %v1961, %v1959
    %v1964 = vmul.f32 %v1962, %v1960
    %v1965 = vadd.f32 %v1936, %v1963
    %v1966 = vadd.f32 %v1937, %v1964
    %v1967 = vxor.u32 %v1965, 2147483648
    %v1968 = vxor.u32 %v1966, 2147483648
    %v1969 = vmul.f32 %v1967, 1.442695
    %v1970 = vpow.pop %v1969
    %v1971 = vmul.f32 %v1968, 1.442695
    %v1972 = vpow.pop %v1971
    %v1973 = vadd.f32 %v1970, 1.0
    %v1974 = vadd.f32 %v1972, 1.0
    %v1975 = vrcp.pop %v1973
    %v1976 = vmul.f32 1.0, %v1975
    %v1977 = vrcp.pop %v1974
    %v1978 = vmul.f32 1.0, %v1977
    %v1979 = vlaneseq
    %v1980 = vshrl.u32 %v1979, 7
    %v1981 = vsub.s32 0, %v1980
    %v1982 = vrot.slane %v1976, %v1981
    %v1983 = vlaneseq
    %v1984 = vshrl.u32 %v1983, 7
    %v1985 = vsub.s32 0, %v1984
    %v1986 = vrot.slane %v1978, %v1985
    %v1987 = vmul.f32 %v164, %v1982
    %v1988 = vmul.f32 %v164, %v1986
    %v1989 = vmul.f32 %v166, %v1982
    %v1990 = vmul.f32 %v166, %v1986
    %v1991 = vmul.f32 %v168, %v1982
    %v1992 = vmul.f32 %v168, %v1986
    %v1993 = vmul.f32 %v170, %v1982
    %v1994 = vmul.f32 %v170, %v1986
    %v1995 = vmul.f32 %v1987, %v30
    %v1996 = vmul.f32 %v1988, %v31
    %v1997 = vmul.f32 %v1989, %v32
    %v1998 = vmul.f32 %v1990, %v33
    %v1999 = vmul.f32 %v1991, %v34
    %v2000 = vmul.f32 %v1992, %v35
    %v2001 = vmul.f32 %v1993, %v36
    %v2002 = vmul.f32 %v1994, %v37
    %2003 = vst [vmem:[%s4] sm:$0xff] %v1995
    %2004 = vst [vmem:[%s4 + $0x8] sm:$0xff] %v1996
    %2005 = vst [vmem:[%s4 + $0x10] sm:$0xff] %v1997
    %2006 = vst [vmem:[%s4 + $0x18] sm:$0xff] %v1998
    %2007 = vst [vmem:[%s4 + $0x20] sm:$0xff] %v1999
    %2008 = vst [vmem:[%s4 + $0x28] sm:$0xff] %v2000
    %2009 = vst [vmem:[%s4 + $0x30] sm:$0xff] %v2001
    %2010 = vst [vmem:[%s4 + $0x38] sm:$0xff] %v2002
    %v2011 = vlaneseq
    %v2012 = vshrl.u32 %v2011, 7
    %v2013 = vsub.s32 1, %v2012
    %v2014 = vrot.slane %v1976, %v2013
    %v2015 = vlaneseq
    %v2016 = vshrl.u32 %v2015, 7
    %v2017 = vsub.s32 1, %v2016
    %v2018 = vrot.slane %v1978, %v2017
    %v2019 = vmul.f32 %v343, %v2014
    %v2020 = vmul.f32 %v343, %v2018
    %v2021 = vmul.f32 %v345, %v2014
    %v2022 = vmul.f32 %v345, %v2018
    %v2023 = vmul.f32 %v347, %v2014
    %v2024 = vmul.f32 %v347, %v2018
    %v2025 = vmul.f32 %v349, %v2014
    %v2026 = vmul.f32 %v349, %v2018
    %v2027 = vld [vmem:[%s217] sm:$0xff]
    %v2028 = vld [vmem:[%s217 + $0x8] sm:$0xff]
    %v2029 = vld [vmem:[%s217 + $0x10] sm:$0xff]
    %v2030 = vld [vmem:[%s217 + $0x18] sm:$0xff]
    %v2031 = vld [vmem:[%s217 + $0x20] sm:$0xff]
    %v2032 = vld [vmem:[%s217 + $0x28] sm:$0xff]
    %v2033 = vld [vmem:[%s217 + $0x30] sm:$0xff]
    %v2034 = vld [vmem:[%s217 + $0x38] sm:$0xff]
    %v2035 = vmul.f32 %v2019, %v2027
    %v2036 = vmul.f32 %v2020, %v2028
    %v2037 = vmul.f32 %v2021, %v2029
    %v2038 = vmul.f32 %v2022, %v2030
    %v2039 = vmul.f32 %v2023, %v2031
    %v2040 = vmul.f32 %v2024, %v2032
    %v2041 = vmul.f32 %v2025, %v2033
    %v2042 = vmul.f32 %v2026, %v2034
    %s2043 = scalar_lea.vmem %s4, 64
    %2044 = vst [vmem:[%s2043] sm:$0xff] %v2035
    %2045 = vst [vmem:[%s2043 + $0x8] sm:$0xff] %v2036
    %2046 = vst [vmem:[%s2043 + $0x10] sm:$0xff] %v2037
    %2047 = vst [vmem:[%s2043 + $0x18] sm:$0xff] %v2038
    %2048 = vst [vmem:[%s2043 + $0x20] sm:$0xff] %v2039
    %2049 = vst [vmem:[%s2043 + $0x28] sm:$0xff] %v2040
    %2050 = vst [vmem:[%s2043 + $0x30] sm:$0xff] %v2041
    %2051 = vst [vmem:[%s2043 + $0x38] sm:$0xff] %v2042
    // Predicated region
    $region22: #{cbam_pallas.1} parent=1 // pred_check
      _
    $region23: #{cbam_pallas.1} parent=1 // pred_check_branch
      %2053 = sbr.rel (0) target = $region25
    $region24: #{cbam_pallas.1} parent=1 // pred_region
      _
    $region25: #{cbam_pallas.1} parent=1 // pred_fallthru
      _
    // Predicated region
    $region26: #{cbam_pallas.1} parent=1 // pred_check
      _
    $region27: #{cbam_pallas.1} parent=1 // pred_check_branch
      %2055 = sbr.rel (0) target = $region29
    $region28: #{cbam_pallas.1} parent=1 // pred_region
      _
    $region29: #{cbam_pallas.1} parent=1 // pred_fallthru
      _
    %2056 = vsyncpa [#allocation3], 1

</llo_original>
